<compile_context>
chip_gen: v5e
topology: v5e:2x2
jax: 0.10.0
libtpu: 0.0.40
codegen_flags: <defaults>
</compile_context>

<pallas_src>
import jax
import jax.numpy as jnp
from jax import lax
from jax.experimental import pallas as pl
from jax.experimental.pallas import tpu as pltpu

# ----- small, TPU-friendly shapes consistent with the module -----
BATCH = 8
SEQ = 8
INPUT_SIZE = 128     # module default is 1024; kept small but lane-aligned
HIDDEN_SIZE = 128
NUM_CLASSES = 8
NUM_LAYERS = 2       # hard-wired (layer 0 + layer 1) in the kernel body
NPAD = 128           # fc output padded to a lane-dense width


def lstm_classifier_kernel(x_ref, wih0_ref, b0_ref, whhc_ref, b1_ref,
                           whh1_ref, wfc_ref, bfc_ref,
                           out_ref,
                           pre0_ref):
    """2 wavefronted LSTM layers over time + fc on the last hidden state.

    x_ref   : (T*B, D)  f32   time-major, flattened
    wih0    : (D, 4H)   bf16  layer-0 input weights, gate order [i,f,o,g]
    b0      : (1, 4H)   f32   b_ih0 + b_hh0 (permuted)
    whhc    : (H, 8H)   bf16  [whh0 | wih1] concatenated (permuted)
    b1      : (1, 4H)   f32   b_ih1 + b_hh1 (permuted)
    whh1    : (H, 4H)   bf16  layer-1 recurrent weights (permuted)
    wfc     : (H, 128)  f32   fc weight padded to 128 output lanes
    bfc     : (1, 128)  f32
    out_ref : (B, 128)  f32
    pre0_ref: (T*B, 4H) f32   scratch — staged layer-0 pre-activations
    """
    TB = x_ref.shape[0]
    B = out_ref.shape[0]
    T = TB // B
    H = whh1_ref.shape[0]

    # ---- hoisted layer-0 input projection (bias folded), staged in VMEM ----
    # Staging keeps the ~32-vreg pre0 out of the register file across the
    # unrolled recurrence; each step reloads one sublane-aligned (B,4H) slice.
    pre0_ref[...] = (
        jnp.dot(x_ref[...].astype(jnp.bfloat16), wih0_ref[...],
                preferred_element_type=jnp.float32) + b0_ref[...])

    def gates(z, c):
        # gate order [i, f, o, g]: one sigmoid over a contiguous (B, 3H)
        # slab, one tanh over the last H columns.
        sig = jax.nn.sigmoid(z[:, :3 * H])
        g = jnp.tanh(z[:, 3 * H:])
        i = sig[:, 0:H]
        f = sig[:, H:2 * H]
        o = sig[:, 2 * H:3 * H]
        c_new = f * c + i * g
        h_new = o * jnp.tanh(c_new)
        return h_new, c_new

    zeros = jnp.zeros((B, H), jnp.float32)
    b1 = b1_ref[...]

    # ---- wavefront step s=0: layer-0 step 0 (h0_{-1}=0 ⇒ no recurrent dot) --
    h0, c0 = gates(pre0_ref[0:B, :], zeros)
    h1, c1 = zeros, zeros

    # ---- wavefront steps s=1..T-1: layer-0 step s + layer-1 step s-1 -------
    # Fully unrolled (T is small & static) so the scheduler interleaves both
    # layers' MXU / EUP / VPU work.  Recurrent weights are read from their
    # refs per step (they don't fit the vreg file), keeping live ranges short.
    for s in range(1, T):
        r = s * B  # static, sublane-aligned (multiple of 8)
        comb = jnp.dot(h0.astype(jnp.bfloat16), whhc_ref[...],
                       preferred_element_type=jnp.float32)      # (B, 8H)
        rec1 = jnp.dot(h1.astype(jnp.bfloat16), whh1_ref[...],
                       preferred_element_type=jnp.float32)      # (B, 4H)
        z0 = pre0_ref[r:r + B, :] + comb[:, :4 * H]
        z1 = comb[:, 4 * H:] + b1 + rec1
        h0, c0 = gates(z0, c0)      # layer 0, step s
        h1, c1 = gates(z1, c1)      # layer 1, step s-1

    # ---- wavefront tail s=T: layer-1 step T-1 ------------------------------
    in1 = jnp.dot(h0.astype(jnp.bfloat16), whhc_ref[:, 4 * H:],
                  preferred_element_type=jnp.float32)            # h0_{T-1}@wih1
    rec1 = jnp.dot(h1.astype(jnp.bfloat16), whh1_ref[...],
                   preferred_element_type=jnp.float32)
    h1, c1 = gates(in1 + b1 + rec1, c1)

    # ---- fc on the last timestep's layer-1 hidden state (lane-dense N=128) --
    out_ref[...] = (jnp.dot(h1, wfc_ref[...],
                            preferred_element_type=jnp.float32) + bfc_ref[...])


def lstm_classifier(x, params):
    """x: (B, T, D) float32 (batch_first, like the PyTorch module)."""
    wih0, whh0, b0, wih1, whh1, b1, wfc, bfc = params
    B, T, D = x.shape
    H = whh0.shape[0]
    C = wfc.shape[1]

    # time-major, flattened to (T*B, D) so the layer-0 input projection is a
    # single contiguous matmul inside the kernel.
    x_tm = jnp.transpose(x, (1, 0, 2)).reshape(T * B, D)

    # permute gate columns from torch order [i, f, g, o] to [i, f, o, g] so
    # the kernel does one contiguous sigmoid + one tanh per step.
    def pg(w):
        return jnp.concatenate(
            [w[:, :2 * H], w[:, 3 * H:4 * H], w[:, 2 * H:3 * H]], axis=1)

    # LSTM matmul weights in bf16 (native MXU rate); biases, gate math, state
    # and fc stay f32.
    wih0_p = pg(wih0).astype(jnp.bfloat16)
    whh0_p = pg(whh0).astype(jnp.bfloat16)
    wih1_p = pg(wih1).astype(jnp.bfloat16)
    whh1_p = pg(whh1).astype(jnp.bfloat16)
    b0_p = pg(b0)
    b1_p = pg(b1)

    # wavefront RHS concat: h0_{s-1} @ [whh0 | wih1] becomes ONE MXU call.
    whh_comb = jnp.concatenate([whh0_p, wih1_p], axis=1)   # (H, 8H) bf16

    # pad fc to a lane-dense N=128 output; slice back outside the kernel.
    wfc_pad = jnp.zeros((H, NPAD), jnp.float32).at[:, :C].set(wfc)
    bfc_pad = jnp.zeros((1, NPAD), jnp.float32).at[:, :C].set(bfc)

    vmem = pl.BlockSpec(memory_space=pltpu.MemorySpace.VMEM)
    out_pad = pl.pallas_call(
        lstm_classifier_kernel,
        out_shape=jax.ShapeDtypeStruct((B, NPAD), jnp.float32),
        in_specs=[vmem] * 8,
        out_specs=vmem,
        scratch_shapes=[
            pltpu.VMEM((T * B, 4 * H), jnp.float32),  # staged layer-0 pre-acts
        ],
    )(x_tm, wih0_p, b0_p, whh_comb, b1_p, whh1_p, wfc_pad, bfc_pad)
    return out_pad[:, :C]


def lstm_classifier_ref(x, params, cast_bf16):
    """Pure-JAX reference mirroring torch.nn.LSTM + Linear semantics.

    cast_bf16=True  → same mixed precision as the kernel (bf16 matmul
                      operands, f32 accumulation/state): consistency check.
    cast_bf16=False → full f32, i.e. fidelity to the original torch module.
    """
    wih0, whh0, b0, wih1, whh1, b1, wfc, bfc = params
    H = whh0.shape[0]

    def maybe(w):
        return w.astype(jnp.bfloat16) if cast_bf16 else w

    def layer(xs, wih, whh, b):  # xs: (T, B, in) f32
        Bb = xs.shape[1]
        wih_c = maybe(wih)
        whh_c = maybe(whh)

        def step(carry, x_t):
            h, c = carry
            z = (jnp.dot(x_t.astype(wih_c.dtype), wih_c,
                         preferred_element_type=jnp.float32)
                 + jnp.dot(h.astype(whh_c.dtype), whh_c,
                           preferred_element_type=jnp.float32)
                 + b)
            i = jax.nn.sigmoid(z[:, :H])
            f = jax.nn.sigmoid(z[:, H:2 * H])
            g = jnp.tanh(z[:, 2 * H:3 * H])
            o = jax.nn.sigmoid(z[:, 3 * H:])
            c = f * c + i * g
            h = o * jnp.tanh(c)
            return (h, c), h

        init = (jnp.zeros((Bb, H), jnp.float32),
                jnp.zeros((Bb, H), jnp.float32))
        (h_last, _), hs = lax.scan(step, init, xs)
        return hs, h_last

    xs = jnp.transpose(x, (1, 0, 2))
    hs0, _ = layer(xs, wih0, whh0, b0)
    _, h1 = layer(hs0, wih1, whh1, b1)
    return h1 @ wfc + bfc


def init_params(key, input_size, hidden_size, num_classes):
    """Deterministic init, torch-style uniform(-1/sqrt(H), 1/sqrt(H)).

    Weights are stored transposed, (in_dim, 4H), in torch gate order
    [i, f, g, o]; the wrapper handles bf16 cast / gate permutation / concat.
    """
    H = hidden_size
    k = 1.0 / jnp.sqrt(jnp.float32(H))
    keys = jax.random.split(key, 10)

    def u(kk, shape):
        return jax.random.uniform(kk, shape, jnp.float32, -k, k)

    wih0 = u(keys[0], (input_size, 4 * H))
    whh0 = u(keys[1], (H, 4 * H))
    b0 = u(keys[2], (1, 4 * H)) + u(keys[3], (1, 4 * H))  # b_ih0 + b_hh0
    wih1 = u(keys[4], (H, 4 * H))
    whh1 = u(keys[5], (H, 4 * H))
    b1 = u(keys[6], (1, 4 * H)) + u(keys[7], (1, 4 * H))  # b_ih1 + b_hh1
    wfc = u(keys[8], (H, num_classes))
    bfc = u(keys[9], (1, num_classes))
    return (wih0, whh0, b0, wih1, whh1, b1, wfc, bfc)


if __name__ == "__main__":
    key = jax.random.PRNGKey(0)
    k_x, k_p = jax.random.split(key)

    x = jax.random.normal(k_x, (BATCH, SEQ, INPUT_SIZE), jnp.float32)
    params = init_params(k_p, INPUT_SIZE, HIDDEN_SIZE, NUM_CLASSES)

    out = jax.jit(lstm_classifier)(x, params)
    out = jax.block_until_ready(out)
    assert out.shape == (BATCH, NUM_CLASSES)

    # (a) consistency vs a reference using the same mixed precision as kernel
    ref_mixed = lstm_classifier_ref(x, params, cast_bf16=True)
    assert jnp.allclose(out, ref_mixed, atol=5e-3, rtol=5e-3), \
        "mismatch vs mixed-precision JAX reference"

    # (b) fidelity vs the full-f32 (torch-equivalent) reference; only bf16
    # weight/activation rounding separates the two, so a loose tolerance.
    ref_f32 = lstm_classifier_ref(x, params, cast_bf16=False)
    assert jnp.allclose(out, ref_f32, atol=5e-2, rtol=5e-2), \
        "mismatch vs f32 JAX reference"

    print("KERNEL_OK")
</pallas_src>

<mosaic_0001>
module attributes {stable_mosaic.version = 11 : i64} {
  func.func @lstm_classifier_kernel(%arg0: memref<64x128xf32, #tpu.memory_space<vmem>>, %arg1: memref<128x512xbf16, #tpu.memory_space<vmem>>, %arg2: memref<1x512xf32, #tpu.memory_space<vmem>>, %arg3: memref<128x1024xbf16, #tpu.memory_space<vmem>>, %arg4: memref<1x512xf32, #tpu.memory_space<vmem>>, %arg5: memref<128x512xbf16, #tpu.memory_space<vmem>>, %arg6: memref<128x128xf32, #tpu.memory_space<vmem>>, %arg7: memref<1x128xf32, #tpu.memory_space<vmem>>, %arg8: memref<8x128xf32, #tpu.memory_space<vmem>>, %arg9: memref<64x512xf32, #tpu.memory_space<vmem>>) attributes {dimension_semantics = [], scalar_prefetch = 0 : i64, scratch_operands = 1 : i64, tpu.core_type = #tpu.core_type<tc>} {
    %c0 = arith.constant 0 : index
    %c0_0 = arith.constant 0 : index
    %0 = vector.load %arg0[%c0, %c0_0] : memref<64x128xf32, #tpu.memory_space<vmem>>, vector<64x128xf32>
    %1 = arith.truncf %0 : vector<64x128xf32> to vector<64x128xbf16>
    %c0_1 = arith.constant 0 : index
    %c0_2 = arith.constant 0 : index
    %2 = vector.load %arg1[%c0_1, %c0_2] : memref<128x512xbf16, #tpu.memory_space<vmem>>, vector<128x512xbf16>
    %cst = arith.constant dense<0.000000e+00> : vector<64x512xf32>
    %3 = tpu.matmul %1, %2, %cst {dimension_numbers = #tpu.dot_dimension_numbers<[1], [0], [0], [1], [0, 0, 1, 1], [], []>} : vector<64x128xbf16>, vector<128x512xbf16>, vector<64x512xf32> -> vector<64x512xf32>
    %c0_3 = arith.constant 0 : index
    %c0_4 = arith.constant 0 : index
    %4 = vector.load %arg2[%c0_3, %c0_4] : memref<1x512xf32, #tpu.memory_space<vmem>>, vector<1x512xf32>
    %5 = vector.broadcast %4 : vector<1x512xf32> to vector<64x512xf32>
    %6 = arith.addf %3, %5 : vector<64x512xf32>
    %c0_5 = arith.constant 0 : index
    %c0_6 = arith.constant 0 : index
    %7 = vector.load %arg9[%c0_5, %c0_6] : memref<64x512xf32, #tpu.memory_space<vmem>>, vector<64x512xf32>
    tpu.vector_store %arg9[%c0_5, %c0_6], %6 {strides = array<i32>} : memref<64x512xf32, #tpu.memory_space<vmem>>, vector<64x512xf32>,
    %cst_7 = arith.constant 0.000000e+00 : f32
    %8 = vector.broadcast %cst_7 : f32 to vector<8x128xf32>
    %c0_8 = arith.constant 0 : index
    %c0_9 = arith.constant 0 : index
    %9 = vector.load %arg4[%c0_8, %c0_9] : memref<1x512xf32, #tpu.memory_space<vmem>>, vector<1x512xf32>
    %c0_10 = arith.constant 0 : index
    %c0_11 = arith.constant 0 : index
    %10 = vector.load %arg9[%c0_10, %c0_11] : memref<64x512xf32, #tpu.memory_space<vmem>>, vector<8x512xf32>
    %11 = vector.extract_strided_slice %10 {offsets = [0, 0], sizes = [8, 384], strides = [1, 1]} : vector<8x512xf32> to vector<8x384xf32>
    %12 = arith.negf %11 : vector<8x384xf32>
    %13 = math.exp %12 : vector<8x384xf32>
    %cst_12 = arith.constant 1.000000e+00 : f32
    %14 = vector.broadcast %cst_12 : f32 to vector<8x384xf32>
    %15 = arith.addf %14, %13 : vector<8x384xf32>
    %16 = arith.divf %14, %15 : vector<8x384xf32>
    %17 = vector.extract_strided_slice %10 {offsets = [0, 384], sizes = [8, 128], strides = [1, 1]} : vector<8x512xf32> to vector<8x128xf32>
    %18 = math.tanh %17 : vector<8x128xf32>
    %19 = vector.extract_strided_slice %16 {offsets = [0, 0], sizes = [8, 128], strides = [1, 1]} : vector<8x384xf32> to vector<8x128xf32>
    %20 = vector.extract_strided_slice %16 {offsets = [0, 128], sizes = [8, 128], strides = [1, 1]} : vector<8x384xf32> to vector<8x128xf32>
    %21 = vector.extract_strided_slice %16 {offsets = [0, 256], sizes = [8, 128], strides = [1, 1]} : vector<8x384xf32> to vector<8x128xf32>
    %22 = arith.mulf %20, %8 : vector<8x128xf32>
    %23 = arith.mulf %19, %18 : vector<8x128xf32>
    %24 = arith.addf %22, %23 : vector<8x128xf32>
    %25 = math.tanh %24 : vector<8x128xf32>
    %26 = arith.mulf %21, %25 : vector<8x128xf32>
    %27 = arith.truncf %26 : vector<8x128xf32> to vector<8x128xbf16>
    %c0_13 = arith.constant 0 : index
    %c0_14 = arith.constant 0 : index
    %28 = vector.load %arg3[%c0_13, %c0_14] : memref<128x1024xbf16, #tpu.memory_space<vmem>>, vector<128x1024xbf16>
    %cst_15 = arith.constant dense<0.000000e+00> : vector<8x1024xf32>
    %29 = tpu.matmul %27, %28, %cst_15 {dimension_numbers = #tpu.dot_dimension_numbers<[1], [0], [0], [1], [0, 0, 1, 1], [], []>} : vector<8x128xbf16>, vector<128x1024xbf16>, vector<8x1024xf32> -> vector<8x1024xf32>
    %30 = arith.truncf %8 : vector<8x128xf32> to vector<8x128xbf16>
    %c0_16 = arith.constant 0 : index
    %c0_17 = arith.constant 0 : index
    %31 = vector.load %arg5[%c0_16, %c0_17] : memref<128x512xbf16, #tpu.memory_space<vmem>>, vector<128x512xbf16>
    %cst_18 = arith.constant dense<0.000000e+00> : vector<8x512xf32>
    %32 = tpu.matmul %30, %31, %cst_18 {dimension_numbers = #tpu.dot_dimension_numbers<[1], [0], [0], [1], [0, 0, 1, 1], [], []>} : vector<8x128xbf16>, vector<128x512xbf16>, vector<8x512xf32> -> vector<8x512xf32>
    %c8 = arith.constant 8 : index
    %c0_19 = arith.constant 0 : index
    %33 = vector.load %arg9[%c8, %c0_19] : memref<64x512xf32, #tpu.memory_space<vmem>>, vector<8x512xf32>
    %34 = vector.extract_strided_slice %29 {offsets = [0, 0], sizes = [8, 512], strides = [1, 1]} : vector<8x1024xf32> to vector<8x512xf32>
    %35 = arith.addf %33, %34 : vector<8x512xf32>
    %36 = vector.extract_strided_slice %29 {offsets = [0, 512], sizes = [8, 512], strides = [1, 1]} : vector<8x1024xf32> to vector<8x512xf32>
    %37 = vector.broadcast %9 : vector<1x512xf32> to vector<8x512xf32>
    %38 = arith.addf %36, %37 : vector<8x512xf32>
    %39 = arith.addf %38, %32 : vector<8x512xf32>
    %40 = vector.extract_strided_slice %35 {offsets = [0, 0], sizes = [8, 384], strides = [1, 1]} : vector<8x512xf32> to vector<8x384xf32>
    %41 = arith.negf %40 : vector<8x384xf32>
    %42 = math.exp %41 : vector<8x384xf32>
    %cst_20 = arith.constant 1.000000e+00 : f32
    %43 = vector.broadcast %cst_20 : f32 to vector<8x384xf32>
    %44 = arith.addf %43, %42 : vector<8x384xf32>
    %45 = arith.divf %43, %44 : vector<8x384xf32>
    %46 = vector.extract_strided_slice %35 {offsets = [0, 384], sizes = [8, 128], strides = [1, 1]} : vector<8x512xf32> to vector<8x128xf32>
    %47 = math.tanh %46 : vector<8x128xf32>
    %48 = vector.extract_strided_slice %45 {offsets = [0, 0], sizes = [8, 128], strides = [1, 1]} : vector<8x384xf32> to vector<8x128xf32>
    %49 = vector.extract_strided_slice %45 {offsets = [0, 128], sizes = [8, 128], strides = [1, 1]} : vector<8x384xf32> to vector<8x128xf32>
    %50 = vector.extract_strided_slice %45 {offsets = [0, 256], sizes = [8, 128], strides = [1, 1]} : vector<8x384xf32> to vector<8x128xf32>
    %51 = arith.mulf %49, %24 : vector<8x128xf32>
    %52 = arith.mulf %48, %47 : vector<8x128xf32>
    %53 = arith.addf %51, %52 : vector<8x128xf32>
    %54 = math.tanh %53 : vector<8x128xf32>
    %55 = arith.mulf %50, %54 : vector<8x128xf32>
    %56 = vector.extract_strided_slice %39 {offsets = [0, 0], sizes = [8, 384], strides = [1, 1]} : vector<8x512xf32> to vector<8x384xf32>
    %57 = arith.negf %56 : vector<8x384xf32>
    %58 = math.exp %57 : vector<8x384xf32>
    %cst_21 = arith.constant 1.000000e+00 : f32
    %59 = vector.broadcast %cst_21 : f32 to vector<8x384xf32>
    %60 = arith.addf %59, %58 : vector<8x384xf32>
    %61 = arith.divf %59, %60 : vector<8x384xf32>
    %62 = vector.extract_strided_slice %39 {offsets = [0, 384], sizes = [8, 128], strides = [1, 1]} : vector<8x512xf32> to vector<8x128xf32>
    %63 = math.tanh %62 : vector<8x128xf32>
    %64 = vector.extract_strided_slice %61 {offsets = [0, 0], sizes = [8, 128], strides = [1, 1]} : vector<8x384xf32> to vector<8x128xf32>
    %65 = vector.extract_strided_slice %61 {offsets = [0, 128], sizes = [8, 128], strides = [1, 1]} : vector<8x384xf32> to vector<8x128xf32>
    %66 = vector.extract_strided_slice %61 {offsets = [0, 256], sizes = [8, 128], strides = [1, 1]} : vector<8x384xf32> to vector<8x128xf32>
    %67 = arith.mulf %65, %8 : vector<8x128xf32>
    %68 = arith.mulf %64, %63 : vector<8x128xf32>
    %69 = arith.addf %67, %68 : vector<8x128xf32>
    %70 = math.tanh %69 : vector<8x128xf32>
    %71 = arith.mulf %66, %70 : vector<8x128xf32>
    %72 = arith.truncf %55 : vector<8x128xf32> to vector<8x128xbf16>
    %c0_22 = arith.constant 0 : index
    %c0_23 = arith.constant 0 : index
    %73 = vector.load %arg3[%c0_22, %c0_23] : memref<128x1024xbf16, #tpu.memory_space<vmem>>, vector<128x1024xbf16>
    %cst_24 = arith.constant dense<0.000000e+00> : vector<8x1024xf32>
    %74 = tpu.matmul %72, %73, %cst_24 {dimension_numbers = #tpu.dot_dimension_numbers<[1], [0], [0], [1], [0, 0, 1, 1], [], []>} : vector<8x128xbf16>, vector<128x1024xbf16>, vector<8x1024xf32> -> vector<8x1024xf32>
    %75 = arith.truncf %71 : vector<8x128xf32> to vector<8x128xbf16>
    %c0_25 = arith.constant 0 : index
    %c0_26 = arith.constant 0 : index
    %76 = vector.load %arg5[%c0_25, %c0_26] : memref<128x512xbf16, #tpu.memory_space<vmem>>, vector<128x512xbf16>
    %cst_27 = arith.constant dense<0.000000e+00> : vector<8x512xf32>
    %77 = tpu.matmul %75, %76, %cst_27 {dimension_numbers = #tpu.dot_dimension_numbers<[1], [0], [0], [1], [0, 0, 1, 1], [], []>} : vector<8x128xbf16>, vector<128x512xbf16>, vector<8x512xf32> -> vector<8x512xf32>
    %c16 = arith.constant 16 : index
    %c0_28 = arith.constant 0 : index
    %78 = vector.load %arg9[%c16, %c0_28] : memref<64x512xf32, #tpu.memory_space<vmem>>, vector<8x512xf32>
    %79 = vector.extract_strided_slice %74 {offsets = [0, 0], sizes = [8, 512], strides = [1, 1]} : vector<8x1024xf32> to vector<8x512xf32>
    %80 = arith.addf %78, %79 : vector<8x512xf32>
    %81 = vector.extract_strided_slice %74 {offsets = [0, 512], sizes = [8, 512], strides = [1, 1]} : vector<8x1024xf32> to vector<8x512xf32>
    %82 = vector.broadcast %9 : vector<1x512xf32> to vector<8x512xf32>
    %83 = arith.addf %81, %82 : vector<8x512xf32>
    %84 = arith.addf %83, %77 : vector<8x512xf32>
    %85 = vector.extract_strided_slice %80 {offsets = [0, 0], sizes = [8, 384], strides = [1, 1]} : vector<8x512xf32> to vector<8x384xf32>
    %86 = arith.negf %85 : vector<8x384xf32>
    %87 = math.exp %86 : vector<8x384xf32>
    %cst_29 = arith.constant 1.000000e+00 : f32
    %88 = vector.broadcast %cst_29 : f32 to vector<8x384xf32>
    %89 = arith.addf %88, %87 : vector<8x384xf32>
    %90 = arith.divf %88, %89 : vector<8x384xf32>
    %91 = vector.extract_strided_slice %80 {offsets = [0, 384], sizes = [8, 128], strides = [1, 1]} : vector<8x512xf32> to vector<8x128xf32>
    %92 = math.tanh %91 : vector<8x128xf32>
    %93 = vector.extract_strided_slice %90 {offsets = [0, 0], sizes = [8, 128], strides = [1, 1]} : vector<8x384xf32> to vector<8x128xf32>
    %94 = vector.extract_strided_slice %90 {offsets = [0, 128], sizes = [8, 128], strides = [1, 1]} : vector<8x384xf32> to vector<8x128xf32>
    %95 = vector.extract_strided_slice %90 {offsets = [0, 256], sizes = [8, 128], strides = [1, 1]} : vector<8x384xf32> to vector<8x128xf32>
    %96 = arith.mulf %94, %53 : vector<8x128xf32>
    %97 = arith.mulf %93, %92 : vector<8x128xf32>
    %98 = arith.addf %96, %97 : vector<8x128xf32>
    %99 = math.tanh %98 : vector<8x128xf32>
    %100 = arith.mulf %95, %99 : vector<8x128xf32>
    %101 = vector.extract_strided_slice %84 {offsets = [0, 0], sizes = [8, 384], strides = [1, 1]} : vector<8x512xf32> to vector<8x384xf32>
    %102 = arith.negf %101 : vector<8x384xf32>
    %103 = math.exp %102 : vector<8x384xf32>
    %cst_30 = arith.constant 1.000000e+00 : f32
    %104 = vector.broadcast %cst_30 : f32 to vector<8x384xf32>
    %105 = arith.addf %104, %103 : vector<8x384xf32>
    %106 = arith.divf %104, %105 : vector<8x384xf32>
    %107 = vector.extract_strided_slice %84 {offsets = [0, 384], sizes = [8, 128], strides = [1, 1]} : vector<8x512xf32> to vector<8x128xf32>
    %108 = math.tanh %107 : vector<8x128xf32>
    %109 = vector.extract_strided_slice %106 {offsets = [0, 0], sizes = [8, 128], strides = [1, 1]} : vector<8x384xf32> to vector<8x128xf32>
    %110 = vector.extract_strided_slice %106 {offsets = [0, 128], sizes = [8, 128], strides = [1, 1]} : vector<8x384xf32> to vector<8x128xf32>
    %111 = vector.extract_strided_slice %106 {offsets = [0, 256], sizes = [8, 128], strides = [1, 1]} : vector<8x384xf32> to vector<8x128xf32>
    %112 = arith.mulf %110, %69 : vector<8x128xf32>
    %113 = arith.mulf %109, %108 : vector<8x128xf32>
    %114 = arith.addf %112, %113 : vector<8x128xf32>
    %115 = math.tanh %114 : vector<8x128xf32>
    %116 = arith.mulf %111, %115 : vector<8x128xf32>
    %117 = arith.truncf %100 : vector<8x128xf32> to vector<8x128xbf16>
    %c0_31 = arith.constant 0 : index
    %c0_32 = arith.constant 0 : index
    %118 = vector.load %arg3[%c0_31, %c0_32] : memref<128x1024xbf16, #tpu.memory_space<vmem>>, vector<128x1024xbf16>
    %cst_33 = arith.constant dense<0.000000e+00> : vector<8x1024xf32>
    %119 = tpu.matmul %117, %118, %cst_33 {dimension_numbers = #tpu.dot_dimension_numbers<[1], [0], [0], [1], [0, 0, 1, 1], [], []>} : vector<8x128xbf16>, vector<128x1024xbf16>, vector<8x1024xf32> -> vector<8x1024xf32>
    %120 = arith.truncf %116 : vector<8x128xf32> to vector<8x128xbf16>
    %c0_34 = arith.constant 0 : index
    %c0_35 = arith.constant 0 : index
    %121 = vector.load %arg5[%c0_34, %c0_35] : memref<128x512xbf16, #tpu.memory_space<vmem>>, vector<128x512xbf16>
    %cst_36 = arith.constant dense<0.000000e+00> : vector<8x512xf32>
    %122 = tpu.matmul %120, %121, %cst_36 {dimension_numbers = #tpu.dot_dimension_numbers<[1], [0], [0], [1], [0, 0, 1, 1], [], []>} : vector<8x128xbf16>, vector<128x512xbf16>, vector<8x512xf32> -> vector<8x512xf32>
    %c24 = arith.constant 24 : index
    %c0_37 = arith.constant 0 : index
    %123 = vector.load %arg9[%c24, %c0_37] : memref<64x512xf32, #tpu.memory_space<vmem>>, vector<8x512xf32>
    %124 = vector.extract_strided_slice %119 {offsets = [0, 0], sizes = [8, 512], strides = [1, 1]} : vector<8x1024xf32> to vector<8x512xf32>
    %125 = arith.addf %123, %124 : vector<8x512xf32>
    %126 = vector.extract_strided_slice %119 {offsets = [0, 512], sizes = [8, 512], strides = [1, 1]} : vector<8x1024xf32> to vector<8x512xf32>
    %127 = vector.broadcast %9 : vector<1x512xf32> to vector<8x512xf32>
    %128 = arith.addf %126, %127 : vector<8x512xf32>
    %129 = arith.addf %128, %122 : vector<8x512xf32>
    %130 = vector.extract_strided_slice %125 {offsets = [0, 0], sizes = [8, 384], strides = [1, 1]} : vector<8x512xf32> to vector<8x384xf32>
    %131 = arith.negf %130 : vector<8x384xf32>
    %132 = math.exp %131 : vector<8x384xf32>
    %cst_38 = arith.constant 1.000000e+00 : f32
    %133 = vector.broadcast %cst_38 : f32 to vector<8x384xf32>
    %134 = arith.addf %133, %132 : vector<8x384xf32>
    %135 = arith.divf %133, %134 : vector<8x384xf32>
    %136 = vector.extract_strided_slice %125 {offsets = [0, 384], sizes = [8, 128], strides = [1, 1]} : vector<8x512xf32> to vector<8x128xf32>
    %137 = math.tanh %136 : vector<8x128xf32>
    %138 = vector.extract_strided_slice %135 {offsets = [0, 0], sizes = [8, 128], strides = [1, 1]} : vector<8x384xf32> to vector<8x128xf32>
    %139 = vector.extract_strided_slice %135 {offsets = [0, 128], sizes = [8, 128], strides = [1, 1]} : vector<8x384xf32> to vector<8x128xf32>
    %140 = vector.extract_strided_slice %135 {offsets = [0, 256], sizes = [8, 128], strides = [1, 1]} : vector<8x384xf32> to vector<8x128xf32>
    %141 = arith.mulf %139, %98 : vector<8x128xf32>
    %142 = arith.mulf %138, %137 : vector<8x128xf32>
    %143 = arith.addf %141, %142 : vector<8x128xf32>
    %144 = math.tanh %143 : vector<8x128xf32>
    %145 = arith.mulf %140, %144 : vector<8x128xf32>
    %146 = vector.extract_strided_slice %129 {offsets = [0, 0], sizes = [8, 384], strides = [1, 1]} : vector<8x512xf32> to vector<8x384xf32>
    %147 = arith.negf %146 : vector<8x384xf32>
    %148 = math.exp %147 : vector<8x384xf32>
    %cst_39 = arith.constant 1.000000e+00 : f32
    %149 = vector.broadcast %cst_39 : f32 to vector<8x384xf32>
    %150 = arith.addf %149, %148 : vector<8x384xf32>
    %151 = arith.divf %149, %150 : vector<8x384xf32>
    %152 = vector.extract_strided_slice %129 {offsets = [0, 384], sizes = [8, 128], strides = [1, 1]} : vector<8x512xf32> to vector<8x128xf32>
    %153 = math.tanh %152 : vector<8x128xf32>
    %154 = vector.extract_strided_slice %151 {offsets = [0, 0], sizes = [8, 128], strides = [1, 1]} : vector<8x384xf32> to vector<8x128xf32>
    %155 = vector.extract_strided_slice %151 {offsets = [0, 128], sizes = [8, 128], strides = [1, 1]} : vector<8x384xf32> to vector<8x128xf32>
    %156 = vector.extract_strided_slice %151 {offsets = [0, 256], sizes = [8, 128], strides = [1, 1]} : vector<8x384xf32> to vector<8x128xf32>
    %157 = arith.mulf %155, %114 : vector<8x128xf32>
    %158 = arith.mulf %154, %153 : vector<8x128xf32>
    %159 = arith.addf %157, %158 : vector<8x128xf32>
    %160 = math.tanh %159 : vector<8x128xf32>
    %161 = arith.mulf %156, %160 : vector<8x128xf32>
    %162 = arith.truncf %145 : vector<8x128xf32> to vector<8x128xbf16>
    %c0_40 = arith.constant 0 : index
    %c0_41 = arith.constant 0 : index
    %163 = vector.load %arg3[%c0_40, %c0_41] : memref<128x1024xbf16, #tpu.memory_space<vmem>>, vector<128x1024xbf16>
    %cst_42 = arith.constant dense<0.000000e+00> : vector<8x1024xf32>
    %164 = tpu.matmul %162, %163, %cst_42 {dimension_numbers = #tpu.dot_dimension_numbers<[1], [0], [0], [1], [0, 0, 1, 1], [], []>} : vector<8x128xbf16>, vector<128x1024xbf16>, vector<8x1024xf32> -> vector<8x1024xf32>
    %165 = arith.truncf %161 : vector<8x128xf32> to vector<8x128xbf16>
    %c0_43 = arith.constant 0 : index
    %c0_44 = arith.constant 0 : index
    %166 = vector.load %arg5[%c0_43, %c0_44] : memref<128x512xbf16, #tpu.memory_space<vmem>>, vector<128x512xbf16>
    %cst_45 = arith.constant dense<0.000000e+00> : vector<8x512xf32>
    %167 = tpu.matmul %165, %166, %cst_45 {dimension_numbers = #tpu.dot_dimension_numbers<[1], [0], [0], [1], [0, 0, 1, 1], [], []>} : vector<8x128xbf16>, vector<128x512xbf16>, vector<8x512xf32> -> vector<8x512xf32>
    %c32 = arith.constant 32 : index
    %c0_46 = arith.constant 0 : index
    %168 = vector.load %arg9[%c32, %c0_46] : memref<64x512xf32, #tpu.memory_space<vmem>>, vector<8x512xf32>
    %169 = vector.extract_strided_slice %164 {offsets = [0, 0], sizes = [8, 512], strides = [1, 1]} : vector<8x1024xf32> to vector<8x512xf32>
    %170 = arith.addf %168, %169 : vector<8x512xf32>
    %171 = vector.extract_strided_slice %164 {offsets = [0, 512], sizes = [8, 512], strides = [1, 1]} : vector<8x1024xf32> to vector<8x512xf32>
    %172 = vector.broadcast %9 : vector<1x512xf32> to vector<8x512xf32>
    %173 = arith.addf %171, %172 : vector<8x512xf32>
    %174 = arith.addf %173, %167 : vector<8x512xf32>
    %175 = vector.extract_strided_slice %170 {offsets = [0, 0], sizes = [8, 384], strides = [1, 1]} : vector<8x512xf32> to vector<8x384xf32>
    %176 = arith.negf %175 : vector<8x384xf32>
    %177 = math.exp %176 : vector<8x384xf32>
    %cst_47 = arith.constant 1.000000e+00 : f32
    %178 = vector.broadcast %cst_47 : f32 to vector<8x384xf32>
    %179 = arith.addf %178, %177 : vector<8x384xf32>
    %180 = arith.divf %178, %179 : vector<8x384xf32>
    %181 = vector.extract_strided_slice %170 {offsets = [0, 384], sizes = [8, 128], strides = [1, 1]} : vector<8x512xf32> to vector<8x128xf32>
    %182 = math.tanh %181 : vector<8x128xf32>
    %183 = vector.extract_strided_slice %180 {offsets = [0, 0], sizes = [8, 128], strides = [1, 1]} : vector<8x384xf32> to vector<8x128xf32>
    %184 = vector.extract_strided_slice %180 {offsets = [0, 128], sizes = [8, 128], strides = [1, 1]} : vector<8x384xf32> to vector<8x128xf32>
    %185 = vector.extract_strided_slice %180 {offsets = [0, 256], sizes = [8, 128], strides = [1, 1]} : vector<8x384xf32> to vector<8x128xf32>
    %186 = arith.mulf %184, %143 : vector<8x128xf32>
    %187 = arith.mulf %183, %182 : vector<8x128xf32>
    %188 = arith.addf %186, %187 : vector<8x128xf32>
    %189 = math.tanh %188 : vector<8x128xf32>
    %190 = arith.mulf %185, %189 : vector<8x128xf32>
    %191 = vector.extract_strided_slice %174 {offsets = [0, 0], sizes = [8, 384], strides = [1, 1]} : vector<8x512xf32> to vector<8x384xf32>
    %192 = arith.negf %191 : vector<8x384xf32>
    %193 = math.exp %192 : vector<8x384xf32>
    %cst_48 = arith.constant 1.000000e+00 : f32
    %194 = vector.broadcast %cst_48 : f32 to vector<8x384xf32>
    %195 = arith.addf %194, %193 : vector<8x384xf32>
    %196 = arith.divf %194, %195 : vector<8x384xf32>
    %197 = vector.extract_strided_slice %174 {offsets = [0, 384], sizes = [8, 128], strides = [1, 1]} : vector<8x512xf32> to vector<8x128xf32>
    %198 = math.tanh %197 : vector<8x128xf32>
    %199 = vector.extract_strided_slice %196 {offsets = [0, 0], sizes = [8, 128], strides = [1, 1]} : vector<8x384xf32> to vector<8x128xf32>
    %200 = vector.extract_strided_slice %196 {offsets = [0, 128], sizes = [8, 128], strides = [1, 1]} : vector<8x384xf32> to vector<8x128xf32>
    %201 = vector.extract_strided_slice %196 {offsets = [0, 256], sizes = [8, 128], strides = [1, 1]} : vector<8x384xf32> to vector<8x128xf32>
    %202 = arith.mulf %200, %159 : vector<8x128xf32>
    %203 = arith.mulf %199, %198 : vector<8x128xf32>
    %204 = arith.addf %202, %203 : vector<8x128xf32>
    %205 = math.tanh %204 : vector<8x128xf32>
    %206 = arith.mulf %201, %205 : vector<8x128xf32>
    %207 = arith.truncf %190 : vector<8x128xf32> to vector<8x128xbf16>
    %c0_49 = arith.constant 0 : index
    %c0_50 = arith.constant 0 : index
    %208 = vector.load %arg3[%c0_49, %c0_50] : memref<128x1024xbf16, #tpu.memory_space<vmem>>, vector<128x1024xbf16>
    %cst_51 = arith.constant dense<0.000000e+00> : vector<8x1024xf32>
    %209 = tpu.matmul %207, %208, %cst_51 {dimension_numbers = #tpu.dot_dimension_numbers<[1], [0], [0], [1], [0, 0, 1, 1], [], []>} : vector<8x128xbf16>, vector<128x1024xbf16>, vector<8x1024xf32> -> vector<8x1024xf32>
    %210 = arith.truncf %206 : vector<8x128xf32> to vector<8x128xbf16>
    %c0_52 = arith.constant 0 : index
    %c0_53 = arith.constant 0 : index
    %211 = vector.load %arg5[%c0_52, %c0_53] : memref<128x512xbf16, #tpu.memory_space<vmem>>, vector<128x512xbf16>
    %cst_54 = arith.constant dense<0.000000e+00> : vector<8x512xf32>
    %212 = tpu.matmul %210, %211, %cst_54 {dimension_numbers = #tpu.dot_dimension_numbers<[1], [0], [0], [1], [0, 0, 1, 1], [], []>} : vector<8x128xbf16>, vector<128x512xbf16>, vector<8x512xf32> -> vector<8x512xf32>
    %c40 = arith.constant 40 : index
    %c0_55 = arith.constant 0 : index
    %213 = vector.load %arg9[%c40, %c0_55] : memref<64x512xf32, #tpu.memory_space<vmem>>, vector<8x512xf32>
    %214 = vector.extract_strided_slice %209 {offsets = [0, 0], sizes = [8, 512], strides = [1, 1]} : vector<8x1024xf32> to vector<8x512xf32>
    %215 = arith.addf %213, %214 : vector<8x512xf32>
    %216 = vector.extract_strided_slice %209 {offsets = [0, 512], sizes = [8, 512], strides = [1, 1]} : vector<8x1024xf32> to vector<8x512xf32>
    %217 = vector.broadcast %9 : vector<1x512xf32> to vector<8x512xf32>
    %218 = arith.addf %216, %217 : vector<8x512xf32>
    %219 = arith.addf %218, %212 : vector<8x512xf32>
    %220 = vector.extract_strided_slice %215 {offsets = [0, 0], sizes = [8, 384], strides = [1, 1]} : vector<8x512xf32> to vector<8x384xf32>
    %221 = arith.negf %220 : vector<8x384xf32>
    %222 = math.exp %221 : vector<8x384xf32>
    %cst_56 = arith.constant 1.000000e+00 : f32
    %223 = vector.broadcast %cst_56 : f32 to vector<8x384xf32>
    %224 = arith.addf %223, %222 : vector<8x384xf32>
    %225 = arith.divf %223, %224 : vector<8x384xf32>
    %226 = vector.extract_strided_slice %215 {offsets = [0, 384], sizes = [8, 128], strides = [1, 1]} : vector<8x512xf32> to vector<8x128xf32>
    %227 = math.tanh %226 : vector<8x128xf32>
    %228 = vector.extract_strided_slice %225 {offsets = [0, 0], sizes = [8, 128], strides = [1, 1]} : vector<8x384xf32> to vector<8x128xf32>
    %229 = vector.extract_strided_slice %225 {offsets = [0, 128], sizes = [8, 128], strides = [1, 1]} : vector<8x384xf32> to vector<8x128xf32>
    %230 = vector.extract_strided_slice %225 {offsets = [0, 256], sizes = [8, 128], strides = [1, 1]} : vector<8x384xf32> to vector<8x128xf32>
    %231 = arith.mulf %229, %188 : vector<8x128xf32>
    %232 = arith.mulf %228, %227 : vector<8x128xf32>
    %233 = arith.addf %231, %232 : vector<8x128xf32>
    %234 = math.tanh %233 : vector<8x128xf32>
    %235 = arith.mulf %230, %234 : vector<8x128xf32>
    %236 = vector.extract_strided_slice %219 {offsets = [0, 0], sizes = [8, 384], strides = [1, 1]} : vector<8x512xf32> to vector<8x384xf32>
    %237 = arith.negf %236 : vector<8x384xf32>
    %238 = math.exp %237 : vector<8x384xf32>
    %cst_57 = arith.constant 1.000000e+00 : f32
    %239 = vector.broadcast %cst_57 : f32 to vector<8x384xf32>
    %240 = arith.addf %239, %238 : vector<8x384xf32>
    %241 = arith.divf %239, %240 : vector<8x384xf32>
    %242 = vector.extract_strided_slice %219 {offsets = [0, 384], sizes = [8, 128], strides = [1, 1]} : vector<8x512xf32> to vector<8x128xf32>
    %243 = math.tanh %242 : vector<8x128xf32>
    %244 = vector.extract_strided_slice %241 {offsets = [0, 0], sizes = [8, 128], strides = [1, 1]} : vector<8x384xf32> to vector<8x128xf32>
    %245 = vector.extract_strided_slice %241 {offsets = [0, 128], sizes = [8, 128], strides = [1, 1]} : vector<8x384xf32> to vector<8x128xf32>
    %246 = vector.extract_strided_slice %241 {offsets = [0, 256], sizes = [8, 128], strides = [1, 1]} : vector<8x384xf32> to vector<8x128xf32>
    %247 = arith.mulf %245, %204 : vector<8x128xf32>
    %248 = arith.mulf %244, %243 : vector<8x128xf32>
    %249 = arith.addf %247, %248 : vector<8x128xf32>
    %250 = math.tanh %249 : vector<8x128xf32>
    %251 = arith.mulf %246, %250 : vector<8x128xf32>
    %252 = arith.truncf %235 : vector<8x128xf32> to vector<8x128xbf16>
    %c0_58 = arith.constant 0 : index
    %c0_59 = arith.constant 0 : index
    %253 = vector.load %arg3[%c0_58, %c0_59] : memref<128x1024xbf16, #tpu.memory_space<vmem>>, vector<128x1024xbf16>
    %cst_60 = arith.constant dense<0.000000e+00> : vector<8x1024xf32>
    %254 = tpu.matmul %252, %253, %cst_60 {dimension_numbers = #tpu.dot_dimension_numbers<[1], [0], [0], [1], [0, 0, 1, 1], [], []>} : vector<8x128xbf16>, vector<128x1024xbf16>, vector<8x1024xf32> -> vector<8x1024xf32>
    %255 = arith.truncf %251 : vector<8x128xf32> to vector<8x128xbf16>
    %c0_61 = arith.constant 0 : index
    %c0_62 = arith.constant 0 : index
    %256 = vector.load %arg5[%c0_61, %c0_62] : memref<128x512xbf16, #tpu.memory_space<vmem>>, vector<128x512xbf16>
    %cst_63 = arith.constant dense<0.000000e+00> : vector<8x512xf32>
    %257 = tpu.matmul %255, %256, %cst_63 {dimension_numbers = #tpu.dot_dimension_numbers<[1], [0], [0], [1], [0, 0, 1, 1], [], []>} : vector<8x128xbf16>, vector<128x512xbf16>, vector<8x512xf32> -> vector<8x512xf32>
    %c48 = arith.constant 48 : index
    %c0_64 = arith.constant 0 : index
    %258 = vector.load %arg9[%c48, %c0_64] : memref<64x512xf32, #tpu.memory_space<vmem>>, vector<8x512xf32>
    %259 = vector.extract_strided_slice %254 {offsets = [0, 0], sizes = [8, 512], strides = [1, 1]} : vector<8x1024xf32> to vector<8x512xf32>
    %260 = arith.addf %258, %259 : vector<8x512xf32>
    %261 = vector.extract_strided_slice %254 {offsets = [0, 512], sizes = [8, 512], strides = [1, 1]} : vector<8x1024xf32> to vector<8x512xf32>
    %262 = vector.broadcast %9 : vector<1x512xf32> to vector<8x512xf32>
    %263 = arith.addf %261, %262 : vector<8x512xf32>
    %264 = arith.addf %263, %257 : vector<8x512xf32>
    %265 = vector.extract_strided_slice %260 {offsets = [0, 0], sizes = [8, 384], strides = [1, 1]} : vector<8x512xf32> to vector<8x384xf32>
    %266 = arith.negf %265 : vector<8x384xf32>
    %267 = math.exp %266 : vector<8x384xf32>
    %cst_65 = arith.constant 1.000000e+00 : f32
    %268 = vector.broadcast %cst_65 : f32 to vector<8x384xf32>
    %269 = arith.addf %268, %267 : vector<8x384xf32>
    %270 = arith.divf %268, %269 : vector<8x384xf32>
    %271 = vector.extract_strided_slice %260 {offsets = [0, 384], sizes = [8, 128], strides = [1, 1]} : vector<8x512xf32> to vector<8x128xf32>
    %272 = math.tanh %271 : vector<8x128xf32>
    %273 = vector.extract_strided_slice %270 {offsets = [0, 0], sizes = [8, 128], strides = [1, 1]} : vector<8x384xf32> to vector<8x128xf32>
    %274 = vector.extract_strided_slice %270 {offsets = [0, 128], sizes = [8, 128], strides = [1, 1]} : vector<8x384xf32> to vector<8x128xf32>
    %275 = vector.extract_strided_slice %270 {offsets = [0, 256], sizes = [8, 128], strides = [1, 1]} : vector<8x384xf32> to vector<8x128xf32>
    %276 = arith.mulf %274, %233 : vector<8x128xf32>
    %277 = arith.mulf %273, %272 : vector<8x128xf32>
    %278 = arith.addf %276, %277 : vector<8x128xf32>
    %279 = math.tanh %278 : vector<8x128xf32>
    %280 = arith.mulf %275, %279 : vector<8x128xf32>
    %281 = vector.extract_strided_slice %264 {offsets = [0, 0], sizes = [8, 384], strides = [1, 1]} : vector<8x512xf32> to vector<8x384xf32>
    %282 = arith.negf %281 : vector<8x384xf32>
    %283 = math.exp %282 : vector<8x384xf32>
    %cst_66 = arith.constant 1.000000e+00 : f32
    %284 = vector.broadcast %cst_66 : f32 to vector<8x384xf32>
    %285 = arith.addf %284, %283 : vector<8x384xf32>
    %286 = arith.divf %284, %285 : vector<8x384xf32>
    %287 = vector.extract_strided_slice %264 {offsets = [0, 384], sizes = [8, 128], strides = [1, 1]} : vector<8x512xf32> to vector<8x128xf32>
    %288 = math.tanh %287 : vector<8x128xf32>
    %289 = vector.extract_strided_slice %286 {offsets = [0, 0], sizes = [8, 128], strides = [1, 1]} : vector<8x384xf32> to vector<8x128xf32>
    %290 = vector.extract_strided_slice %286 {offsets = [0, 128], sizes = [8, 128], strides = [1, 1]} : vector<8x384xf32> to vector<8x128xf32>
    %291 = vector.extract_strided_slice %286 {offsets = [0, 256], sizes = [8, 128], strides = [1, 1]} : vector<8x384xf32> to vector<8x128xf32>
    %292 = arith.mulf %290, %249 : vector<8x128xf32>
    %293 = arith.mulf %289, %288 : vector<8x128xf32>
    %294 = arith.addf %292, %293 : vector<8x128xf32>
    %295 = math.tanh %294 : vector<8x128xf32>
    %296 = arith.mulf %291, %295 : vector<8x128xf32>
    %297 = arith.truncf %280 : vector<8x128xf32> to vector<8x128xbf16>
    %c0_67 = arith.constant 0 : index
    %c0_68 = arith.constant 0 : index
    %298 = vector.load %arg3[%c0_67, %c0_68] : memref<128x1024xbf16, #tpu.memory_space<vmem>>, vector<128x1024xbf16>
    %cst_69 = arith.constant dense<0.000000e+00> : vector<8x1024xf32>
    %299 = tpu.matmul %297, %298, %cst_69 {dimension_numbers = #tpu.dot_dimension_numbers<[1], [0], [0], [1], [0, 0, 1, 1], [], []>} : vector<8x128xbf16>, vector<128x1024xbf16>, vector<8x1024xf32> -> vector<8x1024xf32>
    %300 = arith.truncf %296 : vector<8x128xf32> to vector<8x128xbf16>
    %c0_70 = arith.constant 0 : index
    %c0_71 = arith.constant 0 : index
    %301 = vector.load %arg5[%c0_70, %c0_71] : memref<128x512xbf16, #tpu.memory_space<vmem>>, vector<128x512xbf16>
    %cst_72 = arith.constant dense<0.000000e+00> : vector<8x512xf32>
    %302 = tpu.matmul %300, %301, %cst_72 {dimension_numbers = #tpu.dot_dimension_numbers<[1], [0], [0], [1], [0, 0, 1, 1], [], []>} : vector<8x128xbf16>, vector<128x512xbf16>, vector<8x512xf32> -> vector<8x512xf32>
    %c56 = arith.constant 56 : index
    %c0_73 = arith.constant 0 : index
    %303 = vector.load %arg9[%c56, %c0_73] : memref<64x512xf32, #tpu.memory_space<vmem>>, vector<8x512xf32>
    %304 = vector.extract_strided_slice %299 {offsets = [0, 0], sizes = [8, 512], strides = [1, 1]} : vector<8x1024xf32> to vector<8x512xf32>
    %305 = arith.addf %303, %304 : vector<8x512xf32>
    %306 = vector.extract_strided_slice %299 {offsets = [0, 512], sizes = [8, 512], strides = [1, 1]} : vector<8x1024xf32> to vector<8x512xf32>
    %307 = vector.broadcast %9 : vector<1x512xf32> to vector<8x512xf32>
    %308 = arith.addf %306, %307 : vector<8x512xf32>
    %309 = arith.addf %308, %302 : vector<8x512xf32>
    %310 = vector.extract_strided_slice %305 {offsets = [0, 0], sizes = [8, 384], strides = [1, 1]} : vector<8x512xf32> to vector<8x384xf32>
    %311 = arith.negf %310 : vector<8x384xf32>
    %312 = math.exp %311 : vector<8x384xf32>
    %cst_74 = arith.constant 1.000000e+00 : f32
    %313 = vector.broadcast %cst_74 : f32 to vector<8x384xf32>
    %314 = arith.addf %313, %312 : vector<8x384xf32>
    %315 = arith.divf %313, %314 : vector<8x384xf32>
    %316 = vector.extract_strided_slice %305 {offsets = [0, 384], sizes = [8, 128], strides = [1, 1]} : vector<8x512xf32> to vector<8x128xf32>
    %317 = math.tanh %316 : vector<8x128xf32>
    %318 = vector.extract_strided_slice %315 {offsets = [0, 0], sizes = [8, 128], strides = [1, 1]} : vector<8x384xf32> to vector<8x128xf32>
    %319 = vector.extract_strided_slice %315 {offsets = [0, 128], sizes = [8, 128], strides = [1, 1]} : vector<8x384xf32> to vector<8x128xf32>
    %320 = vector.extract_strided_slice %315 {offsets = [0, 256], sizes = [8, 128], strides = [1, 1]} : vector<8x384xf32> to vector<8x128xf32>
    %321 = arith.mulf %319, %278 : vector<8x128xf32>
    %322 = arith.mulf %318, %317 : vector<8x128xf32>
    %323 = arith.addf %321, %322 : vector<8x128xf32>
    %324 = math.tanh %323 : vector<8x128xf32>
    %325 = arith.mulf %320, %324 : vector<8x128xf32>
    %326 = vector.extract_strided_slice %309 {offsets = [0, 0], sizes = [8, 384], strides = [1, 1]} : vector<8x512xf32> to vector<8x384xf32>
    %327 = arith.negf %326 : vector<8x384xf32>
    %328 = math.exp %327 : vector<8x384xf32>
    %cst_75 = arith.constant 1.000000e+00 : f32
    %329 = vector.broadcast %cst_75 : f32 to vector<8x384xf32>
    %330 = arith.addf %329, %328 : vector<8x384xf32>
    %331 = arith.divf %329, %330 : vector<8x384xf32>
    %332 = vector.extract_strided_slice %309 {offsets = [0, 384], sizes = [8, 128], strides = [1, 1]} : vector<8x512xf32> to vector<8x128xf32>
    %333 = math.tanh %332 : vector<8x128xf32>
    %334 = vector.extract_strided_slice %331 {offsets = [0, 0], sizes = [8, 128], strides = [1, 1]} : vector<8x384xf32> to vector<8x128xf32>
    %335 = vector.extract_strided_slice %331 {offsets = [0, 128], sizes = [8, 128], strides = [1, 1]} : vector<8x384xf32> to vector<8x128xf32>
    %336 = vector.extract_strided_slice %331 {offsets = [0, 256], sizes = [8, 128], strides = [1, 1]} : vector<8x384xf32> to vector<8x128xf32>
    %337 = arith.mulf %335, %294 : vector<8x128xf32>
    %338 = arith.mulf %334, %333 : vector<8x128xf32>
    %339 = arith.addf %337, %338 : vector<8x128xf32>
    %340 = math.tanh %339 : vector<8x128xf32>
    %341 = arith.mulf %336, %340 : vector<8x128xf32>
    %342 = arith.truncf %325 : vector<8x128xf32> to vector<8x128xbf16>
    %c0_76 = arith.constant 0 : index
    %c512 = arith.constant 512 : index
    %343 = vector.load %arg3[%c0_76, %c512] : memref<128x1024xbf16, #tpu.memory_space<vmem>>, vector<128x512xbf16>
    %cst_77 = arith.constant dense<0.000000e+00> : vector<8x512xf32>
    %344 = tpu.matmul %342, %343, %cst_77 {dimension_numbers = #tpu.dot_dimension_numbers<[1], [0], [0], [1], [0, 0, 1, 1], [], []>} : vector<8x128xbf16>, vector<128x512xbf16>, vector<8x512xf32> -> vector<8x512xf32>
    %345 = arith.truncf %341 : vector<8x128xf32> to vector<8x128xbf16>
    %c0_78 = arith.constant 0 : index
    %c0_79 = arith.constant 0 : index
    %346 = vector.load %arg5[%c0_78, %c0_79] : memref<128x512xbf16, #tpu.memory_space<vmem>>, vector<128x512xbf16>
    %cst_80 = arith.constant dense<0.000000e+00> : vector<8x512xf32>
    %347 = tpu.matmul %345, %346, %cst_80 {dimension_numbers = #tpu.dot_dimension_numbers<[1], [0], [0], [1], [0, 0, 1, 1], [], []>} : vector<8x128xbf16>, vector<128x512xbf16>, vector<8x512xf32> -> vector<8x512xf32>
    %348 = vector.broadcast %9 : vector<1x512xf32> to vector<8x512xf32>
    %349 = arith.addf %344, %348 : vector<8x512xf32>
    %350 = arith.addf %349, %347 : vector<8x512xf32>
    %351 = vector.extract_strided_slice %350 {offsets = [0, 0], sizes = [8, 384], strides = [1, 1]} : vector<8x512xf32> to vector<8x384xf32>
    %352 = arith.negf %351 : vector<8x384xf32>
    %353 = math.exp %352 : vector<8x384xf32>
    %cst_81 = arith.constant 1.000000e+00 : f32
    %354 = vector.broadcast %cst_81 : f32 to vector<8x384xf32>
    %355 = arith.addf %354, %353 : vector<8x384xf32>
    %356 = arith.divf %354, %355 : vector<8x384xf32>
    %357 = vector.extract_strided_slice %350 {offsets = [0, 384], sizes = [8, 128], strides = [1, 1]} : vector<8x512xf32> to vector<8x128xf32>
    %358 = math.tanh %357 : vector<8x128xf32>
    %359 = vector.extract_strided_slice %356 {offsets = [0, 0], sizes = [8, 128], strides = [1, 1]} : vector<8x384xf32> to vector<8x128xf32>
    %360 = vector.extract_strided_slice %356 {offsets = [0, 128], sizes = [8, 128], strides = [1, 1]} : vector<8x384xf32> to vector<8x128xf32>
    %361 = vector.extract_strided_slice %356 {offsets = [0, 256], sizes = [8, 128], strides = [1, 1]} : vector<8x384xf32> to vector<8x128xf32>
    %362 = arith.mulf %360, %339 : vector<8x128xf32>
    %363 = arith.mulf %359, %358 : vector<8x128xf32>
    %364 = arith.addf %362, %363 : vector<8x128xf32>
    %365 = math.tanh %364 : vector<8x128xf32>
    %366 = arith.mulf %361, %365 : vector<8x128xf32>
    %c0_82 = arith.constant 0 : index
    %c0_83 = arith.constant 0 : index
    %367 = vector.load %arg6[%c0_82, %c0_83] : memref<128x128xf32, #tpu.memory_space<vmem>>, vector<128x128xf32>
    %cst_84 = arith.constant dense<0.000000e+00> : vector<8x128xf32>
    %368 = tpu.matmul %366, %367, %cst_84 {dimension_numbers = #tpu.dot_dimension_numbers<[1], [0], [0], [1], [0, 0, 1, 1], [], []>} : vector<8x128xf32>, vector<128x128xf32>, vector<8x128xf32> -> vector<8x128xf32>
    %c0_85 = arith.constant 0 : index
    %c0_86 = arith.constant 0 : index
    %369 = vector.load %arg7[%c0_85, %c0_86] : memref<1x128xf32, #tpu.memory_space<vmem>>, vector<1x128xf32>
    %370 = vector.broadcast %369 : vector<1x128xf32> to vector<8x128xf32>
    %371 = arith.addf %368, %370 : vector<8x128xf32>
    %c0_87 = arith.constant 0 : index
    %c0_88 = arith.constant 0 : index
    %372 = vector.load %arg8[%c0_87, %c0_88] : memref<8x128xf32, #tpu.memory_space<vmem>>, vector<8x128xf32>
    tpu.vector_store %arg8[%c0_87, %c0_88], %371 {strides = array<i32>} : memref<8x128xf32, #tpu.memory_space<vmem>>, vector<8x128xf32>,
    return
  }
}

</mosaic_0001>

<llo_original>
// kernel: lstm_classifier.1
$region0: #{lstm_classifier.1}
  #allocation0 [shape = 'u32[]', space=smem, size = 0x4, offset = 0x4, fixed_abs, tag = 'smem constant byte address 0x4 - core index']
  #allocation1 [shape = 'u32[72,128]{1,0:T(1,128)}', space=vmem, size = 0x9000, scoped, tag = 'internal scratch']
  #allocation2 [shape = 'f32[64,512]{1,0:T(8,128)}', space=vmem, size = 0x20000, scoped, tag = 'scratch operand']
  %s0 = inlined_call_operand.vmem [shape: f32[64,128], index: 0, kind: input, shape index: {}]
  %s1 = inlined_call_operand.vmem [shape: bf16[128,512], index: 1, kind: input, shape index: {}]
  %s2 = inlined_call_operand.vmem [shape: f32[1,512], index: 2, kind: input, shape index: {}]
  %s3 = inlined_call_operand.vmem [shape: bf16[128,1024], index: 3, kind: input, shape index: {}]
  %s4 = inlined_call_operand.vmem [shape: f32[1,512], index: 4, kind: input, shape index: {}]
  %s5 = inlined_call_operand.vmem [shape: bf16[128,512], index: 5, kind: input, shape index: {}]
  %s6 = inlined_call_operand.vmem [shape: f32[128,128], index: 6, kind: input, shape index: {}]
  %s7 = inlined_call_operand.vmem [shape: f32[1,128], index: 7, kind: input, shape index: {}]
  %s8 = inlined_call_operand.hbm [shape: f32[8,128], index: 8, kind: output, shape index: {}]
  %s9 = sld [smem:[#allocation0]]
  $region42: #{lstm_classifier.1} parent=0
    _
  %s11 = ssub.s32 1, %s9
  %s12 = scalar_select 0, %s11, %s9
  $region1: #{lstm_classifier.1} parent=0
    #allocation3 [shape = 'u8[4096]{0}', space=vmem, size = 0x1000, scoped, tag = 'output window, operand 0, single buffered']
    #allocation4 [shape = 's32[1]{0}', space=sflag, size = 0x4, scoped, tag = 'scoped memory for lstm_classifier.1']
    %13 = vsyncpa [#allocation4], 0
    // Predicated region
    $region2: #{lstm_classifier.1} parent=1 // pred_check
      _
    $region3: #{lstm_classifier.1} parent=1 // pred_check_branch
      %15 = sbr.rel (0) target = $region5
    $region4: #{lstm_classifier.1} parent=1 // pred_region
      _
    $region5: #{lstm_classifier.1} parent=1 // pred_fallthru
      _
    // Predicated region
    $region6: #{lstm_classifier.1} parent=1 // pred_check
      _
    $region7: #{lstm_classifier.1} parent=1 // pred_check_branch
      %17 = sbr.rel (0) target = $region9
    $region8: #{lstm_classifier.1} parent=1 // pred_region
      _
    $region9: #{lstm_classifier.1} parent=1 // pred_fallthru
      _
    // Predicated region
    $region10: #{lstm_classifier.1} parent=1 // pred_check
      _
    $region11: #{lstm_classifier.1} parent=1 // pred_check_branch
      %19 = sbr.rel (0) target = $region13
    $region12: #{lstm_classifier.1} parent=1 // pred_region
      _
    $region13: #{lstm_classifier.1} parent=1 // pred_fallthru
      _
    // Predicated region
    $region14: #{lstm_classifier.1} parent=1 // pred_check
      _
    $region15: #{lstm_classifier.1} parent=1 // pred_check_branch
      %21 = sbr.rel (0) target = $region17
    $region16: #{lstm_classifier.1} parent=1 // pred_region
      _
    $region17: #{lstm_classifier.1} parent=1 // pred_fallthru
      _
    // Predicated region
    $region18: #{lstm_classifier.1} parent=1 // pred_check
      _
    $region19: #{lstm_classifier.1} parent=1 // pred_check_branch
      %23 = sbr.rel (0) target = $region21
    $region20: #{lstm_classifier.1} parent=1 // pred_region
      _
    $region21: #{lstm_classifier.1} parent=1 // pred_fallthru
      _
    // Predicated region
    $region22: #{lstm_classifier.1} parent=1 // pred_check
      _
    $region23: #{lstm_classifier.1} parent=1 // pred_check_branch
      %25 = sbr.rel (0) target = $region25
    $region24: #{lstm_classifier.1} parent=1 // pred_region
      _
    $region25: #{lstm_classifier.1} parent=1 // pred_fallthru
      _
    // Predicated region
    $region26: #{lstm_classifier.1} parent=1 // pred_check
      _
    $region27: #{lstm_classifier.1} parent=1 // pred_check_branch
      %27 = sbr.rel (0) target = $region29
    $region28: #{lstm_classifier.1} parent=1 // pred_region
      _
    $region29: #{lstm_classifier.1} parent=1 // pred_fallthru
      _
    // Predicated region
    $region30: #{lstm_classifier.1} parent=1 // pred_check
      _
    $region31: #{lstm_classifier.1} parent=1 // pred_check_branch
      %29 = sbr.rel (0) target = $region33
    $region32: #{lstm_classifier.1} parent=1 // pred_region
      _
    $region33: #{lstm_classifier.1} parent=1 // pred_fallthru
      _
    %v31 = vld [vmem:[%s0] sm:$0xff]
    %v32 = vld [vmem:[%s0 + $0x8] sm:$0xff]
    %v33 = vld [vmem:[%s0 + $0x10] sm:$0xff]
    %v34 = vld [vmem:[%s0 + $0x18] sm:$0xff]
    %v35 = vld [vmem:[%s0 + $0x20] sm:$0xff]
    %v36 = vld [vmem:[%s0 + $0x28] sm:$0xff]
    %v37 = vld [vmem:[%s0 + $0x30] sm:$0xff]
    %v38 = vld [vmem:[%s0 + $0x38] sm:$0xff]
    %v39 = vpack.c.bf16 %v32, %v31
    %v40 = vpack.c.bf16 %v34, %v33
    %v41 = vpack.c.bf16 %v36, %v35
    %v42 = vpack.c.bf16 %v38, %v37
    %v43 = vld [vmem:[%s1] sm:$0xff]
    %v44 = vld [vmem:[%s1 + $0x8] sm:$0xff]
    %v45 = vld [vmem:[%s1 + $0x10] sm:$0xff]
    %v46 = vld [vmem:[%s1 + $0x18] sm:$0xff]
    %v47 = vld [vmem:[%s1 + $0x20] sm:$0xff]
    %v48 = vld [vmem:[%s1 + $0x28] sm:$0xff]
    %v49 = vld [vmem:[%s1 + $0x30] sm:$0xff]
    %v50 = vld [vmem:[%s1 + $0x38] sm:$0xff]
    %v51 = vld [vmem:[%s1 + $0x40] sm:$0xff]
    %v52 = vld [vmem:[%s1 + $0x48] sm:$0xff]
    %v53 = vld [vmem:[%s1 + $0x50] sm:$0xff]
    %v54 = vld [vmem:[%s1 + $0x58] sm:$0xff]
    %v55 = vld [vmem:[%s1 + $0x60] sm:$0xff]
    %v56 = vld [vmem:[%s1 + $0x68] sm:$0xff]
    %v57 = vld [vmem:[%s1 + $0x70] sm:$0xff]
    %v58 = vld [vmem:[%s1 + $0x78] sm:$0xff]
    %v59 = vld [vmem:[%s1 + $0x80] sm:$0xff]
    %v60 = vld [vmem:[%s1 + $0x88] sm:$0xff]
    %v61 = vld [vmem:[%s1 + $0x90] sm:$0xff]
    %v62 = vld [vmem:[%s1 + $0x98] sm:$0xff]
    %v63 = vld [vmem:[%s1 + $0xa0] sm:$0xff]
    %v64 = vld [vmem:[%s1 + $0xa8] sm:$0xff]
    %v65 = vld [vmem:[%s1 + $0xb0] sm:$0xff]
    %v66 = vld [vmem:[%s1 + $0xb8] sm:$0xff]
    %v67 = vld [vmem:[%s1 + $0xc0] sm:$0xff]
    %v68 = vld [vmem:[%s1 + $0xc8] sm:$0xff]
    %v69 = vld [vmem:[%s1 + $0xd0] sm:$0xff]
    %v70 = vld [vmem:[%s1 + $0xd8] sm:$0xff]
    %v71 = vld [vmem:[%s1 + $0xe0] sm:$0xff]
    %v72 = vld [vmem:[%s1 + $0xe8] sm:$0xff]
    %v73 = vld [vmem:[%s1 + $0xf0] sm:$0xff]
    %v74 = vld [vmem:[%s1 + $0xf8] sm:$0xff]
    %v75 = vld [vmem:[%s2] sm:$0xf]
    %v77 = vperm.slane %v75, 0
    %v78 = vperm.slane %v75, 1
    %v79 = vperm.slane %v75, 2
    %v80 = vperm.slane %v75, 3
    %v117 = vunpack.c.l.b16 %v43
    %v118 = vunpack.c.h.b16 %v43
    %v119 = vunpack.c.l.b16 %v44
    %v120 = vunpack.c.h.b16 %v44
    %v121 = vunpack.c.l.b16 %v45
    %v122 = vunpack.c.h.b16 %v45
    %v123 = vunpack.c.l.b16 %v46
    %v124 = vunpack.c.h.b16 %v46
    %v125 = vunpack.c.l.b16 %v47
    %v126 = vunpack.c.h.b16 %v47
    %v127 = vunpack.c.l.b16 %v48
    %v128 = vunpack.c.h.b16 %v48
    %v129 = vunpack.c.l.b16 %v49
    %v130 = vunpack.c.h.b16 %v49
    %v131 = vunpack.c.l.b16 %v50
    %v132 = vunpack.c.h.b16 %v50
    %v133 = vunpack.c.l.b16 %v51
    %v134 = vunpack.c.h.b16 %v51
    %v135 = vunpack.c.l.b16 %v52
    %v136 = vunpack.c.h.b16 %v52
    %v137 = vunpack.c.l.b16 %v53
    %v138 = vunpack.c.h.b16 %v53
    %v139 = vunpack.c.l.b16 %v54
    %v140 = vunpack.c.h.b16 %v54
    %v141 = vunpack.c.l.b16 %v55
    %v142 = vunpack.c.h.b16 %v55
    %v143 = vunpack.c.l.b16 %v56
    %v144 = vunpack.c.h.b16 %v56
    %v145 = vunpack.c.l.b16 %v57
    %v146 = vunpack.c.h.b16 %v57
    %v147 = vunpack.c.l.b16 %v58
    %v148 = vunpack.c.h.b16 %v58
    %v149 = vunpack.c.l.b16 %v59
    %v150 = vunpack.c.h.b16 %v59
    %v151 = vunpack.c.l.b16 %v60
    %v152 = vunpack.c.h.b16 %v60
    %v153 = vunpack.c.l.b16 %v61
    %v154 = vunpack.c.h.b16 %v61
    %v155 = vunpack.c.l.b16 %v62
    %v156 = vunpack.c.h.b16 %v62
    %v157 = vunpack.c.l.b16 %v63
    %v158 = vunpack.c.h.b16 %v63
    %v159 = vunpack.c.l.b16 %v64
    %v160 = vunpack.c.h.b16 %v64
    %v161 = vunpack.c.l.b16 %v65
    %v162 = vunpack.c.h.b16 %v65
    %v163 = vunpack.c.l.b16 %v66
    %v164 = vunpack.c.h.b16 %v66
    %v165 = vunpack.c.l.b16 %v67
    %v166 = vunpack.c.h.b16 %v67
    %v167 = vunpack.c.l.b16 %v68
    %v168 = vunpack.c.h.b16 %v68
    %v169 = vunpack.c.l.b16 %v69
    %v170 = vunpack.c.h.b16 %v69
    %v171 = vunpack.c.l.b16 %v70
    %v172 = vunpack.c.h.b16 %v70
    %v173 = vunpack.c.l.b16 %v71
    %v174 = vunpack.c.h.b16 %v71
    %v175 = vunpack.c.l.b16 %v72
    %v176 = vunpack.c.h.b16 %v72
    %v177 = vunpack.c.l.b16 %v73
    %v178 = vunpack.c.h.b16 %v73
    %v179 = vunpack.c.l.b16 %v74
    %v180 = vunpack.c.h.b16 %v74
    %v181 = vpack.c.b16 %v121, %v117
    %v182 = vpack.c.b16 %v122, %v118
    %v183 = vpack.c.b16 %v123, %v119
    %v184 = vpack.c.b16 %v124, %v120
    %v185 = vpack.c.b16 %v129, %v125
    %v186 = vpack.c.b16 %v130, %v126
    %v187 = vpack.c.b16 %v131, %v127
    %v188 = vpack.c.b16 %v132, %v128
    %v189 = vpack.c.b16 %v137, %v133
    %v190 = vpack.c.b16 %v138, %v134
    %v191 = vpack.c.b16 %v139, %v135
    %v192 = vpack.c.b16 %v140, %v136
    %v193 = vpack.c.b16 %v145, %v141
    %v194 = vpack.c.b16 %v146, %v142
    %v195 = vpack.c.b16 %v147, %v143
    %v196 = vpack.c.b16 %v148, %v144
    %v197 = vpack.c.b16 %v153, %v149
    %v198 = vpack.c.b16 %v154, %v150
    %v199 = vpack.c.b16 %v155, %v151
    %v200 = vpack.c.b16 %v156, %v152
    %v201 = vpack.c.b16 %v161, %v157
    %v202 = vpack.c.b16 %v162, %v158
    %v203 = vpack.c.b16 %v163, %v159
    %v204 = vpack.c.b16 %v164, %v160
    %v205 = vpack.c.b16 %v169, %v165
    %v206 = vpack.c.b16 %v170, %v166
    %v207 = vpack.c.b16 %v171, %v167
    %v208 = vpack.c.b16 %v172, %v168
    %v209 = vpack.c.b16 %v177, %v173
    %v210 = vpack.c.b16 %v178, %v174
    %v211 = vpack.c.b16 %v179, %v175
    %v212 = vpack.c.b16 %v180, %v176
    %245 = vmatpush.bf16.msra.mxu0 %v209
    %246 = vmatpush.bf16.msra.mxu0 %v205
    %247 = vmatpush.bf16.msra.mxu0 %v201
    %248 = vmatpush.bf16.msra.mxu0 %v197
    %249 = vmatpush.bf16.msra.mxu0 %v193
    %250 = vmatpush.bf16.msra.mxu0 %v189
    %251 = vmatpush.bf16.msra.mxu0 %v185
    %252 = vmatpush.bf16.msra.mxu0 %v181
    %253 = vmatmul.bf16.gmra.mxu0 %v39
    %v254 = vpop.f32.mrf.mxu0
    %v255 = vadd.f32 %v77, %v254
    %v256 = vpop.f32.mrf.mxu0
    %v257 = vadd.f32 %v77, %v256
    %258 = vmatmul.bf16.gmra.mxu0 %v40
    %v259 = vpop.f32.mrf.mxu0
    %v260 = vadd.f32 %v77, %v259
    %v261 = vpop.f32.mrf.mxu0
    %v262 = vadd.f32 %v77, %v261
    %263 = vmatmul.bf16.gmra.mxu0 %v41
    %v264 = vpop.f32.mrf.mxu0
    %v265 = vadd.f32 %v77, %v264
    %v266 = vpop.f32.mrf.mxu0
    %v267 = vadd.f32 %v77, %v266
    %268 = vmatmul.bf16.gmra.mxu0 %v42
    %v269 = vpop.f32.mrf.mxu0
    %v270 = vadd.f32 %v77, %v269
    %v271 = vpop.f32.mrf.mxu0
    %v272 = vadd.f32 %v77, %v271
    %273 = vdwg.mxu0
    %274 = vmatpush.bf16.msra.mxu0 %v210
    %275 = vmatpush.bf16.msra.mxu0 %v206
    %276 = vmatpush.bf16.msra.mxu0 %v202
    %277 = vmatpush.bf16.msra.mxu0 %v198
    %278 = vmatpush.bf16.msra.mxu0 %v194
    %279 = vmatpush.bf16.msra.mxu0 %v190
    %280 = vmatpush.bf16.msra.mxu0 %v186
    %281 = vmatpush.bf16.msra.mxu0 %v182
    %282 = vmatmul.bf16.gmra.mxu0 %v39
    %v283 = vpop.f32.mrf.mxu0
    %v284 = vadd.f32 %v78, %v283
    %v285 = vpop.f32.mrf.mxu0
    %v286 = vadd.f32 %v78, %v285
    %287 = vmatmul.bf16.gmra.mxu0 %v40
    %v288 = vpop.f32.mrf.mxu0
    %v289 = vadd.f32 %v78, %v288
    %v290 = vpop.f32.mrf.mxu0
    %v291 = vadd.f32 %v78, %v290
    %292 = vmatmul.bf16.gmra.mxu0 %v41
    %v293 = vpop.f32.mrf.mxu0
    %v294 = vadd.f32 %v78, %v293
    %v295 = vpop.f32.mrf.mxu0
    %v296 = vadd.f32 %v78, %v295
    %297 = vmatmul.bf16.gmra.mxu0 %v42
    %v298 = vpop.f32.mrf.mxu0
    %v299 = vadd.f32 %v78, %v298
    %v300 = vpop.f32.mrf.mxu0
    %v301 = vadd.f32 %v78, %v300
    %302 = vdwg.mxu0
    %303 = vmatpush.bf16.msra.mxu0 %v211
    %304 = vmatpush.bf16.msra.mxu0 %v207
    %305 = vmatpush.bf16.msra.mxu0 %v203
    %306 = vmatpush.bf16.msra.mxu0 %v199
    %307 = vmatpush.bf16.msra.mxu0 %v195
    %308 = vmatpush.bf16.msra.mxu0 %v191
    %309 = vmatpush.bf16.msra.mxu0 %v187
    %310 = vmatpush.bf16.msra.mxu0 %v183
    %311 = vmatmul.bf16.gmra.mxu0 %v39
    %v312 = vpop.f32.mrf.mxu0
    %v313 = vadd.f32 %v79, %v312
    %v314 = vpop.f32.mrf.mxu0
    %v315 = vadd.f32 %v79, %v314
    %316 = vmatmul.bf16.gmra.mxu0 %v40
    %v317 = vpop.f32.mrf.mxu0
    %v318 = vadd.f32 %v79, %v317
    %v319 = vpop.f32.mrf.mxu0
    %v320 = vadd.f32 %v79, %v319
    %321 = vmatmul.bf16.gmra.mxu0 %v41
    %v322 = vpop.f32.mrf.mxu0
    %v323 = vadd.f32 %v79, %v322
    %v324 = vpop.f32.mrf.mxu0
    %v325 = vadd.f32 %v79, %v324
    %326 = vmatmul.bf16.gmra.mxu0 %v42
    %v327 = vpop.f32.mrf.mxu0
    %v328 = vadd.f32 %v79, %v327
    %v329 = vpop.f32.mrf.mxu0
    %v330 = vadd.f32 %v79, %v329
    %331 = vdwg.mxu0
    %332 = vmatpush.bf16.msra.mxu0 %v212
    %333 = vmatpush.bf16.msra.mxu0 %v208
    %334 = vmatpush.bf16.msra.mxu0 %v204
    %335 = vmatpush.bf16.msra.mxu0 %v200
    %336 = vmatpush.bf16.msra.mxu0 %v196
    %337 = vmatpush.bf16.msra.mxu0 %v192
    %338 = vmatpush.bf16.msra.mxu0 %v188
    %339 = vmatpush.bf16.msra.mxu0 %v184
    %340 = vmatmul.bf16.gmra.mxu0 %v39
    %v341 = vpop.f32.mrf.mxu0
    %v342 = vadd.f32 %v80, %v341
    %v343 = vpop.f32.mrf.mxu0
    %v344 = vadd.f32 %v80, %v343
    %345 = vmatmul.bf16.gmra.mxu0 %v40
    %v346 = vpop.f32.mrf.mxu0
    %v347 = vadd.f32 %v80, %v346
    %v348 = vpop.f32.mrf.mxu0
    %v349 = vadd.f32 %v80, %v348
    %350 = vmatmul.bf16.gmra.mxu0 %v41
    %v351 = vpop.f32.mrf.mxu0
    %v352 = vadd.f32 %v80, %v351
    %v353 = vpop.f32.mrf.mxu0
    %v354 = vadd.f32 %v80, %v353
    %355 = vmatmul.bf16.gmra.mxu0 %v42
    %v356 = vpop.f32.mrf.mxu0
    %v357 = vadd.f32 %v80, %v356
    %v358 = vpop.f32.mrf.mxu0
    %v359 = vadd.f32 %v80, %v358
    %360 = vdwg.mxu0
    %361 = vst [vmem:[#allocation2] sm:$0xff] %v255
    %362 = vst [vmem:[#allocation2 + $0x8] sm:$0xff] %v284
    %363 = vst [vmem:[#allocation2 + $0x10] sm:$0xff] %v313
    %364 = vst [vmem:[#allocation2 + $0x18] sm:$0xff] %v342
    %365 = vst [vmem:[#allocation2 + $0x20] sm:$0xff] %v257
    %366 = vst [vmem:[#allocation2 + $0x28] sm:$0xff] %v286
    %367 = vst [vmem:[#allocation2 + $0x30] sm:$0xff] %v315
    %368 = vst [vmem:[#allocation2 + $0x38] sm:$0xff] %v344
    %369 = vst [vmem:[#allocation2 + $0x40] sm:$0xff] %v260
    %370 = vst [vmem:[#allocation2 + $0x48] sm:$0xff] %v289
    %371 = vst [vmem:[#allocation2 + $0x50] sm:$0xff] %v318
    %372 = vst [vmem:[#allocation2 + $0x58] sm:$0xff] %v347
    %373 = vst [vmem:[#allocation2 + $0x60] sm:$0xff] %v262
    %374 = vst [vmem:[#allocation2 + $0x68] sm:$0xff] %v291
    %375 = vst [vmem:[#allocation2 + $0x70] sm:$0xff] %v320
    %376 = vst [vmem:[#allocation2 + $0x78] sm:$0xff] %v349
    %377 = vst [vmem:[#allocation2 + $0x80] sm:$0xff] %v265
    %378 = vst [vmem:[#allocation2 + $0x88] sm:$0xff] %v294
    %379 = vst [vmem:[#allocation2 + $0x90] sm:$0xff] %v323
    %380 = vst [vmem:[#allocation2 + $0x98] sm:$0xff] %v352
    %381 = vst [vmem:[#allocation2 + $0xa0] sm:$0xff] %v267
    %382 = vst [vmem:[#allocation2 + $0xa8] sm:$0xff] %v296
    %383 = vst [vmem:[#allocation2 + $0xb0] sm:$0xff] %v325
    %384 = vst [vmem:[#allocation2 + $0xb8] sm:$0xff] %v354
    %385 = vst [vmem:[#allocation2 + $0xc0] sm:$0xff] %v270
    %386 = vst [vmem:[#allocation2 + $0xc8] sm:$0xff] %v299
    %387 = vst [vmem:[#allocation2 + $0xd0] sm:$0xff] %v328
    %388 = vst [vmem:[#allocation2 + $0xd8] sm:$0xff] %v357
    %389 = vst [vmem:[#allocation2 + $0xe0] sm:$0xff] %v272
    %390 = vst [vmem:[#allocation2 + $0xe8] sm:$0xff] %v301
    %391 = vst [vmem:[#allocation2 + $0xf0] sm:$0xff] %v330
    %392 = vst [vmem:[#allocation2 + $0xf8] sm:$0xff] %v359
    %v393 = vld [vmem:[%s4] sm:$0xf]
    %v394 = vld [vmem:[#allocation2] sm:$0xff]
    %v395 = vld [vmem:[#allocation2 + $0x8] sm:$0xff]
    %v396 = vld [vmem:[#allocation2 + $0x10] sm:$0xff]
    %v397 = vld [vmem:[#allocation2 + $0x18] sm:$0xff]
    %v398 = vxor.u32 %v394, 2147483648
    %v399 = vxor.u32 %v395, 2147483648
    %v400 = vxor.u32 %v396, 2147483648
    %v401 = vmul.f32 %v398, 1.442695
    %v402 = vpow.pop %v401
    %v403 = vmul.f32 %v399, 1.442695
    %v404 = vpow.pop %v403
    %v405 = vmul.f32 %v400, 1.442695
    %v406 = vpow.pop %v405
    %v407 = vadd.f32 %v402, 1.0
    %v408 = vadd.f32 %v404, 1.0
    %v409 = vadd.f32 %v406, 1.0
    %v410 = vrcp.pop %v407
    %v411 = vmul.f32 %v407, %v410
    %v412 = vsub.f32 1.0, %v411
    %v413 = vmul.f32 %v410, %v412
    %v414 = vadd.f32 %v410, %v413
    %vm415 = vweird.f32 %v407
    %vm416 = vweird.f32 %v410
    %vm417 = vmor %vm415, %vm416
    %v418 = vsel %vm417, %v410, %v414
    %v419 = vand.u32 2147483647, %v407
    %vm420 = vcmp.eq.f32.partialorder %v419, 8.507059e+37
    %v421 = vand.u32 %v407, 2147483648
    %v422 = vor.u32 1.1754944e-38, %v421
    %v423 = vsel %vm420, %v422, %v418
    %v424 = vmul.f32 1.0, %v423
    %v425 = vrcp.pop %v408
    %v426 = vmul.f32 %v408, %v425
    %v427 = vsub.f32 1.0, %v426
    %v428 = vmul.f32 %v425, %v427
    %v429 = vadd.f32 %v425, %v428
    %vm430 = vweird.f32 %v408
    %vm431 = vweird.f32 %v425
    %vm432 = vmor %vm430, %vm431
    %v433 = vsel %vm432, %v425, %v429
    %v434 = vand.u32 2147483647, %v408
    %vm435 = vcmp.eq.f32.partialorder %v434, 8.507059e+37
    %v436 = vand.u32 %v408, 2147483648
    %v437 = vor.u32 1.1754944e-38, %v436
    %v438 = vsel %vm435, %v437, %v433
    %v439 = vmul.f32 1.0, %v438
    %v440 = vrcp.pop %v409
    %v441 = vmul.f32 %v409, %v440
    %v442 = vsub.f32 1.0, %v441
    %v443 = vmul.f32 %v440, %v442
    %v444 = vadd.f32 %v440, %v443
    %vm445 = vweird.f32 %v409
    %vm446 = vweird.f32 %v440
    %vm447 = vmor %vm445, %vm446
    %v448 = vsel %vm447, %v440, %v444
    %v449 = vand.u32 2147483647, %v409
    %vm450 = vcmp.eq.f32.partialorder %v449, 8.507059e+37
    %v451 = vand.u32 %v409, 2147483648
    %v452 = vor.u32 1.1754944e-38, %v451
    %v453 = vsel %vm450, %v452, %v448
    %v454 = vmul.f32 1.0, %v453
    %v455 = vtanh.pop %v397
    %v456 = vmul.f32 %v439, 0.0
    %v457 = vmul.f32 %v424, %v455
    %v458 = vadd.f32 %v456, %v457
    %v459 = vtanh.pop %v458
    %v460 = vmul.f32 %v454, %v459
    %v461 = vpack.c.bf16 %v460, %v460
    %v462 = vld [vmem:[%s3] sm:$0xff]
    %v463 = vld [vmem:[%s3 + $0x8] sm:$0xff]
    %v464 = vld [vmem:[%s3 + $0x10] sm:$0xff]
    %v465 = vld [vmem:[%s3 + $0x18] sm:$0xff]
    %v466 = vld [vmem:[%s3 + $0x20] sm:$0xff]
    %v467 = vld [vmem:[%s3 + $0x28] sm:$0xff]
    %v468 = vld [vmem:[%s3 + $0x30] sm:$0xff]
    %v469 = vld [vmem:[%s3 + $0x38] sm:$0xff]
    %v470 = vld [vmem:[%s3 + $0x40] sm:$0xff]
    %v471 = vld [vmem:[%s3 + $0x48] sm:$0xff]
    %v472 = vld [vmem:[%s3 + $0x50] sm:$0xff]
    %v473 = vld [vmem:[%s3 + $0x58] sm:$0xff]
    %v474 = vld [vmem:[%s3 + $0x60] sm:$0xff]
    %v475 = vld [vmem:[%s3 + $0x68] sm:$0xff]
    %v476 = vld [vmem:[%s3 + $0x70] sm:$0xff]
    %v477 = vld [vmem:[%s3 + $0x78] sm:$0xff]
    %v478 = vld [vmem:[%s3 + $0x80] sm:$0xff]
    %v479 = vld [vmem:[%s3 + $0x88] sm:$0xff]
    %v480 = vld [vmem:[%s3 + $0x90] sm:$0xff]
    %v481 = vld [vmem:[%s3 + $0x98] sm:$0xff]
    %v482 = vld [vmem:[%s3 + $0xa0] sm:$0xff]
    %v483 = vld [vmem:[%s3 + $0xa8] sm:$0xff]
    %v484 = vld [vmem:[%s3 + $0xb0] sm:$0xff]
    %v485 = vld [vmem:[%s3 + $0xb8] sm:$0xff]
    %v486 = vld [vmem:[%s3 + $0xc0] sm:$0xff]
    %v487 = vld [vmem:[%s3 + $0xc8] sm:$0xff]
    %v488 = vld [vmem:[%s3 + $0xd0] sm:$0xff]
    %v489 = vld [vmem:[%s3 + $0xd8] sm:$0xff]
    %v490 = vld [vmem:[%s3 + $0xe0] sm:$0xff]
    %v491 = vld [vmem:[%s3 + $0xe8] sm:$0xff]
    %v492 = vld [vmem:[%s3 + $0xf0] sm:$0xff]
    %v493 = vld [vmem:[%s3 + $0xf8] sm:$0xff]
    %v494 = vld [vmem:[%s3 + $0x100] sm:$0xff]
    %v495 = vld [vmem:[%s3 + $0x108] sm:$0xff]
    %v496 = vld [vmem:[%s3 + $0x110] sm:$0xff]
    %v497 = vld [vmem:[%s3 + $0x118] sm:$0xff]
    %v498 = vld [vmem:[%s3 + $0x120] sm:$0xff]
    %v499 = vld [vmem:[%s3 + $0x128] sm:$0xff]
    %v500 = vld [vmem:[%s3 + $0x130] sm:$0xff]
    %v501 = vld [vmem:[%s3 + $0x138] sm:$0xff]
    %v502 = vld [vmem:[%s3 + $0x140] sm:$0xff]
    %v503 = vld [vmem:[%s3 + $0x148] sm:$0xff]
    %v504 = vld [vmem:[%s3 + $0x150] sm:$0xff]
    %v505 = vld [vmem:[%s3 + $0x158] sm:$0xff]
    %v506 = vld [vmem:[%s3 + $0x160] sm:$0xff]
    %v507 = vld [vmem:[%s3 + $0x168] sm:$0xff]
    %v508 = vld [vmem:[%s3 + $0x170] sm:$0xff]
    %v509 = vld [vmem:[%s3 + $0x178] sm:$0xff]
    %v510 = vld [vmem:[%s3 + $0x180] sm:$0xff]
    %v511 = vld [vmem:[%s3 + $0x188] sm:$0xff]
    %v512 = vld [vmem:[%s3 + $0x190] sm:$0xff]
    %v513 = vld [vmem:[%s3 + $0x198] sm:$0xff]
    %v514 = vld [vmem:[%s3 + $0x1a0] sm:$0xff]
    %v515 = vld [vmem:[%s3 + $0x1a8] sm:$0xff]
    %v516 = vld [vmem:[%s3 + $0x1b0] sm:$0xff]
    %v517 = vld [vmem:[%s3 + $0x1b8] sm:$0xff]
    %v518 = vld [vmem:[%s3 + $0x1c0] sm:$0xff]
    %v519 = vld [vmem:[%s3 + $0x1c8] sm:$0xff]
    %v520 = vld [vmem:[%s3 + $0x1d0] sm:$0xff]
    %v521 = vld [vmem:[%s3 + $0x1d8] sm:$0xff]
    %v522 = vld [vmem:[%s3 + $0x1e0] sm:$0xff]
    %v523 = vld [vmem:[%s3 + $0x1e8] sm:$0xff]
    %v524 = vld [vmem:[%s3 + $0x1f0] sm:$0xff]
    %v525 = vld [vmem:[%s3 + $0x1f8] sm:$0xff]
    %v590 = vunpack.c.l.b16 %v462
    %v591 = vunpack.c.h.b16 %v462
    %v592 = vunpack.c.l.b16 %v463
    %v593 = vunpack.c.h.b16 %v463
    %v594 = vunpack.c.l.b16 %v464
    %v595 = vunpack.c.h.b16 %v464
    %v596 = vunpack.c.l.b16 %v465
    %v597 = vunpack.c.h.b16 %v465
    %v598 = vunpack.c.l.b16 %v466
    %v599 = vunpack.c.h.b16 %v466
    %v600 = vunpack.c.l.b16 %v467
    %v601 = vunpack.c.h.b16 %v467
    %v602 = vunpack.c.l.b16 %v468
    %v603 = vunpack.c.h.b16 %v468
    %v604 = vunpack.c.l.b16 %v469
    %v605 = vunpack.c.h.b16 %v469
    %v606 = vunpack.c.l.b16 %v470
    %v607 = vunpack.c.h.b16 %v470
    %v608 = vunpack.c.l.b16 %v471
    %v609 = vunpack.c.h.b16 %v471
    %v610 = vunpack.c.l.b16 %v472
    %v611 = vunpack.c.h.b16 %v472
    %v612 = vunpack.c.l.b16 %v473
    %v613 = vunpack.c.h.b16 %v473
    %v614 = vunpack.c.l.b16 %v474
    %v615 = vunpack.c.h.b16 %v474
    %v616 = vunpack.c.l.b16 %v475
    %v617 = vunpack.c.h.b16 %v475
    %v618 = vunpack.c.l.b16 %v476
    %v619 = vunpack.c.h.b16 %v476
    %v620 = vunpack.c.l.b16 %v477
    %v621 = vunpack.c.h.b16 %v477
    %v622 = vunpack.c.l.b16 %v478
    %v623 = vunpack.c.h.b16 %v478
    %v624 = vunpack.c.l.b16 %v479
    %v625 = vunpack.c.h.b16 %v479
    %v626 = vunpack.c.l.b16 %v480
    %v627 = vunpack.c.h.b16 %v480
    %v628 = vunpack.c.l.b16 %v481
    %v629 = vunpack.c.h.b16 %v481
    %v630 = vunpack.c.l.b16 %v482
    %v631 = vunpack.c.h.b16 %v482
    %v632 = vunpack.c.l.b16 %v483
    %v633 = vunpack.c.h.b16 %v483
    %v634 = vunpack.c.l.b16 %v484
    %v635 = vunpack.c.h.b16 %v484
    %v636 = vunpack.c.l.b16 %v485
    %v637 = vunpack.c.h.b16 %v485
    %v638 = vunpack.c.l.b16 %v486
    %v639 = vunpack.c.h.b16 %v486
    %v640 = vunpack.c.l.b16 %v487
    %v641 = vunpack.c.h.b16 %v487
    %v642 = vunpack.c.l.b16 %v488
    %v643 = vunpack.c.h.b16 %v488
    %v644 = vunpack.c.l.b16 %v489
    %v645 = vunpack.c.h.b16 %v489
    %v646 = vunpack.c.l.b16 %v490
    %v647 = vunpack.c.h.b16 %v490
    %v648 = vunpack.c.l.b16 %v491
    %v649 = vunpack.c.h.b16 %v491
    %v650 = vunpack.c.l.b16 %v492
    %v651 = vunpack.c.h.b16 %v492
    %v652 = vunpack.c.l.b16 %v493
    %v653 = vunpack.c.h.b16 %v493
    %v654 = vunpack.c.l.b16 %v494
    %v655 = vunpack.c.h.b16 %v494
    %v656 = vunpack.c.l.b16 %v495
    %v657 = vunpack.c.h.b16 %v495
    %v658 = vunpack.c.l.b16 %v496
    %v659 = vunpack.c.h.b16 %v496
    %v660 = vunpack.c.l.b16 %v497
    %v661 = vunpack.c.h.b16 %v497
    %v662 = vunpack.c.l.b16 %v498
    %v663 = vunpack.c.h.b16 %v498
    %v664 = vunpack.c.l.b16 %v499
    %v665 = vunpack.c.h.b16 %v499
    %v666 = vunpack.c.l.b16 %v500
    %v667 = vunpack.c.h.b16 %v500
    %v668 = vunpack.c.l.b16 %v501
    %v669 = vunpack.c.h.b16 %v501
    %v670 = vunpack.c.l.b16 %v502
    %v671 = vunpack.c.h.b16 %v502
    %v672 = vunpack.c.l.b16 %v503
    %v673 = vunpack.c.h.b16 %v503
    %v674 = vunpack.c.l.b16 %v504
    %v675 = vunpack.c.h.b16 %v504
    %v676 = vunpack.c.l.b16 %v505
    %v677 = vunpack.c.h.b16 %v505
    %v678 = vunpack.c.l.b16 %v506
    %v679 = vunpack.c.h.b16 %v506
    %v680 = vunpack.c.l.b16 %v507
    %v681 = vunpack.c.h.b16 %v507
    %v682 = vunpack.c.l.b16 %v508
    %v683 = vunpack.c.h.b16 %v508
    %v684 = vunpack.c.l.b16 %v509
    %v685 = vunpack.c.h.b16 %v509
    %v686 = vunpack.c.l.b16 %v510
    %v687 = vunpack.c.h.b16 %v510
    %v688 = vunpack.c.l.b16 %v511
    %v689 = vunpack.c.h.b16 %v511
    %v690 = vunpack.c.l.b16 %v512
    %v691 = vunpack.c.h.b16 %v512
    %v692 = vunpack.c.l.b16 %v513
    %v693 = vunpack.c.h.b16 %v513
    %v694 = vunpack.c.l.b16 %v514
    %v695 = vunpack.c.h.b16 %v514
    %v696 = vunpack.c.l.b16 %v515
    %v697 = vunpack.c.h.b16 %v515
    %v698 = vunpack.c.l.b16 %v516
    %v699 = vunpack.c.h.b16 %v516
    %v700 = vunpack.c.l.b16 %v517
    %v701 = vunpack.c.h.b16 %v517
    %v702 = vunpack.c.l.b16 %v518
    %v703 = vunpack.c.h.b16 %v518
    %v704 = vunpack.c.l.b16 %v519
    %v705 = vunpack.c.h.b16 %v519
    %v706 = vunpack.c.l.b16 %v520
    %v707 = vunpack.c.h.b16 %v520
    %v708 = vunpack.c.l.b16 %v521
    %v709 = vunpack.c.h.b16 %v521
    %v710 = vunpack.c.l.b16 %v522
    %v711 = vunpack.c.h.b16 %v522
    %v712 = vunpack.c.l.b16 %v523
    %v713 = vunpack.c.h.b16 %v523
    %v714 = vunpack.c.l.b16 %v524
    %v715 = vunpack.c.h.b16 %v524
    %v716 = vunpack.c.l.b16 %v525
    %v717 = vunpack.c.h.b16 %v525
    %v718 = vpack.c.b16 %v598, %v590
    %v719 = vpack.c.b16 %v599, %v591
    %v720 = vpack.c.b16 %v600, %v592
    %v721 = vpack.c.b16 %v601, %v593
    %v722 = vpack.c.b16 %v602, %v594
    %v723 = vpack.c.b16 %v603, %v595
    %v724 = vpack.c.b16 %v604, %v596
    %v725 = vpack.c.b16 %v605, %v597
    %v726 = vpack.c.b16 %v614, %v606
    %v727 = vpack.c.b16 %v615, %v607
    %v728 = vpack.c.b16 %v616, %v608
    %v729 = vpack.c.b16 %v617, %v609
    %v730 = vpack.c.b16 %v618, %v610
    %v731 = vpack.c.b16 %v619, %v611
    %v732 = vpack.c.b16 %v620, %v612
    %v733 = vpack.c.b16 %v621, %v613
    %v734 = vpack.c.b16 %v630, %v622
    %v735 = vpack.c.b16 %v631, %v623
    %v736 = vpack.c.b16 %v632, %v624
    %v737 = vpack.c.b16 %v633, %v625
    %v738 = vpack.c.b16 %v634, %v626
    %v739 = vpack.c.b16 %v635, %v627
    %v740 = vpack.c.b16 %v636, %v628
    %v741 = vpack.c.b16 %v637, %v629
    %v742 = vpack.c.b16 %v646, %v638
    %v743 = vpack.c.b16 %v647, %v639
    %v744 = vpack.c.b16 %v648, %v640
    %v745 = vpack.c.b16 %v649, %v641
    %v746 = vpack.c.b16 %v650, %v642
    %v747 = vpack.c.b16 %v651, %v643
    %v748 = vpack.c.b16 %v652, %v644
    %v749 = vpack.c.b16 %v653, %v645
    %v750 = vpack.c.b16 %v662, %v654
    %v751 = vpack.c.b16 %v663, %v655
    %v752 = vpack.c.b16 %v664, %v656
    %v753 = vpack.c.b16 %v665, %v657
    %v754 = vpack.c.b16 %v666, %v658
    %v755 = vpack.c.b16 %v667, %v659
    %v756 = vpack.c.b16 %v668, %v660
    %v757 = vpack.c.b16 %v669, %v661
    %v758 = vpack.c.b16 %v678, %v670
    %v759 = vpack.c.b16 %v679, %v671
    %v760 = vpack.c.b16 %v680, %v672
    %v761 = vpack.c.b16 %v681, %v673
    %v762 = vpack.c.b16 %v682, %v674
    %v763 = vpack.c.b16 %v683, %v675
    %v764 = vpack.c.b16 %v684, %v676
    %v765 = vpack.c.b16 %v685, %v677
    %v766 = vpack.c.b16 %v694, %v686
    %v767 = vpack.c.b16 %v695, %v687
    %v768 = vpack.c.b16 %v696, %v688
    %v769 = vpack.c.b16 %v697, %v689
    %v770 = vpack.c.b16 %v698, %v690
    %v771 = vpack.c.b16 %v699, %v691
    %v772 = vpack.c.b16 %v700, %v692
    %v773 = vpack.c.b16 %v701, %v693
    %v774 = vpack.c.b16 %v710, %v702
    %v775 = vpack.c.b16 %v711, %v703
    %v776 = vpack.c.b16 %v712, %v704
    %v777 = vpack.c.b16 %v713, %v705
    %v778 = vpack.c.b16 %v714, %v706
    %v779 = vpack.c.b16 %v715, %v707
    %v780 = vpack.c.b16 %v716, %v708
    %v781 = vpack.c.b16 %v717, %v709
    %846 = vmatpush.bf16.msra.mxu0 %v774
    %847 = vmatpush.bf16.msra.mxu0 %v766
    %848 = vmatpush.bf16.msra.mxu0 %v758
    %849 = vmatpush.bf16.msra.mxu0 %v750
    %850 = vmatpush.bf16.msra.mxu0 %v742
    %851 = vmatpush.bf16.msra.mxu0 %v734
    %852 = vmatpush.bf16.msra.mxu0 %v726
    %853 = vmatpush.bf16.msra.mxu0 %v718
    %854 = vmatmul.bf16.gmra.mxu0 %v461
    %v855 = vpop.f32.mrf.mxu0
    %v856 = vadd.f32 0.0, %v855
    %v857 = vpop.f32.mrf.mxu0
    %858 = vdwg.mxu0
    %859 = vmatpush.bf16.msra.mxu0 %v775
    %860 = vmatpush.bf16.msra.mxu0 %v767
    %861 = vmatpush.bf16.msra.mxu0 %v759
    %862 = vmatpush.bf16.msra.mxu0 %v751
    %863 = vmatpush.bf16.msra.mxu0 %v743
    %864 = vmatpush.bf16.msra.mxu0 %v735
    %865 = vmatpush.bf16.msra.mxu0 %v727
    %866 = vmatpush.bf16.msra.mxu0 %v719
    %867 = vmatmul.bf16.gmra.mxu0 %v461
    %v868 = vpop.f32.mrf.mxu0
    %v869 = vadd.f32 0.0, %v868
    %v870 = vpop.f32.mrf.mxu0
    %871 = vdwg.mxu0
    %872 = vmatpush.bf16.msra.mxu0 %v776
    %873 = vmatpush.bf16.msra.mxu0 %v768
    %874 = vmatpush.bf16.msra.mxu0 %v760
    %875 = vmatpush.bf16.msra.mxu0 %v752
    %876 = vmatpush.bf16.msra.mxu0 %v744
    %877 = vmatpush.bf16.msra.mxu0 %v736
    %878 = vmatpush.bf16.msra.mxu0 %v728
    %879 = vmatpush.bf16.msra.mxu0 %v720
    %880 = vmatmul.bf16.gmra.mxu0 %v461
    %v881 = vpop.f32.mrf.mxu0
    %v882 = vadd.f32 0.0, %v881
    %v883 = vpop.f32.mrf.mxu0
    %884 = vdwg.mxu0
    %885 = vmatpush.bf16.msra.mxu0 %v777
    %886 = vmatpush.bf16.msra.mxu0 %v769
    %887 = vmatpush.bf16.msra.mxu0 %v761
    %888 = vmatpush.bf16.msra.mxu0 %v753
    %889 = vmatpush.bf16.msra.mxu0 %v745
    %890 = vmatpush.bf16.msra.mxu0 %v737
    %891 = vmatpush.bf16.msra.mxu0 %v729
    %892 = vmatpush.bf16.msra.mxu0 %v721
    %893 = vmatmul.bf16.gmra.mxu0 %v461
    %v894 = vpop.f32.mrf.mxu0
    %v895 = vadd.f32 0.0, %v894
    %v896 = vpop.f32.mrf.mxu0
    %897 = vdwg.mxu0
    %898 = vmatpush.bf16.msra.mxu0 %v778
    %899 = vmatpush.bf16.msra.mxu0 %v770
    %900 = vmatpush.bf16.msra.mxu0 %v762
    %901 = vmatpush.bf16.msra.mxu0 %v754
    %902 = vmatpush.bf16.msra.mxu0 %v746
    %903 = vmatpush.bf16.msra.mxu0 %v738
    %904 = vmatpush.bf16.msra.mxu0 %v730
    %905 = vmatpush.bf16.msra.mxu0 %v722
    %906 = vmatmul.bf16.gmra.mxu0 %v461
    %v907 = vpop.f32.mrf.mxu0
    %v908 = vadd.f32 0.0, %v907
    %v909 = vpop.f32.mrf.mxu0
    %910 = vdwg.mxu0
    %911 = vmatpush.bf16.msra.mxu0 %v779
    %912 = vmatpush.bf16.msra.mxu0 %v771
    %913 = vmatpush.bf16.msra.mxu0 %v763
    %914 = vmatpush.bf16.msra.mxu0 %v755
    %915 = vmatpush.bf16.msra.mxu0 %v747
    %916 = vmatpush.bf16.msra.mxu0 %v739
    %917 = vmatpush.bf16.msra.mxu0 %v731
    %918 = vmatpush.bf16.msra.mxu0 %v723
    %919 = vmatmul.bf16.gmra.mxu0 %v461
    %v920 = vpop.f32.mrf.mxu0
    %v921 = vadd.f32 0.0, %v920
    %v922 = vpop.f32.mrf.mxu0
    %923 = vdwg.mxu0
    %924 = vmatpush.bf16.msra.mxu0 %v780
    %925 = vmatpush.bf16.msra.mxu0 %v772
    %926 = vmatpush.bf16.msra.mxu0 %v764
    %927 = vmatpush.bf16.msra.mxu0 %v756
    %928 = vmatpush.bf16.msra.mxu0 %v748
    %929 = vmatpush.bf16.msra.mxu0 %v740
    %930 = vmatpush.bf16.msra.mxu0 %v732
    %931 = vmatpush.bf16.msra.mxu0 %v724
    %932 = vmatmul.bf16.gmra.mxu0 %v461
    %v933 = vpop.f32.mrf.mxu0
    %v934 = vadd.f32 0.0, %v933
    %v935 = vpop.f32.mrf.mxu0
    %936 = vdwg.mxu0
    %937 = vmatpush.bf16.msra.mxu0 %v781
    %938 = vmatpush.bf16.msra.mxu0 %v773
    %939 = vmatpush.bf16.msra.mxu0 %v765
    %940 = vmatpush.bf16.msra.mxu0 %v757
    %941 = vmatpush.bf16.msra.mxu0 %v749
    %942 = vmatpush.bf16.msra.mxu0 %v741
    %943 = vmatpush.bf16.msra.mxu0 %v733
    %944 = vmatpush.bf16.msra.mxu0 %v725
    %945 = vmatmul.bf16.gmra.mxu0 %v461
    %v946 = vpop.f32.mrf.mxu0
    %v947 = vadd.f32 0.0, %v946
    %v948 = vpop.f32.mrf.mxu0
    %949 = vdwg.mxu0
    %v950 = vld [vmem:[%s5] sm:$0xff]
    %v951 = vld [vmem:[%s5 + $0x8] sm:$0xff]
    %v952 = vld [vmem:[%s5 + $0x10] sm:$0xff]
    %v953 = vld [vmem:[%s5 + $0x18] sm:$0xff]
    %v954 = vld [vmem:[%s5 + $0x20] sm:$0xff]
    %v955 = vld [vmem:[%s5 + $0x28] sm:$0xff]
    %v956 = vld [vmem:[%s5 + $0x30] sm:$0xff]
    %v957 = vld [vmem:[%s5 + $0x38] sm:$0xff]
    %v958 = vld [vmem:[%s5 + $0x40] sm:$0xff]
    %v959 = vld [vmem:[%s5 + $0x48] sm:$0xff]
    %v960 = vld [vmem:[%s5 + $0x50] sm:$0xff]
    %v961 = vld [vmem:[%s5 + $0x58] sm:$0xff]
    %v962 = vld [vmem:[%s5 + $0x60] sm:$0xff]
    %v963 = vld [vmem:[%s5 + $0x68] sm:$0xff]
    %v964 = vld [vmem:[%s5 + $0x70] sm:$0xff]
    %v965 = vld [vmem:[%s5 + $0x78] sm:$0xff]
    %v966 = vld [vmem:[%s5 + $0x80] sm:$0xff]
    %v967 = vld [vmem:[%s5 + $0x88] sm:$0xff]
    %v968 = vld [vmem:[%s5 + $0x90] sm:$0xff]
    %v969 = vld [vmem:[%s5 + $0x98] sm:$0xff]
    %v970 = vld [vmem:[%s5 + $0xa0] sm:$0xff]
    %v971 = vld [vmem:[%s5 + $0xa8] sm:$0xff]
    %v972 = vld [vmem:[%s5 + $0xb0] sm:$0xff]
    %v973 = vld [vmem:[%s5 + $0xb8] sm:$0xff]
    %v974 = vld [vmem:[%s5 + $0xc0] sm:$0xff]
    %v975 = vld [vmem:[%s5 + $0xc8] sm:$0xff]
    %v976 = vld [vmem:[%s5 + $0xd0] sm:$0xff]
    %v977 = vld [vmem:[%s5 + $0xd8] sm:$0xff]
    %v978 = vld [vmem:[%s5 + $0xe0] sm:$0xff]
    %v979 = vld [vmem:[%s5 + $0xe8] sm:$0xff]
    %v980 = vld [vmem:[%s5 + $0xf0] sm:$0xff]
    %v981 = vld [vmem:[%s5 + $0xf8] sm:$0xff]
    %v1014 = vunpack.c.l.b16 %v950
    %v1015 = vunpack.c.h.b16 %v950
    %v1016 = vunpack.c.l.b16 %v951
    %v1017 = vunpack.c.h.b16 %v951
    %v1018 = vunpack.c.l.b16 %v952
    %v1019 = vunpack.c.h.b16 %v952
    %v1020 = vunpack.c.l.b16 %v953
    %v1021 = vunpack.c.h.b16 %v953
    %v1022 = vunpack.c.l.b16 %v954
    %v1023 = vunpack.c.h.b16 %v954
    %v1024 = vunpack.c.l.b16 %v955
    %v1025 = vunpack.c.h.b16 %v955
    %v1026 = vunpack.c.l.b16 %v956
    %v1027 = vunpack.c.h.b16 %v956
    %v1028 = vunpack.c.l.b16 %v957
    %v1029 = vunpack.c.h.b16 %v957
    %v1030 = vunpack.c.l.b16 %v958
    %v1031 = vunpack.c.h.b16 %v958
    %v1032 = vunpack.c.l.b16 %v959
    %v1033 = vunpack.c.h.b16 %v959
    %v1034 = vunpack.c.l.b16 %v960
    %v1035 = vunpack.c.h.b16 %v960
    %v1036 = vunpack.c.l.b16 %v961
    %v1037 = vunpack.c.h.b16 %v961
    %v1038 = vunpack.c.l.b16 %v962
    %v1039 = vunpack.c.h.b16 %v962
    %v1040 = vunpack.c.l.b16 %v963
    %v1041 = vunpack.c.h.b16 %v963
    %v1042 = vunpack.c.l.b16 %v964
    %v1043 = vunpack.c.h.b16 %v964
    %v1044 = vunpack.c.l.b16 %v965
    %v1045 = vunpack.c.h.b16 %v965
    %v1046 = vunpack.c.l.b16 %v966
    %v1047 = vunpack.c.h.b16 %v966
    %v1048 = vunpack.c.l.b16 %v967
    %v1049 = vunpack.c.h.b16 %v967
    %v1050 = vunpack.c.l.b16 %v968
    %v1051 = vunpack.c.h.b16 %v968
    %v1052 = vunpack.c.l.b16 %v969
    %v1053 = vunpack.c.h.b16 %v969
    %v1054 = vunpack.c.l.b16 %v970
    %v1055 = vunpack.c.h.b16 %v970
    %v1056 = vunpack.c.l.b16 %v971
    %v1057 = vunpack.c.h.b16 %v971
    %v1058 = vunpack.c.l.b16 %v972
    %v1059 = vunpack.c.h.b16 %v972
    %v1060 = vunpack.c.l.b16 %v973
    %v1061 = vunpack.c.h.b16 %v973
    %v1062 = vunpack.c.l.b16 %v974
    %v1063 = vunpack.c.h.b16 %v974
    %v1064 = vunpack.c.l.b16 %v975
    %v1065 = vunpack.c.h.b16 %v975
    %v1066 = vunpack.c.l.b16 %v976
    %v1067 = vunpack.c.h.b16 %v976
    %v1068 = vunpack.c.l.b16 %v977
    %v1069 = vunpack.c.h.b16 %v977
    %v1070 = vunpack.c.l.b16 %v978
    %v1071 = vunpack.c.h.b16 %v978
    %v1072 = vunpack.c.l.b16 %v979
    %v1073 = vunpack.c.h.b16 %v979
    %v1074 = vunpack.c.l.b16 %v980
    %v1075 = vunpack.c.h.b16 %v980
    %v1076 = vunpack.c.l.b16 %v981
    %v1077 = vunpack.c.h.b16 %v981
    %v1078 = vpack.c.b16 %v1018, %v1014
    %v1079 = vpack.c.b16 %v1019, %v1015
    %v1080 = vpack.c.b16 %v1020, %v1016
    %v1081 = vpack.c.b16 %v1021, %v1017
    %v1082 = vpack.c.b16 %v1026, %v1022
    %v1083 = vpack.c.b16 %v1027, %v1023
    %v1084 = vpack.c.b16 %v1028, %v1024
    %v1085 = vpack.c.b16 %v1029, %v1025
    %v1086 = vpack.c.b16 %v1034, %v1030
    %v1087 = vpack.c.b16 %v1035, %v1031
    %v1088 = vpack.c.b16 %v1036, %v1032
    %v1089 = vpack.c.b16 %v1037, %v1033
    %v1090 = vpack.c.b16 %v1042, %v1038
    %v1091 = vpack.c.b16 %v1043, %v1039
    %v1092 = vpack.c.b16 %v1044, %v1040
    %v1093 = vpack.c.b16 %v1045, %v1041
    %v1094 = vpack.c.b16 %v1050, %v1046
    %v1095 = vpack.c.b16 %v1051, %v1047
    %v1096 = vpack.c.b16 %v1052, %v1048
    %v1097 = vpack.c.b16 %v1053, %v1049
    %v1098 = vpack.c.b16 %v1058, %v1054
    %v1099 = vpack.c.b16 %v1059, %v1055
    %v1100 = vpack.c.b16 %v1060, %v1056
    %v1101 = vpack.c.b16 %v1061, %v1057
    %v1102 = vpack.c.b16 %v1066, %v1062
    %v1103 = vpack.c.b16 %v1067, %v1063
    %v1104 = vpack.c.b16 %v1068, %v1064
    %v1105 = vpack.c.b16 %v1069, %v1065
    %v1106 = vpack.c.b16 %v1074, %v1070
    %v1107 = vpack.c.b16 %v1075, %v1071
    %v1108 = vpack.c.b16 %v1076, %v1072
    %v1109 = vpack.c.b16 %v1077, %v1073
    %1142 = vmatpush.bf16.msra.mxu0 %v1106
    %1143 = vmatpush.bf16.msra.mxu0 %v1102
    %1144 = vmatpush.bf16.msra.mxu0 %v1098
    %1145 = vmatpush.bf16.msra.mxu0 %v1094
    %1146 = vmatpush.bf16.msra.mxu0 %v1090
    %1147 = vmatpush.bf16.msra.mxu0 %v1086
    %1148 = vmatpush.bf16.msra.mxu0 %v1082
    %1149 = vmatpush.bf16.msra.mxu0 %v1078
    %1150 = vmatmul.bf16.gmra.mxu0 0
    %v1151 = vpop.f32.mrf.mxu0
    %v1152 = vadd.f32 0.0, %v1151
    %v1153 = vpop.f32.mrf.mxu0
    %1154 = vdwg.mxu0
    %1155 = vmatpush.bf16.msra.mxu0 %v1107
    %1156 = vmatpush.bf16.msra.mxu0 %v1103
    %1157 = vmatpush.bf16.msra.mxu0 %v1099
    %1158 = vmatpush.bf16.msra.mxu0 %v1095
    %1159 = vmatpush.bf16.msra.mxu0 %v1091
    %1160 = vmatpush.bf16.msra.mxu0 %v1087
    %1161 = vmatpush.bf16.msra.mxu0 %v1083
    %1162 = vmatpush.bf16.msra.mxu0 %v1079
    %1163 = vmatmul.bf16.gmra.mxu0 0
    %v1164 = vpop.f32.mrf.mxu0
    %v1165 = vadd.f32 0.0, %v1164
    %v1166 = vpop.f32.mrf.mxu0
    %1167 = vdwg.mxu0
    %1168 = vmatpush.bf16.msra.mxu0 %v1108
    %1169 = vmatpush.bf16.msra.mxu0 %v1104
    %1170 = vmatpush.bf16.msra.mxu0 %v1100
    %1171 = vmatpush.bf16.msra.mxu0 %v1096
    %1172 = vmatpush.bf16.msra.mxu0 %v1092
    %1173 = vmatpush.bf16.msra.mxu0 %v1088
    %1174 = vmatpush.bf16.msra.mxu0 %v1084
    %1175 = vmatpush.bf16.msra.mxu0 %v1080
    %1176 = vmatmul.bf16.gmra.mxu0 0
    %v1177 = vpop.f32.mrf.mxu0
    %v1178 = vadd.f32 0.0, %v1177
    %v1179 = vpop.f32.mrf.mxu0
    %1180 = vdwg.mxu0
    %1181 = vmatpush.bf16.msra.mxu0 %v1109
    %1182 = vmatpush.bf16.msra.mxu0 %v1105
    %1183 = vmatpush.bf16.msra.mxu0 %v1101
    %1184 = vmatpush.bf16.msra.mxu0 %v1097
    %1185 = vmatpush.bf16.msra.mxu0 %v1093
    %1186 = vmatpush.bf16.msra.mxu0 %v1089
    %1187 = vmatpush.bf16.msra.mxu0 %v1085
    %1188 = vmatpush.bf16.msra.mxu0 %v1081
    %1189 = vmatmul.bf16.gmra.mxu0 0
    %v1190 = vpop.f32.mrf.mxu0
    %v1191 = vadd.f32 0.0, %v1190
    %v1192 = vpop.f32.mrf.mxu0
    %1193 = vdwg.mxu0
    %v1194 = vld [vmem:[#allocation2 + $0x20] sm:$0xff]
    %v1195 = vld [vmem:[#allocation2 + $0x28] sm:$0xff]
    %v1196 = vld [vmem:[#allocation2 + $0x30] sm:$0xff]
    %v1197 = vld [vmem:[#allocation2 + $0x38] sm:$0xff]
    %v1198 = vadd.f32 %v1194, %v856
    %v1199 = vadd.f32 %v1195, %v869
    %v1200 = vadd.f32 %v1196, %v882
    %v1201 = vadd.f32 %v1197, %v895
    %v1203 = vperm.slane %v393, 0
    %v1204 = vperm.slane %v393, 1
    %v1205 = vperm.slane %v393, 2
    %v1206 = vperm.slane %v393, 3
    %v1211 = vadd.f32 %v908, %v1203
    %v1212 = vadd.f32 %v921, %v1204
    %v1213 = vadd.f32 %v934, %v1205
    %v1214 = vadd.f32 %v947, %v1206
    %v1215 = vadd.f32 %v1211, %v1152
    %v1216 = vadd.f32 %v1212, %v1165
    %v1217 = vadd.f32 %v1213, %v1178
    %v1218 = vadd.f32 %v1214, %v1191
    %v1219 = vxor.u32 %v1198, 2147483648
    %v1220 = vxor.u32 %v1199, 2147483648
    %v1221 = vxor.u32 %v1200, 2147483648
    %v1222 = vmul.f32 %v1219, 1.442695
    %v1223 = vpow.pop %v1222
    %v1224 = vmul.f32 %v1220, 1.442695
    %v1225 = vpow.pop %v1224
    %v1226 = vmul.f32 %v1221, 1.442695
    %v1227 = vpow.pop %v1226
    %v1228 = vadd.f32 %v1223, 1.0
    %v1229 = vadd.f32 %v1225, 1.0
    %v1230 = vadd.f32 %v1227, 1.0
    %v1231 = vrcp.pop %v1228
    %v1232 = vmul.f32 %v1228, %v1231
    %v1233 = vsub.f32 1.0, %v1232
    %v1234 = vmul.f32 %v1231, %v1233
    %v1235 = vadd.f32 %v1231, %v1234
    %vm1236 = vweird.f32 %v1228
    %vm1237 = vweird.f32 %v1231
    %vm1238 = vmor %vm1236, %vm1237
    %v1239 = vsel %vm1238, %v1231, %v1235
    %v1240 = vand.u32 2147483647, %v1228
    %vm1241 = vcmp.eq.f32.partialorder %v1240, 8.507059e+37
    %v1242 = vand.u32 %v1228, 2147483648
    %v1243 = vor.u32 1.1754944e-38, %v1242
    %v1244 = vsel %vm1241, %v1243, %v1239
    %v1245 = vmul.f32 1.0, %v1244
    %v1246 = vrcp.pop %v1229
    %v1247 = vmul.f32 %v1229, %v1246
    %v1248 = vsub.f32 1.0, %v1247
    %v1249 = vmul.f32 %v1246, %v1248
    %v1250 = vadd.f32 %v1246, %v1249
    %vm1251 = vweird.f32 %v1229
    %vm1252 = vweird.f32 %v1246
    %vm1253 = vmor %vm1251, %vm1252
    %v1254 = vsel %vm1253, %v1246, %v1250
    %v1255 = vand.u32 2147483647, %v1229
    %vm1256 = vcmp.eq.f32.partialorder %v1255, 8.507059e+37
    %v1257 = vand.u32 %v1229, 2147483648
    %v1258 = vor.u32 1.1754944e-38, %v1257
    %v1259 = vsel %vm1256, %v1258, %v1254
    %v1260 = vmul.f32 1.0, %v1259
    %v1261 = vrcp.pop %v1230
    %v1262 = vmul.f32 %v1230, %v1261
    %v1263 = vsub.f32 1.0, %v1262
    %v1264 = vmul.f32 %v1261, %v1263
    %v1265 = vadd.f32 %v1261, %v1264
    %vm1266 = vweird.f32 %v1230
    %vm1267 = vweird.f32 %v1261
    %vm1268 = vmor %vm1266, %vm1267
    %v1269 = vsel %vm1268, %v1261, %v1265
    %v1270 = vand.u32 2147483647, %v1230
    %vm1271 = vcmp.eq.f32.partialorder %v1270, 8.507059e+37
    %v1272 = vand.u32 %v1230, 2147483648
    %v1273 = vor.u32 1.1754944e-38, %v1272
    %v1274 = vsel %vm1271, %v1273, %v1269
    %v1275 = vmul.f32 1.0, %v1274
    %v1276 = vtanh.pop %v1201
    %v1277 = vmul.f32 %v1260, %v458
    %v1278 = vmul.f32 %v1245, %v1276
    %v1279 = vadd.f32 %v1277, %v1278
    %v1280 = vtanh.pop %v1279
    %v1281 = vmul.f32 %v1275, %v1280
    %v1282 = vxor.u32 %v1215, 2147483648
    %v1283 = vxor.u32 %v1216, 2147483648
    %v1284 = vxor.u32 %v1217, 2147483648
    %v1285 = vmul.f32 %v1282, 1.442695
    %v1286 = vpow.pop %v1285
    %v1287 = vmul.f32 %v1283, 1.442695
    %v1288 = vpow.pop %v1287
    %v1289 = vmul.f32 %v1284, 1.442695
    %v1290 = vpow.pop %v1289
    %v1291 = vadd.f32 %v1286, 1.0
    %v1292 = vadd.f32 %v1288, 1.0
    %v1293 = vadd.f32 %v1290, 1.0
    %v1294 = vrcp.pop %v1291
    %v1295 = vmul.f32 %v1291, %v1294
    %v1296 = vsub.f32 1.0, %v1295
    %v1297 = vmul.f32 %v1294, %v1296
    %v1298 = vadd.f32 %v1294, %v1297
    %vm1299 = vweird.f32 %v1291
    %vm1300 = vweird.f32 %v1294
    %vm1301 = vmor %vm1299, %vm1300
    %v1302 = vsel %vm1301, %v1294, %v1298
    %v1303 = vand.u32 2147483647, %v1291
    %vm1304 = vcmp.eq.f32.partialorder %v1303, 8.507059e+37
    %v1305 = vand.u32 %v1291, 2147483648
    %v1306 = vor.u32 1.1754944e-38, %v1305
    %v1307 = vsel %vm1304, %v1306, %v1302
    %v1308 = vmul.f32 1.0, %v1307
    %v1309 = vrcp.pop %v1292
    %v1310 = vmul.f32 %v1292, %v1309
    %v1311 = vsub.f32 1.0, %v1310
    %v1312 = vmul.f32 %v1309, %v1311
    %v1313 = vadd.f32 %v1309, %v1312
    %vm1314 = vweird.f32 %v1292
    %vm1315 = vweird.f32 %v1309
    %vm1316 = vmor %vm1314, %vm1315
    %v1317 = vsel %vm1316, %v1309, %v1313
    %v1318 = vand.u32 2147483647, %v1292
    %vm1319 = vcmp.eq.f32.partialorder %v1318, 8.507059e+37
    %v1320 = vand.u32 %v1292, 2147483648
    %v1321 = vor.u32 1.1754944e-38, %v1320
    %v1322 = vsel %vm1319, %v1321, %v1317
    %v1323 = vmul.f32 1.0, %v1322
    %v1324 = vrcp.pop %v1293
    %v1325 = vmul.f32 %v1293, %v1324
    %v1326 = vsub.f32 1.0, %v1325
    %v1327 = vmul.f32 %v1324, %v1326
    %v1328 = vadd.f32 %v1324, %v1327
    %vm1329 = vweird.f32 %v1293
    %vm1330 = vweird.f32 %v1324
    %vm1331 = vmor %vm1329, %vm1330
    %v1332 = vsel %vm1331, %v1324, %v1328
    %v1333 = vand.u32 2147483647, %v1293
    %vm1334 = vcmp.eq.f32.partialorder %v1333, 8.507059e+37
    %v1335 = vand.u32 %v1293, 2147483648
    %v1336 = vor.u32 1.1754944e-38, %v1335
    %v1337 = vsel %vm1334, %v1336, %v1332
    %v1338 = vmul.f32 1.0, %v1337
    %v1339 = vtanh.pop %v1218
    %v1340 = vmul.f32 %v1323, 0.0
    %v1341 = vmul.f32 %v1308, %v1339
    %v1342 = vadd.f32 %v1340, %v1341
    %v1343 = vtanh.pop %v1342
    %v1344 = vmul.f32 %v1338, %v1343
    %v1345 = vpack.c.bf16 %v1281, %v1281
    %1346 = vmatpush.bf16.msra.mxu0 %v774
    %1347 = vmatpush.bf16.msra.mxu0 %v766
    %1348 = vmatpush.bf16.msra.mxu0 %v758
    %1349 = vmatpush.bf16.msra.mxu0 %v750
    %1350 = vmatpush.bf16.msra.mxu0 %v742
    %1351 = vmatpush.bf16.msra.mxu0 %v734
    %1352 = vmatpush.bf16.msra.mxu0 %v726
    %1353 = vmatpush.bf16.msra.mxu0 %v718
    %1354 = vmatmul.bf16.gmra.mxu0 %v1345
    %v1355 = vpop.f32.mrf.mxu0
    %v1356 = vadd.f32 0.0, %v1355
    %v1357 = vpop.f32.mrf.mxu0
    %1358 = vdwg.mxu0
    %1359 = vmatpush.bf16.msra.mxu0 %v775
    %1360 = vmatpush.bf16.msra.mxu0 %v767
    %1361 = vmatpush.bf16.msra.mxu0 %v759
    %1362 = vmatpush.bf16.msra.mxu0 %v751
    %1363 = vmatpush.bf16.msra.mxu0 %v743
    %1364 = vmatpush.bf16.msra.mxu0 %v735
    %1365 = vmatpush.bf16.msra.mxu0 %v727
    %1366 = vmatpush.bf16.msra.mxu0 %v719
    %1367 = vmatmul.bf16.gmra.mxu0 %v1345
    %v1368 = vpop.f32.mrf.mxu0
    %v1369 = vadd.f32 0.0, %v1368
    %v1370 = vpop.f32.mrf.mxu0
    %1371 = vdwg.mxu0
    %1372 = vmatpush.bf16.msra.mxu0 %v776
    %1373 = vmatpush.bf16.msra.mxu0 %v768
    %1374 = vmatpush.bf16.msra.mxu0 %v760
    %1375 = vmatpush.bf16.msra.mxu0 %v752
    %1376 = vmatpush.bf16.msra.mxu0 %v744
    %1377 = vmatpush.bf16.msra.mxu0 %v736
    %1378 = vmatpush.bf16.msra.mxu0 %v728
    %1379 = vmatpush.bf16.msra.mxu0 %v720
    %1380 = vmatmul.bf16.gmra.mxu0 %v1345
    %v1381 = vpop.f32.mrf.mxu0
    %v1382 = vadd.f32 0.0, %v1381
    %v1383 = vpop.f32.mrf.mxu0
    %1384 = vdwg.mxu0
    %1385 = vmatpush.bf16.msra.mxu0 %v777
    %1386 = vmatpush.bf16.msra.mxu0 %v769
    %1387 = vmatpush.bf16.msra.mxu0 %v761
    %1388 = vmatpush.bf16.msra.mxu0 %v753
    %1389 = vmatpush.bf16.msra.mxu0 %v745
    %1390 = vmatpush.bf16.msra.mxu0 %v737
    %1391 = vmatpush.bf16.msra.mxu0 %v729
    %1392 = vmatpush.bf16.msra.mxu0 %v721
    %1393 = vmatmul.bf16.gmra.mxu0 %v1345
    %v1394 = vpop.f32.mrf.mxu0
    %v1395 = vadd.f32 0.0, %v1394
    %v1396 = vpop.f32.mrf.mxu0
    %1397 = vdwg.mxu0
    %1398 = vmatpush.bf16.msra.mxu0 %v778
    %1399 = vmatpush.bf16.msra.mxu0 %v770
    %1400 = vmatpush.bf16.msra.mxu0 %v762
    %1401 = vmatpush.bf16.msra.mxu0 %v754
    %1402 = vmatpush.bf16.msra.mxu0 %v746
    %1403 = vmatpush.bf16.msra.mxu0 %v738
    %1404 = vmatpush.bf16.msra.mxu0 %v730
    %1405 = vmatpush.bf16.msra.mxu0 %v722
    %1406 = vmatmul.bf16.gmra.mxu0 %v1345
    %v1407 = vpop.f32.mrf.mxu0
    %v1408 = vadd.f32 0.0, %v1407
    %v1409 = vpop.f32.mrf.mxu0
    %1410 = vdwg.mxu0
    %1411 = vmatpush.bf16.msra.mxu0 %v779
    %1412 = vmatpush.bf16.msra.mxu0 %v771
    %1413 = vmatpush.bf16.msra.mxu0 %v763
    %1414 = vmatpush.bf16.msra.mxu0 %v755
    %1415 = vmatpush.bf16.msra.mxu0 %v747
    %1416 = vmatpush.bf16.msra.mxu0 %v739
    %1417 = vmatpush.bf16.msra.mxu0 %v731
    %1418 = vmatpush.bf16.msra.mxu0 %v723
    %1419 = vmatmul.bf16.gmra.mxu0 %v1345
    %v1420 = vpop.f32.mrf.mxu0
    %v1421 = vadd.f32 0.0, %v1420
    %v1422 = vpop.f32.mrf.mxu0
    %1423 = vdwg.mxu0
    %1424 = vmatpush.bf16.msra.mxu0 %v780
    %1425 = vmatpush.bf16.msra.mxu0 %v772
    %1426 = vmatpush.bf16.msra.mxu0 %v764
    %1427 = vmatpush.bf16.msra.mxu0 %v756
    %1428 = vmatpush.bf16.msra.mxu0 %v748
    %1429 = vmatpush.bf16.msra.mxu0 %v740
    %1430 = vmatpush.bf16.msra.mxu0 %v732
    %1431 = vmatpush.bf16.msra.mxu0 %v724
    %1432 = vmatmul.bf16.gmra.mxu0 %v1345
    %v1433 = vpop.f32.mrf.mxu0
    %v1434 = vadd.f32 0.0, %v1433
    %v1435 = vpop.f32.mrf.mxu0
    %1436 = vdwg.mxu0
    %1437 = vmatpush.bf16.msra.mxu0 %v781
    %1438 = vmatpush.bf16.msra.mxu0 %v773
    %1439 = vmatpush.bf16.msra.mxu0 %v765
    %1440 = vmatpush.bf16.msra.mxu0 %v757
    %1441 = vmatpush.bf16.msra.mxu0 %v749
    %1442 = vmatpush.bf16.msra.mxu0 %v741
    %1443 = vmatpush.bf16.msra.mxu0 %v733
    %1444 = vmatpush.bf16.msra.mxu0 %v725
    %1445 = vmatmul.bf16.gmra.mxu0 %v1345
    %v1446 = vpop.f32.mrf.mxu0
    %v1447 = vadd.f32 0.0, %v1446
    %v1448 = vpop.f32.mrf.mxu0
    %1449 = vdwg.mxu0
    %v1450 = vpack.c.bf16 %v1344, %v1344
    %1451 = vmatpush.bf16.msra.mxu0 %v1106
    %1452 = vmatpush.bf16.msra.mxu0 %v1102
    %1453 = vmatpush.bf16.msra.mxu0 %v1098
    %1454 = vmatpush.bf16.msra.mxu0 %v1094
    %1455 = vmatpush.bf16.msra.mxu0 %v1090
    %1456 = vmatpush.bf16.msra.mxu0 %v1086
    %1457 = vmatpush.bf16.msra.mxu0 %v1082
    %1458 = vmatpush.bf16.msra.mxu0 %v1078
    %1459 = vmatmul.bf16.gmra.mxu0 %v1450
    %v1460 = vpop.f32.mrf.mxu0
    %v1461 = vadd.f32 0.0, %v1460
    %v1462 = vpop.f32.mrf.mxu0
    %1463 = vdwg.mxu0
    %1464 = vmatpush.bf16.msra.mxu0 %v1107
    %1465 = vmatpush.bf16.msra.mxu0 %v1103
    %1466 = vmatpush.bf16.msra.mxu0 %v1099
    %1467 = vmatpush.bf16.msra.mxu0 %v1095
    %1468 = vmatpush.bf16.msra.mxu0 %v1091
    %1469 = vmatpush.bf16.msra.mxu0 %v1087
    %1470 = vmatpush.bf16.msra.mxu0 %v1083
    %1471 = vmatpush.bf16.msra.mxu0 %v1079
    %1472 = vmatmul.bf16.gmra.mxu0 %v1450
    %v1473 = vpop.f32.mrf.mxu0
    %v1474 = vadd.f32 0.0, %v1473
    %v1475 = vpop.f32.mrf.mxu0
    %1476 = vdwg.mxu0
    %1477 = vmatpush.bf16.msra.mxu0 %v1108
    %1478 = vmatpush.bf16.msra.mxu0 %v1104
    %1479 = vmatpush.bf16.msra.mxu0 %v1100
    %1480 = vmatpush.bf16.msra.mxu0 %v1096
    %1481 = vmatpush.bf16.msra.mxu0 %v1092
    %1482 = vmatpush.bf16.msra.mxu0 %v1088
    %1483 = vmatpush.bf16.msra.mxu0 %v1084
    %1484 = vmatpush.bf16.msra.mxu0 %v1080
    %1485 = vmatmul.bf16.gmra.mxu0 %v1450
    %v1486 = vpop.f32.mrf.mxu0
    %v1487 = vadd.f32 0.0, %v1486
    %v1488 = vpop.f32.mrf.mxu0
    %1489 = vdwg.mxu0
    %1490 = vmatpush.bf16.msra.mxu0 %v1109
    %1491 = vmatpush.bf16.msra.mxu0 %v1105
    %1492 = vmatpush.bf16.msra.mxu0 %v1101
    %1493 = vmatpush.bf16.msra.mxu0 %v1097
    %1494 = vmatpush.bf16.msra.mxu0 %v1093
    %1495 = vmatpush.bf16.msra.mxu0 %v1089
    %1496 = vmatpush.bf16.msra.mxu0 %v1085
    %1497 = vmatpush.bf16.msra.mxu0 %v1081
    %1498 = vmatmul.bf16.gmra.mxu0 %v1450
    %v1499 = vpop.f32.mrf.mxu0
    %v1500 = vadd.f32 0.0, %v1499
    %v1501 = vpop.f32.mrf.mxu0
    %1502 = vdwg.mxu0
    %v1503 = vld [vmem:[#allocation2 + $0x40] sm:$0xff]
    %v1504 = vld [vmem:[#allocation2 + $0x48] sm:$0xff]
    %v1505 = vld [vmem:[#allocation2 + $0x50] sm:$0xff]
    %v1506 = vld [vmem:[#allocation2 + $0x58] sm:$0xff]
    %v1507 = vadd.f32 %v1503, %v1356
    %v1508 = vadd.f32 %v1504, %v1369
    %v1509 = vadd.f32 %v1505, %v1382
    %v1510 = vadd.f32 %v1506, %v1395
    %v1511 = vadd.f32 %v1408, %v1203
    %v1512 = vadd.f32 %v1421, %v1204
    %v1513 = vadd.f32 %v1434, %v1205
    %v1514 = vadd.f32 %v1447, %v1206
    %v1515 = vadd.f32 %v1511, %v1461
    %v1516 = vadd.f32 %v1512, %v1474
    %v1517 = vadd.f32 %v1513, %v1487
    %v1518 = vadd.f32 %v1514, %v1500
    %v1519 = vxor.u32 %v1507, 2147483648
    %v1520 = vxor.u32 %v1508, 2147483648
    %v1521 = vxor.u32 %v1509, 2147483648
    %v1522 = vmul.f32 %v1519, 1.442695
    %v1523 = vpow.pop %v1522
    %v1524 = vmul.f32 %v1520, 1.442695
    %v1525 = vpow.pop %v1524
    %v1526 = vmul.f32 %v1521, 1.442695
    %v1527 = vpow.pop %v1526
    %v1528 = vadd.f32 %v1523, 1.0
    %v1529 = vadd.f32 %v1525, 1.0
    %v1530 = vadd.f32 %v1527, 1.0
    %v1531 = vrcp.pop %v1528
    %v1532 = vmul.f32 %v1528, %v1531
    %v1533 = vsub.f32 1.0, %v1532
    %v1534 = vmul.f32 %v1531, %v1533
    %v1535 = vadd.f32 %v1531, %v1534
    %vm1536 = vweird.f32 %v1528
    %vm1537 = vweird.f32 %v1531
    %vm1538 = vmor %vm1536, %vm1537
    %v1539 = vsel %vm1538, %v1531, %v1535
    %v1540 = vand.u32 2147483647, %v1528
    %vm1541 = vcmp.eq.f32.partialorder %v1540, 8.507059e+37
    %v1542 = vand.u32 %v1528, 2147483648
    %v1543 = vor.u32 1.1754944e-38, %v1542
    %v1544 = vsel %vm1541, %v1543, %v1539
    %v1545 = vmul.f32 1.0, %v1544
    %v1546 = vrcp.pop %v1529
    %v1547 = vmul.f32 %v1529, %v1546
    %v1548 = vsub.f32 1.0, %v1547
    %v1549 = vmul.f32 %v1546, %v1548
    %v1550 = vadd.f32 %v1546, %v1549
    %vm1551 = vweird.f32 %v1529
    %vm1552 = vweird.f32 %v1546
    %vm1553 = vmor %vm1551, %vm1552
    %v1554 = vsel %vm1553, %v1546, %v1550
    %v1555 = vand.u32 2147483647, %v1529
    %vm1556 = vcmp.eq.f32.partialorder %v1555, 8.507059e+37
    %v1557 = vand.u32 %v1529, 2147483648
    %v1558 = vor.u32 1.1754944e-38, %v1557
    %v1559 = vsel %vm1556, %v1558, %v1554
    %v1560 = vmul.f32 1.0, %v1559
    %v1561 = vrcp.pop %v1530
    %v1562 = vmul.f32 %v1530, %v1561
    %v1563 = vsub.f32 1.0, %v1562
    %v1564 = vmul.f32 %v1561, %v1563
    %v1565 = vadd.f32 %v1561, %v1564
    %vm1566 = vweird.f32 %v1530
    %vm1567 = vweird.f32 %v1561
    %vm1568 = vmor %vm1566, %vm1567
    %v1569 = vsel %vm1568, %v1561, %v1565
    %v1570 = vand.u32 2147483647, %v1530
    %vm1571 = vcmp.eq.f32.partialorder %v1570, 8.507059e+37
    %v1572 = vand.u32 %v1530, 2147483648
    %v1573 = vor.u32 1.1754944e-38, %v1572
    %v1574 = vsel %vm1571, %v1573, %v1569
    %v1575 = vmul.f32 1.0, %v1574
    %v1576 = vtanh.pop %v1510
    %v1577 = vmul.f32 %v1560, %v1279
    %v1578 = vmul.f32 %v1545, %v1576
    %v1579 = vadd.f32 %v1577, %v1578
    %v1580 = vtanh.pop %v1579
    %v1581 = vmul.f32 %v1575, %v1580
    %v1582 = vxor.u32 %v1515, 2147483648
    %v1583 = vxor.u32 %v1516, 2147483648
    %v1584 = vxor.u32 %v1517, 2147483648
    %v1585 = vmul.f32 %v1582, 1.442695
    %v1586 = vpow.pop %v1585
    %v1587 = vmul.f32 %v1583, 1.442695
    %v1588 = vpow.pop %v1587
    %v1589 = vmul.f32 %v1584, 1.442695
    %v1590 = vpow.pop %v1589
    %v1591 = vadd.f32 %v1586, 1.0
    %v1592 = vadd.f32 %v1588, 1.0
    %v1593 = vadd.f32 %v1590, 1.0
    %v1594 = vrcp.pop %v1591
    %v1595 = vmul.f32 %v1591, %v1594
    %v1596 = vsub.f32 1.0, %v1595
    %v1597 = vmul.f32 %v1594, %v1596
    %v1598 = vadd.f32 %v1594, %v1597
    %vm1599 = vweird.f32 %v1591
    %vm1600 = vweird.f32 %v1594
    %vm1601 = vmor %vm1599, %vm1600
    %v1602 = vsel %vm1601, %v1594, %v1598
    %v1603 = vand.u32 2147483647, %v1591
    %vm1604 = vcmp.eq.f32.partialorder %v1603, 8.507059e+37
    %v1605 = vand.u32 %v1591, 2147483648
    %v1606 = vor.u32 1.1754944e-38, %v1605
    %v1607 = vsel %vm1604, %v1606, %v1602
    %v1608 = vmul.f32 1.0, %v1607
    %v1609 = vrcp.pop %v1592
    %v1610 = vmul.f32 %v1592, %v1609
    %v1611 = vsub.f32 1.0, %v1610
    %v1612 = vmul.f32 %v1609, %v1611
    %v1613 = vadd.f32 %v1609, %v1612
    %vm1614 = vweird.f32 %v1592
    %vm1615 = vweird.f32 %v1609
    %vm1616 = vmor %vm1614, %vm1615
    %v1617 = vsel %vm1616, %v1609, %v1613
    %v1618 = vand.u32 2147483647, %v1592
    %vm1619 = vcmp.eq.f32.partialorder %v1618, 8.507059e+37
    %v1620 = vand.u32 %v1592, 2147483648
    %v1621 = vor.u32 1.1754944e-38, %v1620
    %v1622 = vsel %vm1619, %v1621, %v1617
    %v1623 = vmul.f32 1.0, %v1622
    %v1624 = vrcp.pop %v1593
    %v1625 = vmul.f32 %v1593, %v1624
    %v1626 = vsub.f32 1.0, %v1625
    %v1627 = vmul.f32 %v1624, %v1626
    %v1628 = vadd.f32 %v1624, %v1627
    %vm1629 = vweird.f32 %v1593
    %vm1630 = vweird.f32 %v1624
    %vm1631 = vmor %vm1629, %vm1630
    %v1632 = vsel %vm1631, %v1624, %v1628
    %v1633 = vand.u32 2147483647, %v1593
    %vm1634 = vcmp.eq.f32.partialorder %v1633, 8.507059e+37
    %v1635 = vand.u32 %v1593, 2147483648
    %v1636 = vor.u32 1.1754944e-38, %v1635
    %v1637 = vsel %vm1634, %v1636, %v1632
    %v1638 = vmul.f32 1.0, %v1637
    %v1639 = vtanh.pop %v1518
    %v1640 = vmul.f32 %v1623, %v1342
    %v1641 = vmul.f32 %v1608, %v1639
    %v1642 = vadd.f32 %v1640, %v1641
    %v1643 = vtanh.pop %v1642
    %v1644 = vmul.f32 %v1638, %v1643
    %v1645 = vpack.c.bf16 %v1581, %v1581
    %1646 = vmatpush.bf16.msra.mxu0 %v774
    %1647 = vmatpush.bf16.msra.mxu0 %v766
    %1648 = vmatpush.bf16.msra.mxu0 %v758
    %1649 = vmatpush.bf16.msra.mxu0 %v750
    %1650 = vmatpush.bf16.msra.mxu0 %v742
    %1651 = vmatpush.bf16.msra.mxu0 %v734
    %1652 = vmatpush.bf16.msra.mxu0 %v726
    %1653 = vmatpush.bf16.msra.mxu0 %v718
    %1654 = vmatmul.bf16.gmra.mxu0 %v1645
    %v1655 = vpop.f32.mrf.mxu0
    %v1656 = vadd.f32 0.0, %v1655
    %v1657 = vpop.f32.mrf.mxu0
    %1658 = vdwg.mxu0
    %1659 = vmatpush.bf16.msra.mxu0 %v775
    %1660 = vmatpush.bf16.msra.mxu0 %v767
    %1661 = vmatpush.bf16.msra.mxu0 %v759
    %1662 = vmatpush.bf16.msra.mxu0 %v751
    %1663 = vmatpush.bf16.msra.mxu0 %v743
    %1664 = vmatpush.bf16.msra.mxu0 %v735
    %1665 = vmatpush.bf16.msra.mxu0 %v727
    %1666 = vmatpush.bf16.msra.mxu0 %v719
    %1667 = vmatmul.bf16.gmra.mxu0 %v1645
    %v1668 = vpop.f32.mrf.mxu0
    %v1669 = vadd.f32 0.0, %v1668
    %v1670 = vpop.f32.mrf.mxu0
    %1671 = vdwg.mxu0
    %1672 = vmatpush.bf16.msra.mxu0 %v776
    %1673 = vmatpush.bf16.msra.mxu0 %v768
    %1674 = vmatpush.bf16.msra.mxu0 %v760
    %1675 = vmatpush.bf16.msra.mxu0 %v752
    %1676 = vmatpush.bf16.msra.mxu0 %v744
    %1677 = vmatpush.bf16.msra.mxu0 %v736
    %1678 = vmatpush.bf16.msra.mxu0 %v728
    %1679 = vmatpush.bf16.msra.mxu0 %v720
    %1680 = vmatmul.bf16.gmra.mxu0 %v1645
    %v1681 = vpop.f32.mrf.mxu0
    %v1682 = vadd.f32 0.0, %v1681
    %v1683 = vpop.f32.mrf.mxu0
    %1684 = vdwg.mxu0
    %1685 = vmatpush.bf16.msra.mxu0 %v777
    %1686 = vmatpush.bf16.msra.mxu0 %v769
    %1687 = vmatpush.bf16.msra.mxu0 %v761
    %1688 = vmatpush.bf16.msra.mxu0 %v753
    %1689 = vmatpush.bf16.msra.mxu0 %v745
    %1690 = vmatpush.bf16.msra.mxu0 %v737
    %1691 = vmatpush.bf16.msra.mxu0 %v729
    %1692 = vmatpush.bf16.msra.mxu0 %v721
    %1693 = vmatmul.bf16.gmra.mxu0 %v1645
    %v1694 = vpop.f32.mrf.mxu0
    %v1695 = vadd.f32 0.0, %v1694
    %v1696 = vpop.f32.mrf.mxu0
    %1697 = vdwg.mxu0
    %1698 = vmatpush.bf16.msra.mxu0 %v778
    %1699 = vmatpush.bf16.msra.mxu0 %v770
    %1700 = vmatpush.bf16.msra.mxu0 %v762
    %1701 = vmatpush.bf16.msra.mxu0 %v754
    %1702 = vmatpush.bf16.msra.mxu0 %v746
    %1703 = vmatpush.bf16.msra.mxu0 %v738
    %1704 = vmatpush.bf16.msra.mxu0 %v730
    %1705 = vmatpush.bf16.msra.mxu0 %v722
    %1706 = vmatmul.bf16.gmra.mxu0 %v1645
    %v1707 = vpop.f32.mrf.mxu0
    %v1708 = vadd.f32 0.0, %v1707
    %v1709 = vpop.f32.mrf.mxu0
    %1710 = vdwg.mxu0
    %1711 = vmatpush.bf16.msra.mxu0 %v779
    %1712 = vmatpush.bf16.msra.mxu0 %v771
    %1713 = vmatpush.bf16.msra.mxu0 %v763
    %1714 = vmatpush.bf16.msra.mxu0 %v755
    %1715 = vmatpush.bf16.msra.mxu0 %v747
    %1716 = vmatpush.bf16.msra.mxu0 %v739
    %1717 = vmatpush.bf16.msra.mxu0 %v731
    %1718 = vmatpush.bf16.msra.mxu0 %v723
    %1719 = vmatmul.bf16.gmra.mxu0 %v1645
    %v1720 = vpop.f32.mrf.mxu0
    %v1721 = vadd.f32 0.0, %v1720
    %v1722 = vpop.f32.mrf.mxu0
    %1723 = vdwg.mxu0
    %1724 = vmatpush.bf16.msra.mxu0 %v780
    %1725 = vmatpush.bf16.msra.mxu0 %v772
    %1726 = vmatpush.bf16.msra.mxu0 %v764
    %1727 = vmatpush.bf16.msra.mxu0 %v756
    %1728 = vmatpush.bf16.msra.mxu0 %v748
    %1729 = vmatpush.bf16.msra.mxu0 %v740
    %1730 = vmatpush.bf16.msra.mxu0 %v732
    %1731 = vmatpush.bf16.msra.mxu0 %v724
    %1732 = vmatmul.bf16.gmra.mxu0 %v1645
    %v1733 = vpop.f32.mrf.mxu0
    %v1734 = vadd.f32 0.0, %v1733
    %v1735 = vpop.f32.mrf.mxu0
    %1736 = vdwg.mxu0
    %1737 = vmatpush.bf16.msra.mxu0 %v781
    %1738 = vmatpush.bf16.msra.mxu0 %v773
    %1739 = vmatpush.bf16.msra.mxu0 %v765
    %1740 = vmatpush.bf16.msra.mxu0 %v757
    %1741 = vmatpush.bf16.msra.mxu0 %v749
    %1742 = vmatpush.bf16.msra.mxu0 %v741
    %1743 = vmatpush.bf16.msra.mxu0 %v733
    %1744 = vmatpush.bf16.msra.mxu0 %v725
    %1745 = vmatmul.bf16.gmra.mxu0 %v1645
    %v1746 = vpop.f32.mrf.mxu0
    %v1747 = vadd.f32 0.0, %v1746
    %v1748 = vpop.f32.mrf.mxu0
    %1749 = vdwg.mxu0
    %v1750 = vpack.c.bf16 %v1644, %v1644
    %1751 = vmatpush.bf16.msra.mxu0 %v1106
    %1752 = vmatpush.bf16.msra.mxu0 %v1102
    %1753 = vmatpush.bf16.msra.mxu0 %v1098
    %1754 = vmatpush.bf16.msra.mxu0 %v1094
    %1755 = vmatpush.bf16.msra.mxu0 %v1090
    %1756 = vmatpush.bf16.msra.mxu0 %v1086
    %1757 = vmatpush.bf16.msra.mxu0 %v1082
    %1758 = vmatpush.bf16.msra.mxu0 %v1078
    %1759 = vmatmul.bf16.gmra.mxu0 %v1750
    %v1760 = vpop.f32.mrf.mxu0
    %v1761 = vadd.f32 0.0, %v1760
    %v1762 = vpop.f32.mrf.mxu0
    %1763 = vdwg.mxu0
    %1764 = vmatpush.bf16.msra.mxu0 %v1107
    %1765 = vmatpush.bf16.msra.mxu0 %v1103
    %1766 = vmatpush.bf16.msra.mxu0 %v1099
    %1767 = vmatpush.bf16.msra.mxu0 %v1095
    %1768 = vmatpush.bf16.msra.mxu0 %v1091
    %1769 = vmatpush.bf16.msra.mxu0 %v1087
    %1770 = vmatpush.bf16.msra.mxu0 %v1083
    %1771 = vmatpush.bf16.msra.mxu0 %v1079
    %1772 = vmatmul.bf16.gmra.mxu0 %v1750
    %v1773 = vpop.f32.mrf.mxu0
    %v1774 = vadd.f32 0.0, %v1773
    %v1775 = vpop.f32.mrf.mxu0
    %1776 = vdwg.mxu0
    %1777 = vmatpush.bf16.msra.mxu0 %v1108
    %1778 = vmatpush.bf16.msra.mxu0 %v1104
    %1779 = vmatpush.bf16.msra.mxu0 %v1100
    %1780 = vmatpush.bf16.msra.mxu0 %v1096
    %1781 = vmatpush.bf16.msra.mxu0 %v1092
    %1782 = vmatpush.bf16.msra.mxu0 %v1088
    %1783 = vmatpush.bf16.msra.mxu0 %v1084
    %1784 = vmatpush.bf16.msra.mxu0 %v1080
    %1785 = vmatmul.bf16.gmra.mxu0 %v1750
    %v1786 = vpop.f32.mrf.mxu0
    %v1787 = vadd.f32 0.0, %v1786
    %v1788 = vpop.f32.mrf.mxu0
    %1789 = vdwg.mxu0
    %1790 = vmatpush.bf16.msra.mxu0 %v1109
    %1791 = vmatpush.bf16.msra.mxu0 %v1105
    %1792 = vmatpush.bf16.msra.mxu0 %v1101
    %1793 = vmatpush.bf16.msra.mxu0 %v1097
    %1794 = vmatpush.bf16.msra.mxu0 %v1093
    %1795 = vmatpush.bf16.msra.mxu0 %v1089
    %1796 = vmatpush.bf16.msra.mxu0 %v1085
    %1797 = vmatpush.bf16.msra.mxu0 %v1081
    %1798 = vmatmul.bf16.gmra.mxu0 %v1750
    %v1799 = vpop.f32.mrf.mxu0
    %v1800 = vadd.f32 0.0, %v1799
    %v1801 = vpop.f32.mrf.mxu0
    %1802 = vdwg.mxu0
    %v1803 = vld [vmem:[#allocation2 + $0x60] sm:$0xff]
    %v1804 = vld [vmem:[#allocation2 + $0x68] sm:$0xff]
    %v1805 = vld [vmem:[#allocation2 + $0x70] sm:$0xff]
    %v1806 = vld [vmem:[#allocation2 + $0x78] sm:$0xff]
    %v1807 = vadd.f32 %v1803, %v1656
    %v1808 = vadd.f32 %v1804, %v1669
    %v1809 = vadd.f32 %v1805, %v1682
    %v1810 = vadd.f32 %v1806, %v1695
    %v1811 = vadd.f32 %v1708, %v1203
    %v1812 = vadd.f32 %v1721, %v1204
    %v1813 = vadd.f32 %v1734, %v1205
    %v1814 = vadd.f32 %v1747, %v1206
    %v1815 = vadd.f32 %v1811, %v1761
    %v1816 = vadd.f32 %v1812, %v1774
    %v1817 = vadd.f32 %v1813, %v1787
    %v1818 = vadd.f32 %v1814, %v1800
    %v1819 = vxor.u32 %v1807, 2147483648
    %v1820 = vxor.u32 %v1808, 2147483648
    %v1821 = vxor.u32 %v1809, 2147483648
    %v1822 = vmul.f32 %v1819, 1.442695
    %v1823 = vpow.pop %v1822
    %v1824 = vmul.f32 %v1820, 1.442695
    %v1825 = vpow.pop %v1824
    %v1826 = vmul.f32 %v1821, 1.442695
    %v1827 = vpow.pop %v1826
    %v1828 = vadd.f32 %v1823, 1.0
    %v1829 = vadd.f32 %v1825, 1.0
    %v1830 = vadd.f32 %v1827, 1.0
    %v1831 = vrcp.pop %v1828
    %v1832 = vmul.f32 %v1828, %v1831
    %v1833 = vsub.f32 1.0, %v1832
    %v1834 = vmul.f32 %v1831, %v1833
    %v1835 = vadd.f32 %v1831, %v1834
    %vm1836 = vweird.f32 %v1828
    %vm1837 = vweird.f32 %v1831
    %vm1838 = vmor %vm1836, %vm1837
    %v1839 = vsel %vm1838, %v1831, %v1835
    %v1840 = vand.u32 2147483647, %v1828
    %vm1841 = vcmp.eq.f32.partialorder %v1840, 8.507059e+37
    %v1842 = vand.u32 %v1828, 2147483648
    %v1843 = vor.u32 1.1754944e-38, %v1842
    %v1844 = vsel %vm1841, %v1843, %v1839
    %v1845 = vmul.f32 1.0, %v1844
    %v1846 = vrcp.pop %v1829
    %v1847 = vmul.f32 %v1829, %v1846
    %v1848 = vsub.f32 1.0, %v1847
    %v1849 = vmul.f32 %v1846, %v1848
    %v1850 = vadd.f32 %v1846, %v1849
    %vm1851 = vweird.f32 %v1829
    %vm1852 = vweird.f32 %v1846
    %vm1853 = vmor %vm1851, %vm1852
    %v1854 = vsel %vm1853, %v1846, %v1850
    %v1855 = vand.u32 2147483647, %v1829
    %vm1856 = vcmp.eq.f32.partialorder %v1855, 8.507059e+37
    %v1857 = vand.u32 %v1829, 2147483648
    %v1858 = vor.u32 1.1754944e-38, %v1857
    %v1859 = vsel %vm1856, %v1858, %v1854
    %v1860 = vmul.f32 1.0, %v1859
    %v1861 = vrcp.pop %v1830
    %v1862 = vmul.f32 %v1830, %v1861
    %v1863 = vsub.f32 1.0, %v1862
    %v1864 = vmul.f32 %v1861, %v1863
    %v1865 = vadd.f32 %v1861, %v1864
    %vm1866 = vweird.f32 %v1830
    %vm1867 = vweird.f32 %v1861
    %vm1868 = vmor %vm1866, %vm1867
    %v1869 = vsel %vm1868, %v1861, %v1865
    %v1870 = vand.u32 2147483647, %v1830
    %vm1871 = vcmp.eq.f32.partialorder %v1870, 8.507059e+37
    %v1872 = vand.u32 %v1830, 2147483648
    %v1873 = vor.u32 1.1754944e-38, %v1872
    %v1874 = vsel %vm1871, %v1873, %v1869
    %v1875 = vmul.f32 1.0, %v1874
    %v1876 = vtanh.pop %v1810
    %v1877 = vmul.f32 %v1860, %v1579
    %v1878 = vmul.f32 %v1845, %v1876
    %v1879 = vadd.f32 %v1877, %v1878
    %v1880 = vtanh.pop %v1879
    %v1881 = vmul.f32 %v1875, %v1880
    %v1882 = vxor.u32 %v1815, 2147483648
    %v1883 = vxor.u32 %v1816, 2147483648
    %v1884 = vxor.u32 %v1817, 2147483648
    %v1885 = vmul.f32 %v1882, 1.442695
    %v1886 = vpow.pop %v1885
    %v1887 = vmul.f32 %v1883, 1.442695
    %v1888 = vpow.pop %v1887
    %v1889 = vmul.f32 %v1884, 1.442695
    %v1890 = vpow.pop %v1889
    %v1891 = vadd.f32 %v1886, 1.0
    %v1892 = vadd.f32 %v1888, 1.0
    %v1893 = vadd.f32 %v1890, 1.0
    %v1894 = vrcp.pop %v1891
    %v1895 = vmul.f32 %v1891, %v1894
    %v1896 = vsub.f32 1.0, %v1895
    %v1897 = vmul.f32 %v1894, %v1896
    %v1898 = vadd.f32 %v1894, %v1897
    %vm1899 = vweird.f32 %v1891
    %vm1900 = vweird.f32 %v1894
    %vm1901 = vmor %vm1899, %vm1900
    %v1902 = vsel %vm1901, %v1894, %v1898
    %v1903 = vand.u32 2147483647, %v1891
    %vm1904 = vcmp.eq.f32.partialorder %v1903, 8.507059e+37
    %v1905 = vand.u32 %v1891, 2147483648
    %v1906 = vor.u32 1.1754944e-38, %v1905
    %v1907 = vsel %vm1904, %v1906, %v1902
    %v1908 = vmul.f32 1.0, %v1907
    %v1909 = vrcp.pop %v1892
    %v1910 = vmul.f32 %v1892, %v1909
    %v1911 = vsub.f32 1.0, %v1910
    %v1912 = vmul.f32 %v1909, %v1911
    %v1913 = vadd.f32 %v1909, %v1912
    %vm1914 = vweird.f32 %v1892
    %vm1915 = vweird.f32 %v1909
    %vm1916 = vmor %vm1914, %vm1915
    %v1917 = vsel %vm1916, %v1909, %v1913
    %v1918 = vand.u32 2147483647, %v1892
    %vm1919 = vcmp.eq.f32.partialorder %v1918, 8.507059e+37
    %v1920 = vand.u32 %v1892, 2147483648
    %v1921 = vor.u32 1.1754944e-38, %v1920
    %v1922 = vsel %vm1919, %v1921, %v1917
    %v1923 = vmul.f32 1.0, %v1922
    %v1924 = vrcp.pop %v1893
    %v1925 = vmul.f32 %v1893, %v1924
    %v1926 = vsub.f32 1.0, %v1925
    %v1927 = vmul.f32 %v1924, %v1926
    %v1928 = vadd.f32 %v1924, %v1927
    %vm1929 = vweird.f32 %v1893
    %vm1930 = vweird.f32 %v1924
    %vm1931 = vmor %vm1929, %vm1930
    %v1932 = vsel %vm1931, %v1924, %v1928
    %v1933 = vand.u32 2147483647, %v1893
    %vm1934 = vcmp.eq.f32.partialorder %v1933, 8.507059e+37
    %v1935 = vand.u32 %v1893, 2147483648
    %v1936 = vor.u32 1.1754944e-38, %v1935
    %v1937 = vsel %vm1934, %v1936, %v1932
    %v1938 = vmul.f32 1.0, %v1937
    %v1939 = vtanh.pop %v1818
    %v1940 = vmul.f32 %v1923, %v1642
    %v1941 = vmul.f32 %v1908, %v1939
    %v1942 = vadd.f32 %v1940, %v1941
    %v1943 = vtanh.pop %v1942
    %v1944 = vmul.f32 %v1938, %v1943
    %v1945 = vpack.c.bf16 %v1881, %v1881
    %1946 = vmatpush.bf16.msra.mxu0 %v774
    %1947 = vmatpush.bf16.msra.mxu0 %v766
    %1948 = vmatpush.bf16.msra.mxu0 %v758
    %1949 = vmatpush.bf16.msra.mxu0 %v750
    %1950 = vmatpush.bf16.msra.mxu0 %v742
    %1951 = vmatpush.bf16.msra.mxu0 %v734
    %1952 = vmatpush.bf16.msra.mxu0 %v726
    %1953 = vmatpush.bf16.msra.mxu0 %v718
    %1954 = vmatmul.bf16.gmra.mxu0 %v1945
    %v1955 = vpop.f32.mrf.mxu0
    %v1956 = vadd.f32 0.0, %v1955
    %v1957 = vpop.f32.mrf.mxu0
    %1958 = vdwg.mxu0
    %1959 = vmatpush.bf16.msra.mxu0 %v775
    %1960 = vmatpush.bf16.msra.mxu0 %v767
    %1961 = vmatpush.bf16.msra.mxu0 %v759
    %1962 = vmatpush.bf16.msra.mxu0 %v751
    %1963 = vmatpush.bf16.msra.mxu0 %v743
    %1964 = vmatpush.bf16.msra.mxu0 %v735
    %1965 = vmatpush.bf16.msra.mxu0 %v727
    %1966 = vmatpush.bf16.msra.mxu0 %v719
    %1967 = vmatmul.bf16.gmra.mxu0 %v1945
    %v1968 = vpop.f32.mrf.mxu0
    %v1969 = vadd.f32 0.0, %v1968
    %v1970 = vpop.f32.mrf.mxu0
    %1971 = vdwg.mxu0
    %1972 = vmatpush.bf16.msra.mxu0 %v776
    %1973 = vmatpush.bf16.msra.mxu0 %v768
    %1974 = vmatpush.bf16.msra.mxu0 %v760
    %1975 = vmatpush.bf16.msra.mxu0 %v752
    %1976 = vmatpush.bf16.msra.mxu0 %v744
    %1977 = vmatpush.bf16.msra.mxu0 %v736
    %1978 = vmatpush.bf16.msra.mxu0 %v728
    %1979 = vmatpush.bf16.msra.mxu0 %v720
    %1980 = vmatmul.bf16.gmra.mxu0 %v1945
    %v1981 = vpop.f32.mrf.mxu0
    %v1982 = vadd.f32 0.0, %v1981
    %v1983 = vpop.f32.mrf.mxu0
    %1984 = vdwg.mxu0
    %1985 = vmatpush.bf16.msra.mxu0 %v777
    %1986 = vmatpush.bf16.msra.mxu0 %v769
    %1987 = vmatpush.bf16.msra.mxu0 %v761
    %1988 = vmatpush.bf16.msra.mxu0 %v753
    %1989 = vmatpush.bf16.msra.mxu0 %v745
    %1990 = vmatpush.bf16.msra.mxu0 %v737
    %1991 = vmatpush.bf16.msra.mxu0 %v729
    %1992 = vmatpush.bf16.msra.mxu0 %v721
    %1993 = vmatmul.bf16.gmra.mxu0 %v1945
    %v1994 = vpop.f32.mrf.mxu0
    %v1995 = vadd.f32 0.0, %v1994
    %v1996 = vpop.f32.mrf.mxu0
    %1997 = vdwg.mxu0
    %1998 = vmatpush.bf16.msra.mxu0 %v778
    %1999 = vmatpush.bf16.msra.mxu0 %v770
    %2000 = vmatpush.bf16.msra.mxu0 %v762
    %2001 = vmatpush.bf16.msra.mxu0 %v754
    %2002 = vmatpush.bf16.msra.mxu0 %v746
    %2003 = vmatpush.bf16.msra.mxu0 %v738
    %2004 = vmatpush.bf16.msra.mxu0 %v730
    %2005 = vmatpush.bf16.msra.mxu0 %v722
    %2006 = vmatmul.bf16.gmra.mxu0 %v1945
    %v2007 = vpop.f32.mrf.mxu0
    %v2008 = vadd.f32 0.0, %v2007
    %v2009 = vpop.f32.mrf.mxu0
    %2010 = vdwg.mxu0
    %2011 = vmatpush.bf16.msra.mxu0 %v779
    %2012 = vmatpush.bf16.msra.mxu0 %v771
    %2013 = vmatpush.bf16.msra.mxu0 %v763
    %2014 = vmatpush.bf16.msra.mxu0 %v755
    %2015 = vmatpush.bf16.msra.mxu0 %v747
    %2016 = vmatpush.bf16.msra.mxu0 %v739
    %2017 = vmatpush.bf16.msra.mxu0 %v731
    %2018 = vmatpush.bf16.msra.mxu0 %v723
    %2019 = vmatmul.bf16.gmra.mxu0 %v1945
    %v2020 = vpop.f32.mrf.mxu0
    %v2021 = vadd.f32 0.0, %v2020
    %v2022 = vpop.f32.mrf.mxu0
    %2023 = vdwg.mxu0
    %2024 = vmatpush.bf16.msra.mxu0 %v780
    %2025 = vmatpush.bf16.msra.mxu0 %v772
    %2026 = vmatpush.bf16.msra.mxu0 %v764
    %2027 = vmatpush.bf16.msra.mxu0 %v756
    %2028 = vmatpush.bf16.msra.mxu0 %v748
    %2029 = vmatpush.bf16.msra.mxu0 %v740
    %2030 = vmatpush.bf16.msra.mxu0 %v732
    %2031 = vmatpush.bf16.msra.mxu0 %v724
    %2032 = vmatmul.bf16.gmra.mxu0 %v1945
    %v2033 = vpop.f32.mrf.mxu0
    %v2034 = vadd.f32 0.0, %v2033
    %v2035 = vpop.f32.mrf.mxu0
    %2036 = vdwg.mxu0
    %2037 = vmatpush.bf16.msra.mxu0 %v781
    %2038 = vmatpush.bf16.msra.mxu0 %v773
    %2039 = vmatpush.bf16.msra.mxu0 %v765
    %2040 = vmatpush.bf16.msra.mxu0 %v757
    %2041 = vmatpush.bf16.msra.mxu0 %v749
    %2042 = vmatpush.bf16.msra.mxu0 %v741
    %2043 = vmatpush.bf16.msra.mxu0 %v733
    %2044 = vmatpush.bf16.msra.mxu0 %v725
    %2045 = vmatmul.bf16.gmra.mxu0 %v1945
    %v2046 = vpop.f32.mrf.mxu0
    %v2047 = vadd.f32 0.0, %v2046
    %v2048 = vpop.f32.mrf.mxu0
    %2049 = vdwg.mxu0
    %v2050 = vpack.c.bf16 %v1944, %v1944
    %2051 = vmatpush.bf16.msra.mxu0 %v1106
    %2052 = vmatpush.bf16.msra.mxu0 %v1102
    %2053 = vmatpush.bf16.msra.mxu0 %v1098
    %2054 = vmatpush.bf16.msra.mxu0 %v1094
    %2055 = vmatpush.bf16.msra.mxu0 %v1090
    %2056 = vmatpush.bf16.msra.mxu0 %v1086
    %2057 = vmatpush.bf16.msra.mxu0 %v1082
    %2058 = vmatpush.bf16.msra.mxu0 %v1078
    %2059 = vmatmul.bf16.gmra.mxu0 %v2050
    %v2060 = vpop.f32.mrf.mxu0
    %v2061 = vadd.f32 0.0, %v2060
    %v2062 = vpop.f32.mrf.mxu0
    %2063 = vdwg.mxu0
    %2064 = vmatpush.bf16.msra.mxu0 %v1107
    %2065 = vmatpush.bf16.msra.mxu0 %v1103
    %2066 = vmatpush.bf16.msra.mxu0 %v1099
    %2067 = vmatpush.bf16.msra.mxu0 %v1095
    %2068 = vmatpush.bf16.msra.mxu0 %v1091
    %2069 = vmatpush.bf16.msra.mxu0 %v1087
    %2070 = vmatpush.bf16.msra.mxu0 %v1083
    %2071 = vmatpush.bf16.msra.mxu0 %v1079
    %2072 = vmatmul.bf16.gmra.mxu0 %v2050
    %v2073 = vpop.f32.mrf.mxu0
    %v2074 = vadd.f32 0.0, %v2073
    %v2075 = vpop.f32.mrf.mxu0
    %2076 = vdwg.mxu0
    %2077 = vmatpush.bf16.msra.mxu0 %v1108
    %2078 = vmatpush.bf16.msra.mxu0 %v1104
    %2079 = vmatpush.bf16.msra.mxu0 %v1100
    %2080 = vmatpush.bf16.msra.mxu0 %v1096
    %2081 = vmatpush.bf16.msra.mxu0 %v1092
    %2082 = vmatpush.bf16.msra.mxu0 %v1088
    %2083 = vmatpush.bf16.msra.mxu0 %v1084
    %2084 = vmatpush.bf16.msra.mxu0 %v1080
    %2085 = vmatmul.bf16.gmra.mxu0 %v2050
    %v2086 = vpop.f32.mrf.mxu0
    %v2087 = vadd.f32 0.0, %v2086
    %v2088 = vpop.f32.mrf.mxu0
    %2089 = vdwg.mxu0
    %2090 = vmatpush.bf16.msra.mxu0 %v1109
    %2091 = vmatpush.bf16.msra.mxu0 %v1105
    %2092 = vmatpush.bf16.msra.mxu0 %v1101
    %2093 = vmatpush.bf16.msra.mxu0 %v1097
    %2094 = vmatpush.bf16.msra.mxu0 %v1093
    %2095 = vmatpush.bf16.msra.mxu0 %v1089
    %2096 = vmatpush.bf16.msra.mxu0 %v1085
    %2097 = vmatpush.bf16.msra.mxu0 %v1081
    %2098 = vmatmul.bf16.gmra.mxu0 %v2050
    %v2099 = vpop.f32.mrf.mxu0
    %v2100 = vadd.f32 0.0, %v2099
    %v2101 = vpop.f32.mrf.mxu0
    %2102 = vdwg.mxu0
    %v2103 = vld [vmem:[#allocation2 + $0x80] sm:$0xff]
    %v2104 = vld [vmem:[#allocation2 + $0x88] sm:$0xff]
    %v2105 = vld [vmem:[#allocation2 + $0x90] sm:$0xff]
    %v2106 = vld [vmem:[#allocation2 + $0x98] sm:$0xff]
    %v2107 = vadd.f32 %v2103, %v1956
    %v2108 = vadd.f32 %v2104, %v1969
    %v2109 = vadd.f32 %v2105, %v1982
    %v2110 = vadd.f32 %v2106, %v1995
    %v2111 = vadd.f32 %v2008, %v1203
    %v2112 = vadd.f32 %v2021, %v1204
    %v2113 = vadd.f32 %v2034, %v1205
    %v2114 = vadd.f32 %v2047, %v1206
    %v2115 = vadd.f32 %v2111, %v2061
    %v2116 = vadd.f32 %v2112, %v2074
    %v2117 = vadd.f32 %v2113, %v2087
    %v2118 = vadd.f32 %v2114, %v2100
    %v2119 = vxor.u32 %v2107, 2147483648
    %v2120 = vxor.u32 %v2108, 2147483648
    %v2121 = vxor.u32 %v2109, 2147483648
    %v2122 = vmul.f32 %v2119, 1.442695
    %v2123 = vpow.pop %v2122
    %v2124 = vmul.f32 %v2120, 1.442695
    %v2125 = vpow.pop %v2124
    %v2126 = vmul.f32 %v2121, 1.442695
    %v2127 = vpow.pop %v2126
    %v2128 = vadd.f32 %v2123, 1.0
    %v2129 = vadd.f32 %v2125, 1.0
    %v2130 = vadd.f32 %v2127, 1.0
    %v2131 = vrcp.pop %v2128
    %v2132 = vmul.f32 %v2128, %v2131
    %v2133 = vsub.f32 1.0, %v2132
    %v2134 = vmul.f32 %v2131, %v2133
    %v2135 = vadd.f32 %v2131, %v2134
    %vm2136 = vweird.f32 %v2128
    %vm2137 = vweird.f32 %v2131
    %vm2138 = vmor %vm2136, %vm2137
    %v2139 = vsel %vm2138, %v2131, %v2135
    %v2140 = vand.u32 2147483647, %v2128
    %vm2141 = vcmp.eq.f32.partialorder %v2140, 8.507059e+37
    %v2142 = vand.u32 %v2128, 2147483648
    %v2143 = vor.u32 1.1754944e-38, %v2142
    %v2144 = vsel %vm2141, %v2143, %v2139
    %v2145 = vmul.f32 1.0, %v2144
    %v2146 = vrcp.pop %v2129
    %v2147 = vmul.f32 %v2129, %v2146
    %v2148 = vsub.f32 1.0, %v2147
    %v2149 = vmul.f32 %v2146, %v2148
    %v2150 = vadd.f32 %v2146, %v2149
    %vm2151 = vweird.f32 %v2129
    %vm2152 = vweird.f32 %v2146
    %vm2153 = vmor %vm2151, %vm2152
    %v2154 = vsel %vm2153, %v2146, %v2150
    %v2155 = vand.u32 2147483647, %v2129
    %vm2156 = vcmp.eq.f32.partialorder %v2155, 8.507059e+37
    %v2157 = vand.u32 %v2129, 2147483648
    %v2158 = vor.u32 1.1754944e-38, %v2157
    %v2159 = vsel %vm2156, %v2158, %v2154
    %v2160 = vmul.f32 1.0, %v2159
    %v2161 = vrcp.pop %v2130
    %v2162 = vmul.f32 %v2130, %v2161
    %v2163 = vsub.f32 1.0, %v2162
    %v2164 = vmul.f32 %v2161, %v2163
    %v2165 = vadd.f32 %v2161, %v2164
    %vm2166 = vweird.f32 %v2130
    %vm2167 = vweird.f32 %v2161
    %vm2168 = vmor %vm2166, %vm2167
    %v2169 = vsel %vm2168, %v2161, %v2165
    %v2170 = vand.u32 2147483647, %v2130
    %vm2171 = vcmp.eq.f32.partialorder %v2170, 8.507059e+37
    %v2172 = vand.u32 %v2130, 2147483648
    %v2173 = vor.u32 1.1754944e-38, %v2172
    %v2174 = vsel %vm2171, %v2173, %v2169
    %v2175 = vmul.f32 1.0, %v2174
    %v2176 = vtanh.pop %v2110
    %v2177 = vmul.f32 %v2160, %v1879
    %v2178 = vmul.f32 %v2145, %v2176
    %v2179 = vadd.f32 %v2177, %v2178
    %v2180 = vtanh.pop %v2179
    %v2181 = vmul.f32 %v2175, %v2180
    %v2182 = vxor.u32 %v2115, 2147483648
    %v2183 = vxor.u32 %v2116, 2147483648
    %v2184 = vxor.u32 %v2117, 2147483648
    %v2185 = vmul.f32 %v2182, 1.442695
    %v2186 = vpow.pop %v2185
    %v2187 = vmul.f32 %v2183, 1.442695
    %v2188 = vpow.pop %v2187
    %v2189 = vmul.f32 %v2184, 1.442695
    %v2190 = vpow.pop %v2189
    %v2191 = vadd.f32 %v2186, 1.0
    %v2192 = vadd.f32 %v2188, 1.0
    %v2193 = vadd.f32 %v2190, 1.0
    %v2194 = vrcp.pop %v2191
    %v2195 = vmul.f32 %v2191, %v2194
    %v2196 = vsub.f32 1.0, %v2195
    %v2197 = vmul.f32 %v2194, %v2196
    %v2198 = vadd.f32 %v2194, %v2197
    %vm2199 = vweird.f32 %v2191
    %vm2200 = vweird.f32 %v2194
    %vm2201 = vmor %vm2199, %vm2200
    %v2202 = vsel %vm2201, %v2194, %v2198
    %v2203 = vand.u32 2147483647, %v2191
    %vm2204 = vcmp.eq.f32.partialorder %v2203, 8.507059e+37
    %v2205 = vand.u32 %v2191, 2147483648
    %v2206 = vor.u32 1.1754944e-38, %v2205
    %v2207 = vsel %vm2204, %v2206, %v2202
    %v2208 = vmul.f32 1.0, %v2207
    %v2209 = vrcp.pop %v2192
    %v2210 = vmul.f32 %v2192, %v2209
    %v2211 = vsub.f32 1.0, %v2210
    %v2212 = vmul.f32 %v2209, %v2211
    %v2213 = vadd.f32 %v2209, %v2212
    %vm2214 = vweird.f32 %v2192
    %vm2215 = vweird.f32 %v2209
    %vm2216 = vmor %vm2214, %vm2215
    %v2217 = vsel %vm2216, %v2209, %v2213
    %v2218 = vand.u32 2147483647, %v2192
    %vm2219 = vcmp.eq.f32.partialorder %v2218, 8.507059e+37
    %v2220 = vand.u32 %v2192, 2147483648
    %v2221 = vor.u32 1.1754944e-38, %v2220
    %v2222 = vsel %vm2219, %v2221, %v2217
    %v2223 = vmul.f32 1.0, %v2222
    %v2224 = vrcp.pop %v2193
    %v2225 = vmul.f32 %v2193, %v2224
    %v2226 = vsub.f32 1.0, %v2225
    %v2227 = vmul.f32 %v2224, %v2226
    %v2228 = vadd.f32 %v2224, %v2227
    %vm2229 = vweird.f32 %v2193
    %vm2230 = vweird.f32 %v2224
    %vm2231 = vmor %vm2229, %vm2230
    %v2232 = vsel %vm2231, %v2224, %v2228
    %v2233 = vand.u32 2147483647, %v2193
    %vm2234 = vcmp.eq.f32.partialorder %v2233, 8.507059e+37
    %v2235 = vand.u32 %v2193, 2147483648
    %v2236 = vor.u32 1.1754944e-38, %v2235
    %v2237 = vsel %vm2234, %v2236, %v2232
    %v2238 = vmul.f32 1.0, %v2237
    %v2239 = vtanh.pop %v2118
    %v2240 = vmul.f32 %v2223, %v1942
    %v2241 = vmul.f32 %v2208, %v2239
    %v2242 = vadd.f32 %v2240, %v2241
    %v2243 = vtanh.pop %v2242
    %v2244 = vmul.f32 %v2238, %v2243
    %v2245 = vpack.c.bf16 %v2181, %v2181
    %2246 = vmatpush.bf16.msra.mxu0 %v774
    %2247 = vmatpush.bf16.msra.mxu0 %v766
    %2248 = vmatpush.bf16.msra.mxu0 %v758
    %2249 = vmatpush.bf16.msra.mxu0 %v750
    %2250 = vmatpush.bf16.msra.mxu0 %v742
    %2251 = vmatpush.bf16.msra.mxu0 %v734
    %2252 = vmatpush.bf16.msra.mxu0 %v726
    %2253 = vmatpush.bf16.msra.mxu0 %v718
    %2254 = vmatmul.bf16.gmra.mxu0 %v2245
    %v2255 = vpop.f32.mrf.mxu0
    %v2256 = vadd.f32 0.0, %v2255
    %v2257 = vpop.f32.mrf.mxu0
    %2258 = vdwg.mxu0
    %2259 = vmatpush.bf16.msra.mxu0 %v775
    %2260 = vmatpush.bf16.msra.mxu0 %v767
    %2261 = vmatpush.bf16.msra.mxu0 %v759
    %2262 = vmatpush.bf16.msra.mxu0 %v751
    %2263 = vmatpush.bf16.msra.mxu0 %v743
    %2264 = vmatpush.bf16.msra.mxu0 %v735
    %2265 = vmatpush.bf16.msra.mxu0 %v727
    %2266 = vmatpush.bf16.msra.mxu0 %v719
    %2267 = vmatmul.bf16.gmra.mxu0 %v2245
    %v2268 = vpop.f32.mrf.mxu0
    %v2269 = vadd.f32 0.0, %v2268
    %v2270 = vpop.f32.mrf.mxu0
    %2271 = vdwg.mxu0
    %2272 = vmatpush.bf16.msra.mxu0 %v776
    %2273 = vmatpush.bf16.msra.mxu0 %v768
    %2274 = vmatpush.bf16.msra.mxu0 %v760
    %2275 = vmatpush.bf16.msra.mxu0 %v752
    %2276 = vmatpush.bf16.msra.mxu0 %v744
    %2277 = vmatpush.bf16.msra.mxu0 %v736
    %2278 = vmatpush.bf16.msra.mxu0 %v728
    %2279 = vmatpush.bf16.msra.mxu0 %v720
    %2280 = vmatmul.bf16.gmra.mxu0 %v2245
    %v2281 = vpop.f32.mrf.mxu0
    %v2282 = vadd.f32 0.0, %v2281
    %v2283 = vpop.f32.mrf.mxu0
    %2284 = vdwg.mxu0
    %2285 = vmatpush.bf16.msra.mxu0 %v777
    %2286 = vmatpush.bf16.msra.mxu0 %v769
    %2287 = vmatpush.bf16.msra.mxu0 %v761
    %2288 = vmatpush.bf16.msra.mxu0 %v753
    %2289 = vmatpush.bf16.msra.mxu0 %v745
    %2290 = vmatpush.bf16.msra.mxu0 %v737
    %2291 = vmatpush.bf16.msra.mxu0 %v729
    %2292 = vmatpush.bf16.msra.mxu0 %v721
    %2293 = vmatmul.bf16.gmra.mxu0 %v2245
    %v2294 = vpop.f32.mrf.mxu0
    %v2295 = vadd.f32 0.0, %v2294
    %v2296 = vpop.f32.mrf.mxu0
    %2297 = vdwg.mxu0
    %2298 = vmatpush.bf16.msra.mxu0 %v778
    %2299 = vmatpush.bf16.msra.mxu0 %v770
    %2300 = vmatpush.bf16.msra.mxu0 %v762
    %2301 = vmatpush.bf16.msra.mxu0 %v754
    %2302 = vmatpush.bf16.msra.mxu0 %v746
    %2303 = vmatpush.bf16.msra.mxu0 %v738
    %2304 = vmatpush.bf16.msra.mxu0 %v730
    %2305 = vmatpush.bf16.msra.mxu0 %v722
    %2306 = vmatmul.bf16.gmra.mxu0 %v2245
    %v2307 = vpop.f32.mrf.mxu0
    %v2308 = vadd.f32 0.0, %v2307
    %v2309 = vpop.f32.mrf.mxu0
    %2310 = vdwg.mxu0
    %2311 = vmatpush.bf16.msra.mxu0 %v779
    %2312 = vmatpush.bf16.msra.mxu0 %v771
    %2313 = vmatpush.bf16.msra.mxu0 %v763
    %2314 = vmatpush.bf16.msra.mxu0 %v755
    %2315 = vmatpush.bf16.msra.mxu0 %v747
    %2316 = vmatpush.bf16.msra.mxu0 %v739
    %2317 = vmatpush.bf16.msra.mxu0 %v731
    %2318 = vmatpush.bf16.msra.mxu0 %v723
    %2319 = vmatmul.bf16.gmra.mxu0 %v2245
    %v2320 = vpop.f32.mrf.mxu0
    %v2321 = vadd.f32 0.0, %v2320
    %v2322 = vpop.f32.mrf.mxu0
    %2323 = vdwg.mxu0
    %2324 = vmatpush.bf16.msra.mxu0 %v780
    %2325 = vmatpush.bf16.msra.mxu0 %v772
    %2326 = vmatpush.bf16.msra.mxu0 %v764
    %2327 = vmatpush.bf16.msra.mxu0 %v756
    %2328 = vmatpush.bf16.msra.mxu0 %v748
    %2329 = vmatpush.bf16.msra.mxu0 %v740
    %2330 = vmatpush.bf16.msra.mxu0 %v732
    %2331 = vmatpush.bf16.msra.mxu0 %v724
    %2332 = vmatmul.bf16.gmra.mxu0 %v2245
    %v2333 = vpop.f32.mrf.mxu0
    %v2334 = vadd.f32 0.0, %v2333
    %v2335 = vpop.f32.mrf.mxu0
    %2336 = vdwg.mxu0
    %2337 = vmatpush.bf16.msra.mxu0 %v781
    %2338 = vmatpush.bf16.msra.mxu0 %v773
    %2339 = vmatpush.bf16.msra.mxu0 %v765
    %2340 = vmatpush.bf16.msra.mxu0 %v757
    %2341 = vmatpush.bf16.msra.mxu0 %v749
    %2342 = vmatpush.bf16.msra.mxu0 %v741
    %2343 = vmatpush.bf16.msra.mxu0 %v733
    %2344 = vmatpush.bf16.msra.mxu0 %v725
    %2345 = vmatmul.bf16.gmra.mxu0 %v2245
    %v2346 = vpop.f32.mrf.mxu0
    %v2347 = vadd.f32 0.0, %v2346
    %v2348 = vpop.f32.mrf.mxu0
    %2349 = vdwg.mxu0
    %v2350 = vpack.c.bf16 %v2244, %v2244
    %2351 = vmatpush.bf16.msra.mxu0 %v1106
    %2352 = vmatpush.bf16.msra.mxu0 %v1102
    %2353 = vmatpush.bf16.msra.mxu0 %v1098
    %2354 = vmatpush.bf16.msra.mxu0 %v1094
    %2355 = vmatpush.bf16.msra.mxu0 %v1090
    %2356 = vmatpush.bf16.msra.mxu0 %v1086
    %2357 = vmatpush.bf16.msra.mxu0 %v1082
    %2358 = vmatpush.bf16.msra.mxu0 %v1078
    %2359 = vmatmul.bf16.gmra.mxu0 %v2350
    %v2360 = vpop.f32.mrf.mxu0
    %v2361 = vadd.f32 0.0, %v2360
    %v2362 = vpop.f32.mrf.mxu0
    %2363 = vdwg.mxu0
    %2364 = vmatpush.bf16.msra.mxu0 %v1107
    %2365 = vmatpush.bf16.msra.mxu0 %v1103
    %2366 = vmatpush.bf16.msra.mxu0 %v1099
    %2367 = vmatpush.bf16.msra.mxu0 %v1095
    %2368 = vmatpush.bf16.msra.mxu0 %v1091
    %2369 = vmatpush.bf16.msra.mxu0 %v1087
    %2370 = vmatpush.bf16.msra.mxu0 %v1083
    %2371 = vmatpush.bf16.msra.mxu0 %v1079
    %2372 = vmatmul.bf16.gmra.mxu0 %v2350
    %v2373 = vpop.f32.mrf.mxu0
    %v2374 = vadd.f32 0.0, %v2373
    %v2375 = vpop.f32.mrf.mxu0
    %2376 = vdwg.mxu0
    %2377 = vmatpush.bf16.msra.mxu0 %v1108
    %2378 = vmatpush.bf16.msra.mxu0 %v1104
    %2379 = vmatpush.bf16.msra.mxu0 %v1100
    %2380 = vmatpush.bf16.msra.mxu0 %v1096
    %2381 = vmatpush.bf16.msra.mxu0 %v1092
    %2382 = vmatpush.bf16.msra.mxu0 %v1088
    %2383 = vmatpush.bf16.msra.mxu0 %v1084
    %2384 = vmatpush.bf16.msra.mxu0 %v1080
    %2385 = vmatmul.bf16.gmra.mxu0 %v2350
    %v2386 = vpop.f32.mrf.mxu0
    %v2387 = vadd.f32 0.0, %v2386
    %v2388 = vpop.f32.mrf.mxu0
    %2389 = vdwg.mxu0
    %2390 = vmatpush.bf16.msra.mxu0 %v1109
    %2391 = vmatpush.bf16.msra.mxu0 %v1105
    %2392 = vmatpush.bf16.msra.mxu0 %v1101
    %2393 = vmatpush.bf16.msra.mxu0 %v1097
    %2394 = vmatpush.bf16.msra.mxu0 %v1093
    %2395 = vmatpush.bf16.msra.mxu0 %v1089
    %2396 = vmatpush.bf16.msra.mxu0 %v1085
    %2397 = vmatpush.bf16.msra.mxu0 %v1081
    %2398 = vmatmul.bf16.gmra.mxu0 %v2350
    %v2399 = vpop.f32.mrf.mxu0
    %v2400 = vadd.f32 0.0, %v2399
    %v2401 = vpop.f32.mrf.mxu0
    %2402 = vdwg.mxu0
    %v2403 = vld [vmem:[#allocation2 + $0xa0] sm:$0xff]
    %v2404 = vld [vmem:[#allocation2 + $0xa8] sm:$0xff]
    %v2405 = vld [vmem:[#allocation2 + $0xb0] sm:$0xff]
    %v2406 = vld [vmem:[#allocation2 + $0xb8] sm:$0xff]
    %v2407 = vadd.f32 %v2403, %v2256
    %v2408 = vadd.f32 %v2404, %v2269
    %v2409 = vadd.f32 %v2405, %v2282
    %v2410 = vadd.f32 %v2406, %v2295
    %v2411 = vadd.f32 %v2308, %v1203
    %v2412 = vadd.f32 %v2321, %v1204
    %v2413 = vadd.f32 %v2334, %v1205
    %v2414 = vadd.f32 %v2347, %v1206
    %v2415 = vadd.f32 %v2411, %v2361
    %v2416 = vadd.f32 %v2412, %v2374
    %v2417 = vadd.f32 %v2413, %v2387
    %v2418 = vadd.f32 %v2414, %v2400
    %v2419 = vxor.u32 %v2407, 2147483648
    %v2420 = vxor.u32 %v2408, 2147483648
    %v2421 = vxor.u32 %v2409, 2147483648
    %v2422 = vmul.f32 %v2419, 1.442695
    %v2423 = vpow.pop %v2422
    %v2424 = vmul.f32 %v2420, 1.442695
    %v2425 = vpow.pop %v2424
    %v2426 = vmul.f32 %v2421, 1.442695
    %v2427 = vpow.pop %v2426
    %v2428 = vadd.f32 %v2423, 1.0
    %v2429 = vadd.f32 %v2425, 1.0
    %v2430 = vadd.f32 %v2427, 1.0
    %v2431 = vrcp.pop %v2428
    %v2432 = vmul.f32 %v2428, %v2431
    %v2433 = vsub.f32 1.0, %v2432
    %v2434 = vmul.f32 %v2431, %v2433
    %v2435 = vadd.f32 %v2431, %v2434
    %vm2436 = vweird.f32 %v2428
    %vm2437 = vweird.f32 %v2431
    %vm2438 = vmor %vm2436, %vm2437
    %v2439 = vsel %vm2438, %v2431, %v2435
    %v2440 = vand.u32 2147483647, %v2428
    %vm2441 = vcmp.eq.f32.partialorder %v2440, 8.507059e+37
    %v2442 = vand.u32 %v2428, 2147483648
    %v2443 = vor.u32 1.1754944e-38, %v2442
    %v2444 = vsel %vm2441, %v2443, %v2439
    %v2445 = vmul.f32 1.0, %v2444
    %v2446 = vrcp.pop %v2429
    %v2447 = vmul.f32 %v2429, %v2446
    %v2448 = vsub.f32 1.0, %v2447
    %v2449 = vmul.f32 %v2446, %v2448
    %v2450 = vadd.f32 %v2446, %v2449
    %vm2451 = vweird.f32 %v2429
    %vm2452 = vweird.f32 %v2446
    %vm2453 = vmor %vm2451, %vm2452
    %v2454 = vsel %vm2453, %v2446, %v2450
    %v2455 = vand.u32 2147483647, %v2429
    %vm2456 = vcmp.eq.f32.partialorder %v2455, 8.507059e+37
    %v2457 = vand.u32 %v2429, 2147483648
    %v2458 = vor.u32 1.1754944e-38, %v2457
    %v2459 = vsel %vm2456, %v2458, %v2454
    %v2460 = vmul.f32 1.0, %v2459
    %v2461 = vrcp.pop %v2430
    %v2462 = vmul.f32 %v2430, %v2461
    %v2463 = vsub.f32 1.0, %v2462
    %v2464 = vmul.f32 %v2461, %v2463
    %v2465 = vadd.f32 %v2461, %v2464
    %vm2466 = vweird.f32 %v2430
    %vm2467 = vweird.f32 %v2461
    %vm2468 = vmor %vm2466, %vm2467
    %v2469 = vsel %vm2468, %v2461, %v2465
    %v2470 = vand.u32 2147483647, %v2430
    %vm2471 = vcmp.eq.f32.partialorder %v2470, 8.507059e+37
    %v2472 = vand.u32 %v2430, 2147483648
    %v2473 = vor.u32 1.1754944e-38, %v2472
    %v2474 = vsel %vm2471, %v2473, %v2469
    %v2475 = vmul.f32 1.0, %v2474
    %v2476 = vtanh.pop %v2410
    %v2477 = vmul.f32 %v2460, %v2179
    %v2478 = vmul.f32 %v2445, %v2476
    %v2479 = vadd.f32 %v2477, %v2478
    %v2480 = vtanh.pop %v2479
    %v2481 = vmul.f32 %v2475, %v2480
    %v2482 = vxor.u32 %v2415, 2147483648
    %v2483 = vxor.u32 %v2416, 2147483648
    %v2484 = vxor.u32 %v2417, 2147483648
    %v2485 = vmul.f32 %v2482, 1.442695
    %v2486 = vpow.pop %v2485
    %v2487 = vmul.f32 %v2483, 1.442695
    %v2488 = vpow.pop %v2487
    %v2489 = vmul.f32 %v2484, 1.442695
    %v2490 = vpow.pop %v2489
    %v2491 = vadd.f32 %v2486, 1.0
    %v2492 = vadd.f32 %v2488, 1.0
    %v2493 = vadd.f32 %v2490, 1.0
    %v2494 = vrcp.pop %v2491
    %v2495 = vmul.f32 %v2491, %v2494
    %v2496 = vsub.f32 1.0, %v2495
    %v2497 = vmul.f32 %v2494, %v2496
    %v2498 = vadd.f32 %v2494, %v2497
    %vm2499 = vweird.f32 %v2491
    %vm2500 = vweird.f32 %v2494
    %vm2501 = vmor %vm2499, %vm2500
    %v2502 = vsel %vm2501, %v2494, %v2498
    %v2503 = vand.u32 2147483647, %v2491
    %vm2504 = vcmp.eq.f32.partialorder %v2503, 8.507059e+37
    %v2505 = vand.u32 %v2491, 2147483648
    %v2506 = vor.u32 1.1754944e-38, %v2505
    %v2507 = vsel %vm2504, %v2506, %v2502
    %v2508 = vmul.f32 1.0, %v2507
    %v2509 = vrcp.pop %v2492
    %v2510 = vmul.f32 %v2492, %v2509
    %v2511 = vsub.f32 1.0, %v2510
    %v2512 = vmul.f32 %v2509, %v2511
    %v2513 = vadd.f32 %v2509, %v2512
    %vm2514 = vweird.f32 %v2492
    %vm2515 = vweird.f32 %v2509
    %vm2516 = vmor %vm2514, %vm2515
    %v2517 = vsel %vm2516, %v2509, %v2513
    %v2518 = vand.u32 2147483647, %v2492
    %vm2519 = vcmp.eq.f32.partialorder %v2518, 8.507059e+37
    %v2520 = vand.u32 %v2492, 2147483648
    %v2521 = vor.u32 1.1754944e-38, %v2520
    %v2522 = vsel %vm2519, %v2521, %v2517
    %v2523 = vmul.f32 1.0, %v2522
    %v2524 = vrcp.pop %v2493
    %v2525 = vmul.f32 %v2493, %v2524
    %v2526 = vsub.f32 1.0, %v2525
    %v2527 = vmul.f32 %v2524, %v2526
    %v2528 = vadd.f32 %v2524, %v2527
    %vm2529 = vweird.f32 %v2493
    %vm2530 = vweird.f32 %v2524
    %vm2531 = vmor %vm2529, %vm2530
    %v2532 = vsel %vm2531, %v2524, %v2528
    %v2533 = vand.u32 2147483647, %v2493
    %vm2534 = vcmp.eq.f32.partialorder %v2533, 8.507059e+37
    %v2535 = vand.u32 %v2493, 2147483648
    %v2536 = vor.u32 1.1754944e-38, %v2535
    %v2537 = vsel %vm2534, %v2536, %v2532
    %v2538 = vmul.f32 1.0, %v2537
    %v2539 = vtanh.pop %v2418
    %v2540 = vmul.f32 %v2523, %v2242
    %v2541 = vmul.f32 %v2508, %v2539
    %v2542 = vadd.f32 %v2540, %v2541
    %v2543 = vtanh.pop %v2542
    %v2544 = vmul.f32 %v2538, %v2543
    %v2545 = vpack.c.bf16 %v2481, %v2481
    %2546 = vmatpush.bf16.msra.mxu0 %v774
    %2547 = vmatpush.bf16.msra.mxu0 %v766
    %2548 = vmatpush.bf16.msra.mxu0 %v758
    %2549 = vmatpush.bf16.msra.mxu0 %v750
    %2550 = vmatpush.bf16.msra.mxu0 %v742
    %2551 = vmatpush.bf16.msra.mxu0 %v734
    %2552 = vmatpush.bf16.msra.mxu0 %v726
    %2553 = vmatpush.bf16.msra.mxu0 %v718
    %2554 = vmatmul.bf16.gmra.mxu0 %v2545
    %v2555 = vpop.f32.mrf.mxu0
    %v2556 = vadd.f32 0.0, %v2555
    %v2557 = vpop.f32.mrf.mxu0
    %2558 = vdwg.mxu0
    %2559 = vmatpush.bf16.msra.mxu0 %v775
    %2560 = vmatpush.bf16.msra.mxu0 %v767
    %2561 = vmatpush.bf16.msra.mxu0 %v759
    %2562 = vmatpush.bf16.msra.mxu0 %v751
    %2563 = vmatpush.bf16.msra.mxu0 %v743
    %2564 = vmatpush.bf16.msra.mxu0 %v735
    %2565 = vmatpush.bf16.msra.mxu0 %v727
    %2566 = vmatpush.bf16.msra.mxu0 %v719
    %2567 = vmatmul.bf16.gmra.mxu0 %v2545
    %v2568 = vpop.f32.mrf.mxu0
    %v2569 = vadd.f32 0.0, %v2568
    %v2570 = vpop.f32.mrf.mxu0
    %2571 = vdwg.mxu0
    %2572 = vmatpush.bf16.msra.mxu0 %v776
    %2573 = vmatpush.bf16.msra.mxu0 %v768
    %2574 = vmatpush.bf16.msra.mxu0 %v760
    %2575 = vmatpush.bf16.msra.mxu0 %v752
    %2576 = vmatpush.bf16.msra.mxu0 %v744
    %2577 = vmatpush.bf16.msra.mxu0 %v736
    %2578 = vmatpush.bf16.msra.mxu0 %v728
    %2579 = vmatpush.bf16.msra.mxu0 %v720
    %2580 = vmatmul.bf16.gmra.mxu0 %v2545
    %v2581 = vpop.f32.mrf.mxu0
    %v2582 = vadd.f32 0.0, %v2581
    %v2583 = vpop.f32.mrf.mxu0
    %2584 = vdwg.mxu0
    %2585 = vmatpush.bf16.msra.mxu0 %v777
    %2586 = vmatpush.bf16.msra.mxu0 %v769
    %2587 = vmatpush.bf16.msra.mxu0 %v761
    %2588 = vmatpush.bf16.msra.mxu0 %v753
    %2589 = vmatpush.bf16.msra.mxu0 %v745
    %2590 = vmatpush.bf16.msra.mxu0 %v737
    %2591 = vmatpush.bf16.msra.mxu0 %v729
    %2592 = vmatpush.bf16.msra.mxu0 %v721
    %2593 = vmatmul.bf16.gmra.mxu0 %v2545
    %v2594 = vpop.f32.mrf.mxu0
    %v2595 = vadd.f32 0.0, %v2594
    %v2596 = vpop.f32.mrf.mxu0
    %2597 = vdwg.mxu0
    %2598 = vmatpush.bf16.msra.mxu0 %v778
    %2599 = vmatpush.bf16.msra.mxu0 %v770
    %2600 = vmatpush.bf16.msra.mxu0 %v762
    %2601 = vmatpush.bf16.msra.mxu0 %v754
    %2602 = vmatpush.bf16.msra.mxu0 %v746
    %2603 = vmatpush.bf16.msra.mxu0 %v738
    %2604 = vmatpush.bf16.msra.mxu0 %v730
    %2605 = vmatpush.bf16.msra.mxu0 %v722
    %2606 = vmatmul.bf16.gmra.mxu0 %v2545
    %v2607 = vpop.f32.mrf.mxu0
    %v2608 = vadd.f32 0.0, %v2607
    %v2609 = vpop.f32.mrf.mxu0
    %2610 = vdwg.mxu0
    %2611 = vmatpush.bf16.msra.mxu0 %v779
    %2612 = vmatpush.bf16.msra.mxu0 %v771
    %2613 = vmatpush.bf16.msra.mxu0 %v763
    %2614 = vmatpush.bf16.msra.mxu0 %v755
    %2615 = vmatpush.bf16.msra.mxu0 %v747
    %2616 = vmatpush.bf16.msra.mxu0 %v739
    %2617 = vmatpush.bf16.msra.mxu0 %v731
    %2618 = vmatpush.bf16.msra.mxu0 %v723
    %2619 = vmatmul.bf16.gmra.mxu0 %v2545
    %v2620 = vpop.f32.mrf.mxu0
    %v2621 = vadd.f32 0.0, %v2620
    %v2622 = vpop.f32.mrf.mxu0
    %2623 = vdwg.mxu0
    %2624 = vmatpush.bf16.msra.mxu0 %v780
    %2625 = vmatpush.bf16.msra.mxu0 %v772
    %2626 = vmatpush.bf16.msra.mxu0 %v764
    %2627 = vmatpush.bf16.msra.mxu0 %v756
    %2628 = vmatpush.bf16.msra.mxu0 %v748
    %2629 = vmatpush.bf16.msra.mxu0 %v740
    %2630 = vmatpush.bf16.msra.mxu0 %v732
    %2631 = vmatpush.bf16.msra.mxu0 %v724
    %2632 = vmatmul.bf16.gmra.mxu0 %v2545
    %v2633 = vpop.f32.mrf.mxu0
    %v2634 = vadd.f32 0.0, %v2633
    %v2635 = vpop.f32.mrf.mxu0
    %2636 = vdwg.mxu0
    %2637 = vmatpush.bf16.msra.mxu0 %v781
    %2638 = vmatpush.bf16.msra.mxu0 %v773
    %2639 = vmatpush.bf16.msra.mxu0 %v765
    %2640 = vmatpush.bf16.msra.mxu0 %v757
    %2641 = vmatpush.bf16.msra.mxu0 %v749
    %2642 = vmatpush.bf16.msra.mxu0 %v741
    %2643 = vmatpush.bf16.msra.mxu0 %v733
    %2644 = vmatpush.bf16.msra.mxu0 %v725
    %2645 = vmatmul.bf16.gmra.mxu0 %v2545
    %v2646 = vpop.f32.mrf.mxu0
    %v2647 = vadd.f32 0.0, %v2646
    %v2648 = vpop.f32.mrf.mxu0
    %2649 = vdwg.mxu0
    %v2650 = vpack.c.bf16 %v2544, %v2544
    %2651 = vmatpush.bf16.msra.mxu0 %v1106
    %2652 = vmatpush.bf16.msra.mxu0 %v1102
    %2653 = vmatpush.bf16.msra.mxu0 %v1098
    %2654 = vmatpush.bf16.msra.mxu0 %v1094
    %2655 = vmatpush.bf16.msra.mxu0 %v1090
    %2656 = vmatpush.bf16.msra.mxu0 %v1086
    %2657 = vmatpush.bf16.msra.mxu0 %v1082
    %2658 = vmatpush.bf16.msra.mxu0 %v1078
    %2659 = vmatmul.bf16.gmra.mxu0 %v2650
    %v2660 = vpop.f32.mrf.mxu0
    %v2661 = vadd.f32 0.0, %v2660
    %v2662 = vpop.f32.mrf.mxu0
    %2663 = vdwg.mxu0
    %2664 = vmatpush.bf16.msra.mxu0 %v1107
    %2665 = vmatpush.bf16.msra.mxu0 %v1103
    %2666 = vmatpush.bf16.msra.mxu0 %v1099
    %2667 = vmatpush.bf16.msra.mxu0 %v1095
    %2668 = vmatpush.bf16.msra.mxu0 %v1091
    %2669 = vmatpush.bf16.msra.mxu0 %v1087
    %2670 = vmatpush.bf16.msra.mxu0 %v1083
    %2671 = vmatpush.bf16.msra.mxu0 %v1079
    %2672 = vmatmul.bf16.gmra.mxu0 %v2650
    %v2673 = vpop.f32.mrf.mxu0
    %v2674 = vadd.f32 0.0, %v2673
    %v2675 = vpop.f32.mrf.mxu0
    %2676 = vdwg.mxu0
    %2677 = vmatpush.bf16.msra.mxu0 %v1108
    %2678 = vmatpush.bf16.msra.mxu0 %v1104
    %2679 = vmatpush.bf16.msra.mxu0 %v1100
    %2680 = vmatpush.bf16.msra.mxu0 %v1096
    %2681 = vmatpush.bf16.msra.mxu0 %v1092
    %2682 = vmatpush.bf16.msra.mxu0 %v1088
    %2683 = vmatpush.bf16.msra.mxu0 %v1084
    %2684 = vmatpush.bf16.msra.mxu0 %v1080
    %2685 = vmatmul.bf16.gmra.mxu0 %v2650
    %v2686 = vpop.f32.mrf.mxu0
    %v2687 = vadd.f32 0.0, %v2686
    %v2688 = vpop.f32.mrf.mxu0
    %2689 = vdwg.mxu0
    %2690 = vmatpush.bf16.msra.mxu0 %v1109
    %2691 = vmatpush.bf16.msra.mxu0 %v1105
    %2692 = vmatpush.bf16.msra.mxu0 %v1101
    %2693 = vmatpush.bf16.msra.mxu0 %v1097
    %2694 = vmatpush.bf16.msra.mxu0 %v1093
    %2695 = vmatpush.bf16.msra.mxu0 %v1089
    %2696 = vmatpush.bf16.msra.mxu0 %v1085
    %2697 = vmatpush.bf16.msra.mxu0 %v1081
    %2698 = vmatmul.bf16.gmra.mxu0 %v2650
    %v2699 = vpop.f32.mrf.mxu0
    %v2700 = vadd.f32 0.0, %v2699
    %v2701 = vpop.f32.mrf.mxu0
    %2702 = vdwg.mxu0
    %v2703 = vld [vmem:[#allocation2 + $0xc0] sm:$0xff]
    %v2704 = vld [vmem:[#allocation2 + $0xc8] sm:$0xff]
    %v2705 = vld [vmem:[#allocation2 + $0xd0] sm:$0xff]
    %v2706 = vld [vmem:[#allocation2 + $0xd8] sm:$0xff]
    %v2707 = vadd.f32 %v2703, %v2556
    %v2708 = vadd.f32 %v2704, %v2569
    %v2709 = vadd.f32 %v2705, %v2582
    %v2710 = vadd.f32 %v2706, %v2595
    %v2711 = vadd.f32 %v2608, %v1203
    %v2712 = vadd.f32 %v2621, %v1204
    %v2713 = vadd.f32 %v2634, %v1205
    %v2714 = vadd.f32 %v2647, %v1206
    %v2715 = vadd.f32 %v2711, %v2661
    %v2716 = vadd.f32 %v2712, %v2674
    %v2717 = vadd.f32 %v2713, %v2687
    %v2718 = vadd.f32 %v2714, %v2700
    %v2719 = vxor.u32 %v2707, 2147483648
    %v2720 = vxor.u32 %v2708, 2147483648
    %v2721 = vxor.u32 %v2709, 2147483648
    %v2722 = vmul.f32 %v2719, 1.442695
    %v2723 = vpow.pop %v2722
    %v2724 = vmul.f32 %v2720, 1.442695
    %v2725 = vpow.pop %v2724
    %v2726 = vmul.f32 %v2721, 1.442695
    %v2727 = vpow.pop %v2726
    %v2728 = vadd.f32 %v2723, 1.0
    %v2729 = vadd.f32 %v2725, 1.0
    %v2730 = vadd.f32 %v2727, 1.0
    %v2731 = vrcp.pop %v2728
    %v2732 = vmul.f32 %v2728, %v2731
    %v2733 = vsub.f32 1.0, %v2732
    %v2734 = vmul.f32 %v2731, %v2733
    %v2735 = vadd.f32 %v2731, %v2734
    %vm2736 = vweird.f32 %v2728
    %vm2737 = vweird.f32 %v2731
    %vm2738 = vmor %vm2736, %vm2737
    %v2739 = vsel %vm2738, %v2731, %v2735
    %v2740 = vand.u32 2147483647, %v2728
    %vm2741 = vcmp.eq.f32.partialorder %v2740, 8.507059e+37
    %v2742 = vand.u32 %v2728, 2147483648
    %v2743 = vor.u32 1.1754944e-38, %v2742
    %v2744 = vsel %vm2741, %v2743, %v2739
    %v2745 = vmul.f32 1.0, %v2744
    %v2746 = vrcp.pop %v2729
    %v2747 = vmul.f32 %v2729, %v2746
    %v2748 = vsub.f32 1.0, %v2747
    %v2749 = vmul.f32 %v2746, %v2748
    %v2750 = vadd.f32 %v2746, %v2749
    %vm2751 = vweird.f32 %v2729
    %vm2752 = vweird.f32 %v2746
    %vm2753 = vmor %vm2751, %vm2752
    %v2754 = vsel %vm2753, %v2746, %v2750
    %v2755 = vand.u32 2147483647, %v2729
    %vm2756 = vcmp.eq.f32.partialorder %v2755, 8.507059e+37
    %v2757 = vand.u32 %v2729, 2147483648
    %v2758 = vor.u32 1.1754944e-38, %v2757
    %v2759 = vsel %vm2756, %v2758, %v2754
    %v2760 = vmul.f32 1.0, %v2759
    %v2761 = vrcp.pop %v2730
    %v2762 = vmul.f32 %v2730, %v2761
    %v2763 = vsub.f32 1.0, %v2762
    %v2764 = vmul.f32 %v2761, %v2763
    %v2765 = vadd.f32 %v2761, %v2764
    %vm2766 = vweird.f32 %v2730
    %vm2767 = vweird.f32 %v2761
    %vm2768 = vmor %vm2766, %vm2767
    %v2769 = vsel %vm2768, %v2761, %v2765
    %v2770 = vand.u32 2147483647, %v2730
    %vm2771 = vcmp.eq.f32.partialorder %v2770, 8.507059e+37
    %v2772 = vand.u32 %v2730, 2147483648
    %v2773 = vor.u32 1.1754944e-38, %v2772
    %v2774 = vsel %vm2771, %v2773, %v2769
    %v2775 = vmul.f32 1.0, %v2774
    %v2776 = vtanh.pop %v2710
    %v2777 = vmul.f32 %v2760, %v2479
    %v2778 = vmul.f32 %v2745, %v2776
    %v2779 = vadd.f32 %v2777, %v2778
    %v2780 = vtanh.pop %v2779
    %v2781 = vmul.f32 %v2775, %v2780
    %v2782 = vxor.u32 %v2715, 2147483648
    %v2783 = vxor.u32 %v2716, 2147483648
    %v2784 = vxor.u32 %v2717, 2147483648
    %v2785 = vmul.f32 %v2782, 1.442695
    %v2786 = vpow.pop %v2785
    %v2787 = vmul.f32 %v2783, 1.442695
    %v2788 = vpow.pop %v2787
    %v2789 = vmul.f32 %v2784, 1.442695
    %v2790 = vpow.pop %v2789
    %v2791 = vadd.f32 %v2786, 1.0
    %v2792 = vadd.f32 %v2788, 1.0
    %v2793 = vadd.f32 %v2790, 1.0
    %v2794 = vrcp.pop %v2791
    %v2795 = vmul.f32 %v2791, %v2794
    %v2796 = vsub.f32 1.0, %v2795
    %v2797 = vmul.f32 %v2794, %v2796
    %v2798 = vadd.f32 %v2794, %v2797
    %vm2799 = vweird.f32 %v2791
    %vm2800 = vweird.f32 %v2794
    %vm2801 = vmor %vm2799, %vm2800
    %v2802 = vsel %vm2801, %v2794, %v2798
    %v2803 = vand.u32 2147483647, %v2791
    %vm2804 = vcmp.eq.f32.partialorder %v2803, 8.507059e+37
    %v2805 = vand.u32 %v2791, 2147483648
    %v2806 = vor.u32 1.1754944e-38, %v2805
    %v2807 = vsel %vm2804, %v2806, %v2802
    %v2808 = vmul.f32 1.0, %v2807
    %v2809 = vrcp.pop %v2792
    %v2810 = vmul.f32 %v2792, %v2809
    %v2811 = vsub.f32 1.0, %v2810
    %v2812 = vmul.f32 %v2809, %v2811
    %v2813 = vadd.f32 %v2809, %v2812
    %vm2814 = vweird.f32 %v2792
    %vm2815 = vweird.f32 %v2809
    %vm2816 = vmor %vm2814, %vm2815
    %v2817 = vsel %vm2816, %v2809, %v2813
    %v2818 = vand.u32 2147483647, %v2792
    %vm2819 = vcmp.eq.f32.partialorder %v2818, 8.507059e+37
    %v2820 = vand.u32 %v2792, 2147483648
    %v2821 = vor.u32 1.1754944e-38, %v2820
    %v2822 = vsel %vm2819, %v2821, %v2817
    %v2823 = vmul.f32 1.0, %v2822
    %v2824 = vrcp.pop %v2793
    %v2825 = vmul.f32 %v2793, %v2824
    %v2826 = vsub.f32 1.0, %v2825
    %v2827 = vmul.f32 %v2824, %v2826
    %v2828 = vadd.f32 %v2824, %v2827
    %vm2829 = vweird.f32 %v2793
    %vm2830 = vweird.f32 %v2824
    %vm2831 = vmor %vm2829, %vm2830
    %v2832 = vsel %vm2831, %v2824, %v2828
    %v2833 = vand.u32 2147483647, %v2793
    %vm2834 = vcmp.eq.f32.partialorder %v2833, 8.507059e+37
    %v2835 = vand.u32 %v2793, 2147483648
    %v2836 = vor.u32 1.1754944e-38, %v2835
    %v2837 = vsel %vm2834, %v2836, %v2832
    %v2838 = vmul.f32 1.0, %v2837
    %v2839 = vtanh.pop %v2718
    %v2840 = vmul.f32 %v2823, %v2542
    %v2841 = vmul.f32 %v2808, %v2839
    %v2842 = vadd.f32 %v2840, %v2841
    %v2843 = vtanh.pop %v2842
    %v2844 = vmul.f32 %v2838, %v2843
    %v2845 = vpack.c.bf16 %v2781, %v2781
    %2846 = vmatpush.bf16.msra.mxu0 %v774
    %2847 = vmatpush.bf16.msra.mxu0 %v766
    %2848 = vmatpush.bf16.msra.mxu0 %v758
    %2849 = vmatpush.bf16.msra.mxu0 %v750
    %2850 = vmatpush.bf16.msra.mxu0 %v742
    %2851 = vmatpush.bf16.msra.mxu0 %v734
    %2852 = vmatpush.bf16.msra.mxu0 %v726
    %2853 = vmatpush.bf16.msra.mxu0 %v718
    %2854 = vmatmul.bf16.gmra.mxu0 %v2845
    %v2855 = vpop.f32.mrf.mxu0
    %v2856 = vadd.f32 0.0, %v2855
    %v2857 = vpop.f32.mrf.mxu0
    %2858 = vdwg.mxu0
    %2859 = vmatpush.bf16.msra.mxu0 %v775
    %2860 = vmatpush.bf16.msra.mxu0 %v767
    %2861 = vmatpush.bf16.msra.mxu0 %v759
    %2862 = vmatpush.bf16.msra.mxu0 %v751
    %2863 = vmatpush.bf16.msra.mxu0 %v743
    %2864 = vmatpush.bf16.msra.mxu0 %v735
    %2865 = vmatpush.bf16.msra.mxu0 %v727
    %2866 = vmatpush.bf16.msra.mxu0 %v719
    %2867 = vmatmul.bf16.gmra.mxu0 %v2845
    %v2868 = vpop.f32.mrf.mxu0
    %v2869 = vadd.f32 0.0, %v2868
    %v2870 = vpop.f32.mrf.mxu0
    %2871 = vdwg.mxu0
    %2872 = vmatpush.bf16.msra.mxu0 %v776
    %2873 = vmatpush.bf16.msra.mxu0 %v768
    %2874 = vmatpush.bf16.msra.mxu0 %v760
    %2875 = vmatpush.bf16.msra.mxu0 %v752
    %2876 = vmatpush.bf16.msra.mxu0 %v744
    %2877 = vmatpush.bf16.msra.mxu0 %v736
    %2878 = vmatpush.bf16.msra.mxu0 %v728
    %2879 = vmatpush.bf16.msra.mxu0 %v720
    %2880 = vmatmul.bf16.gmra.mxu0 %v2845
    %v2881 = vpop.f32.mrf.mxu0
    %v2882 = vadd.f32 0.0, %v2881
    %v2883 = vpop.f32.mrf.mxu0
    %2884 = vdwg.mxu0
    %2885 = vmatpush.bf16.msra.mxu0 %v777
    %2886 = vmatpush.bf16.msra.mxu0 %v769
    %2887 = vmatpush.bf16.msra.mxu0 %v761
    %2888 = vmatpush.bf16.msra.mxu0 %v753
    %2889 = vmatpush.bf16.msra.mxu0 %v745
    %2890 = vmatpush.bf16.msra.mxu0 %v737
    %2891 = vmatpush.bf16.msra.mxu0 %v729
    %2892 = vmatpush.bf16.msra.mxu0 %v721
    %2893 = vmatmul.bf16.gmra.mxu0 %v2845
    %v2894 = vpop.f32.mrf.mxu0
    %v2895 = vadd.f32 0.0, %v2894
    %v2896 = vpop.f32.mrf.mxu0
    %2897 = vdwg.mxu0
    %2898 = vmatpush.bf16.msra.mxu0 %v778
    %2899 = vmatpush.bf16.msra.mxu0 %v770
    %2900 = vmatpush.bf16.msra.mxu0 %v762
    %2901 = vmatpush.bf16.msra.mxu0 %v754
    %2902 = vmatpush.bf16.msra.mxu0 %v746
    %2903 = vmatpush.bf16.msra.mxu0 %v738
    %2904 = vmatpush.bf16.msra.mxu0 %v730
    %2905 = vmatpush.bf16.msra.mxu0 %v722
    %2906 = vmatmul.bf16.gmra.mxu0 %v2845
    %v2907 = vpop.f32.mrf.mxu0
    %v2908 = vadd.f32 0.0, %v2907
    %v2909 = vpop.f32.mrf.mxu0
    %2910 = vdwg.mxu0
    %2911 = vmatpush.bf16.msra.mxu0 %v779
    %2912 = vmatpush.bf16.msra.mxu0 %v771
    %2913 = vmatpush.bf16.msra.mxu0 %v763
    %2914 = vmatpush.bf16.msra.mxu0 %v755
    %2915 = vmatpush.bf16.msra.mxu0 %v747
    %2916 = vmatpush.bf16.msra.mxu0 %v739
    %2917 = vmatpush.bf16.msra.mxu0 %v731
    %2918 = vmatpush.bf16.msra.mxu0 %v723
    %2919 = vmatmul.bf16.gmra.mxu0 %v2845
    %v2920 = vpop.f32.mrf.mxu0
    %v2921 = vadd.f32 0.0, %v2920
    %v2922 = vpop.f32.mrf.mxu0
    %2923 = vdwg.mxu0
    %2924 = vmatpush.bf16.msra.mxu0 %v780
    %2925 = vmatpush.bf16.msra.mxu0 %v772
    %2926 = vmatpush.bf16.msra.mxu0 %v764
    %2927 = vmatpush.bf16.msra.mxu0 %v756
    %2928 = vmatpush.bf16.msra.mxu0 %v748
    %2929 = vmatpush.bf16.msra.mxu0 %v740
    %2930 = vmatpush.bf16.msra.mxu0 %v732
    %2931 = vmatpush.bf16.msra.mxu0 %v724
    %2932 = vmatmul.bf16.gmra.mxu0 %v2845
    %v2933 = vpop.f32.mrf.mxu0
    %v2934 = vadd.f32 0.0, %v2933
    %v2935 = vpop.f32.mrf.mxu0
    %2936 = vdwg.mxu0
    %2937 = vmatpush.bf16.msra.mxu0 %v781
    %2938 = vmatpush.bf16.msra.mxu0 %v773
    %2939 = vmatpush.bf16.msra.mxu0 %v765
    %2940 = vmatpush.bf16.msra.mxu0 %v757
    %2941 = vmatpush.bf16.msra.mxu0 %v749
    %2942 = vmatpush.bf16.msra.mxu0 %v741
    %2943 = vmatpush.bf16.msra.mxu0 %v733
    %2944 = vmatpush.bf16.msra.mxu0 %v725
    %2945 = vmatmul.bf16.gmra.mxu0 %v2845
    %v2946 = vpop.f32.mrf.mxu0
    %v2947 = vadd.f32 0.0, %v2946
    %v2948 = vpop.f32.mrf.mxu0
    %2949 = vdwg.mxu0
    %v2950 = vpack.c.bf16 %v2844, %v2844
    %2951 = vmatpush.bf16.msra.mxu0 %v1106
    %2952 = vmatpush.bf16.msra.mxu0 %v1102
    %2953 = vmatpush.bf16.msra.mxu0 %v1098
    %2954 = vmatpush.bf16.msra.mxu0 %v1094
    %2955 = vmatpush.bf16.msra.mxu0 %v1090
    %2956 = vmatpush.bf16.msra.mxu0 %v1086
    %2957 = vmatpush.bf16.msra.mxu0 %v1082
    %2958 = vmatpush.bf16.msra.mxu0 %v1078
    %2959 = vmatmul.bf16.gmra.mxu0 %v2950
    %v2960 = vpop.f32.mrf.mxu0
    %v2961 = vadd.f32 0.0, %v2960
    %v2962 = vpop.f32.mrf.mxu0
    %2963 = vdwg.mxu0
    %2964 = vmatpush.bf16.msra.mxu0 %v1107
    %2965 = vmatpush.bf16.msra.mxu0 %v1103
    %2966 = vmatpush.bf16.msra.mxu0 %v1099
    %2967 = vmatpush.bf16.msra.mxu0 %v1095
    %2968 = vmatpush.bf16.msra.mxu0 %v1091
    %2969 = vmatpush.bf16.msra.mxu0 %v1087
    %2970 = vmatpush.bf16.msra.mxu0 %v1083
    %2971 = vmatpush.bf16.msra.mxu0 %v1079
    %2972 = vmatmul.bf16.gmra.mxu0 %v2950
    %v2973 = vpop.f32.mrf.mxu0
    %v2974 = vadd.f32 0.0, %v2973
    %v2975 = vpop.f32.mrf.mxu0
    %2976 = vdwg.mxu0
    %2977 = vmatpush.bf16.msra.mxu0 %v1108
    %2978 = vmatpush.bf16.msra.mxu0 %v1104
    %2979 = vmatpush.bf16.msra.mxu0 %v1100
    %2980 = vmatpush.bf16.msra.mxu0 %v1096
    %2981 = vmatpush.bf16.msra.mxu0 %v1092
    %2982 = vmatpush.bf16.msra.mxu0 %v1088
    %2983 = vmatpush.bf16.msra.mxu0 %v1084
    %2984 = vmatpush.bf16.msra.mxu0 %v1080
    %2985 = vmatmul.bf16.gmra.mxu0 %v2950
    %v2986 = vpop.f32.mrf.mxu0
    %v2987 = vadd.f32 0.0, %v2986
    %v2988 = vpop.f32.mrf.mxu0
    %2989 = vdwg.mxu0
    %2990 = vmatpush.bf16.msra.mxu0 %v1109
    %2991 = vmatpush.bf16.msra.mxu0 %v1105
    %2992 = vmatpush.bf16.msra.mxu0 %v1101
    %2993 = vmatpush.bf16.msra.mxu0 %v1097
    %2994 = vmatpush.bf16.msra.mxu0 %v1093
    %2995 = vmatpush.bf16.msra.mxu0 %v1089
    %2996 = vmatpush.bf16.msra.mxu0 %v1085
    %2997 = vmatpush.bf16.msra.mxu0 %v1081
    %2998 = vmatmul.bf16.gmra.mxu0 %v2950
    %v2999 = vpop.f32.mrf.mxu0
    %v3000 = vadd.f32 0.0, %v2999
    %v3001 = vpop.f32.mrf.mxu0
    %3002 = vdwg.mxu0
    %v3003 = vld [vmem:[#allocation2 + $0xe0] sm:$0xff]
    %v3004 = vld [vmem:[#allocation2 + $0xe8] sm:$0xff]
    %v3005 = vld [vmem:[#allocation2 + $0xf0] sm:$0xff]
    %v3006 = vld [vmem:[#allocation2 + $0xf8] sm:$0xff]
    %v3007 = vadd.f32 %v3003, %v2856
    %v3008 = vadd.f32 %v3004, %v2869
    %v3009 = vadd.f32 %v3005, %v2882
    %v3010 = vadd.f32 %v3006, %v2895
    %v3011 = vadd.f32 %v2908, %v1203
    %v3012 = vadd.f32 %v2921, %v1204
    %v3013 = vadd.f32 %v2934, %v1205
    %v3014 = vadd.f32 %v2947, %v1206
    %v3015 = vadd.f32 %v3011, %v2961
    %v3016 = vadd.f32 %v3012, %v2974
    %v3017 = vadd.f32 %v3013, %v2987
    %v3018 = vadd.f32 %v3014, %v3000
    %v3019 = vxor.u32 %v3007, 2147483648
    %v3020 = vxor.u32 %v3008, 2147483648
    %v3021 = vxor.u32 %v3009, 2147483648
    %v3022 = vmul.f32 %v3019, 1.442695
    %v3023 = vpow.pop %v3022
    %v3024 = vmul.f32 %v3020, 1.442695
    %v3025 = vpow.pop %v3024
    %v3026 = vmul.f32 %v3021, 1.442695
    %v3027 = vpow.pop %v3026
    %v3028 = vadd.f32 %v3023, 1.0
    %v3029 = vadd.f32 %v3025, 1.0
    %v3030 = vadd.f32 %v3027, 1.0
    %v3031 = vrcp.pop %v3028
    %v3032 = vmul.f32 %v3028, %v3031
    %v3033 = vsub.f32 1.0, %v3032
    %v3034 = vmul.f32 %v3031, %v3033
    %v3035 = vadd.f32 %v3031, %v3034
    %vm3036 = vweird.f32 %v3028
    %vm3037 = vweird.f32 %v3031
    %vm3038 = vmor %vm3036, %vm3037
    %v3039 = vsel %vm3038, %v3031, %v3035
    %v3040 = vand.u32 2147483647, %v3028
    %vm3041 = vcmp.eq.f32.partialorder %v3040, 8.507059e+37
    %v3042 = vand.u32 %v3028, 2147483648
    %v3043 = vor.u32 1.1754944e-38, %v3042
    %v3044 = vsel %vm3041, %v3043, %v3039
    %v3045 = vmul.f32 1.0, %v3044
    %v3046 = vrcp.pop %v3029
    %v3047 = vmul.f32 %v3029, %v3046
    %v3048 = vsub.f32 1.0, %v3047
    %v3049 = vmul.f32 %v3046, %v3048
    %v3050 = vadd.f32 %v3046, %v3049
    %vm3051 = vweird.f32 %v3029
    %vm3052 = vweird.f32 %v3046
    %vm3053 = vmor %vm3051, %vm3052
    %v3054 = vsel %vm3053, %v3046, %v3050
    %v3055 = vand.u32 2147483647, %v3029
    %vm3056 = vcmp.eq.f32.partialorder %v3055, 8.507059e+37
    %v3057 = vand.u32 %v3029, 2147483648
    %v3058 = vor.u32 1.1754944e-38, %v3057
    %v3059 = vsel %vm3056, %v3058, %v3054
    %v3060 = vmul.f32 1.0, %v3059
    %v3061 = vrcp.pop %v3030
    %v3062 = vmul.f32 %v3030, %v3061
    %v3063 = vsub.f32 1.0, %v3062
    %v3064 = vmul.f32 %v3061, %v3063
    %v3065 = vadd.f32 %v3061, %v3064
    %vm3066 = vweird.f32 %v3030
    %vm3067 = vweird.f32 %v3061
    %vm3068 = vmor %vm3066, %vm3067
    %v3069 = vsel %vm3068, %v3061, %v3065
    %v3070 = vand.u32 2147483647, %v3030
    %vm3071 = vcmp.eq.f32.partialorder %v3070, 8.507059e+37
    %v3072 = vand.u32 %v3030, 2147483648
    %v3073 = vor.u32 1.1754944e-38, %v3072
    %v3074 = vsel %vm3071, %v3073, %v3069
    %v3075 = vmul.f32 1.0, %v3074
    %v3076 = vtanh.pop %v3010
    %v3077 = vmul.f32 %v3060, %v2779
    %v3078 = vmul.f32 %v3045, %v3076
    %v3079 = vadd.f32 %v3077, %v3078
    %v3080 = vtanh.pop %v3079
    %v3081 = vmul.f32 %v3075, %v3080
    %v3082 = vxor.u32 %v3015, 2147483648
    %v3083 = vxor.u32 %v3016, 2147483648
    %v3084 = vxor.u32 %v3017, 2147483648
    %v3085 = vmul.f32 %v3082, 1.442695
    %v3086 = vpow.pop %v3085
    %v3087 = vmul.f32 %v3083, 1.442695
    %v3088 = vpow.pop %v3087
    %v3089 = vmul.f32 %v3084, 1.442695
    %v3090 = vpow.pop %v3089
    %v3091 = vadd.f32 %v3086, 1.0
    %v3092 = vadd.f32 %v3088, 1.0
    %v3093 = vadd.f32 %v3090, 1.0
    %v3094 = vrcp.pop %v3091
    %v3095 = vmul.f32 %v3091, %v3094
    %v3096 = vsub.f32 1.0, %v3095
    %v3097 = vmul.f32 %v3094, %v3096
    %v3098 = vadd.f32 %v3094, %v3097
    %vm3099 = vweird.f32 %v3091
    %vm3100 = vweird.f32 %v3094
    %vm3101 = vmor %vm3099, %vm3100
    %v3102 = vsel %vm3101, %v3094, %v3098
    %v3103 = vand.u32 2147483647, %v3091
    %vm3104 = vcmp.eq.f32.partialorder %v3103, 8.507059e+37
    %v3105 = vand.u32 %v3091, 2147483648
    %v3106 = vor.u32 1.1754944e-38, %v3105
    %v3107 = vsel %vm3104, %v3106, %v3102
    %v3108 = vmul.f32 1.0, %v3107
    %v3109 = vrcp.pop %v3092
    %v3110 = vmul.f32 %v3092, %v3109
    %v3111 = vsub.f32 1.0, %v3110
    %v3112 = vmul.f32 %v3109, %v3111
    %v3113 = vadd.f32 %v3109, %v3112
    %vm3114 = vweird.f32 %v3092
    %vm3115 = vweird.f32 %v3109
    %vm3116 = vmor %vm3114, %vm3115
    %v3117 = vsel %vm3116, %v3109, %v3113
    %v3118 = vand.u32 2147483647, %v3092
    %vm3119 = vcmp.eq.f32.partialorder %v3118, 8.507059e+37
    %v3120 = vand.u32 %v3092, 2147483648
    %v3121 = vor.u32 1.1754944e-38, %v3120
    %v3122 = vsel %vm3119, %v3121, %v3117
    %v3123 = vmul.f32 1.0, %v3122
    %v3124 = vrcp.pop %v3093
    %v3125 = vmul.f32 %v3093, %v3124
    %v3126 = vsub.f32 1.0, %v3125
    %v3127 = vmul.f32 %v3124, %v3126
    %v3128 = vadd.f32 %v3124, %v3127
    %vm3129 = vweird.f32 %v3093
    %vm3130 = vweird.f32 %v3124
    %vm3131 = vmor %vm3129, %vm3130
    %v3132 = vsel %vm3131, %v3124, %v3128
    %v3133 = vand.u32 2147483647, %v3093
    %vm3134 = vcmp.eq.f32.partialorder %v3133, 8.507059e+37
    %v3135 = vand.u32 %v3093, 2147483648
    %v3136 = vor.u32 1.1754944e-38, %v3135
    %v3137 = vsel %vm3134, %v3136, %v3132
    %v3138 = vmul.f32 1.0, %v3137
    %v3139 = vtanh.pop %v3018
    %v3140 = vmul.f32 %v3123, %v2842
    %v3141 = vmul.f32 %v3108, %v3139
    %v3142 = vadd.f32 %v3140, %v3141
    %v3143 = vtanh.pop %v3142
    %v3144 = vmul.f32 %v3138, %v3143
    %v3145 = vpack.c.bf16 %v3081, %v3081
    %v3146 = vpack.c.bf16 %v3144, %v3144
    %3147 = vmatpush.bf16.msra.mxu0 %v1106
    %3148 = vmatpush.bf16.msra.mxu0 %v1102
    %3149 = vmatpush.bf16.msra.mxu0 %v1098
    %3150 = vmatpush.bf16.msra.mxu0 %v1094
    %3151 = vmatpush.bf16.msra.mxu0 %v1090
    %3152 = vmatpush.bf16.msra.mxu0 %v1086
    %3153 = vmatpush.bf16.msra.mxu0 %v1082
    %3154 = vmatpush.bf16.msra.mxu0 %v1078
    %3155 = vmatmul.bf16.gmra.mxu0 %v3146
    %v3156 = vpop.f32.mrf.mxu0
    %v3157 = vadd.f32 0.0, %v3156
    %v3158 = vpop.f32.mrf.mxu0
    %3159 = vdwg.mxu0
    %3160 = vmatpush.bf16.msra.mxu0 %v1107
    %3161 = vmatpush.bf16.msra.mxu0 %v1103
    %3162 = vmatpush.bf16.msra.mxu0 %v1099
    %3163 = vmatpush.bf16.msra.mxu0 %v1095
    %3164 = vmatpush.bf16.msra.mxu0 %v1091
    %3165 = vmatpush.bf16.msra.mxu0 %v1087
    %3166 = vmatpush.bf16.msra.mxu0 %v1083
    %3167 = vmatpush.bf16.msra.mxu0 %v1079
    %3168 = vmatmul.bf16.gmra.mxu0 %v3146
    %v3169 = vpop.f32.mrf.mxu0
    %v3170 = vadd.f32 0.0, %v3169
    %v3171 = vpop.f32.mrf.mxu0
    %3172 = vdwg.mxu0
    %3173 = vmatpush.bf16.msra.mxu0 %v1108
    %3174 = vmatpush.bf16.msra.mxu0 %v1104
    %3175 = vmatpush.bf16.msra.mxu0 %v1100
    %3176 = vmatpush.bf16.msra.mxu0 %v1096
    %3177 = vmatpush.bf16.msra.mxu0 %v1092
    %3178 = vmatpush.bf16.msra.mxu0 %v1088
    %3179 = vmatpush.bf16.msra.mxu0 %v1084
    %3180 = vmatpush.bf16.msra.mxu0 %v1080
    %3181 = vmatmul.bf16.gmra.mxu0 %v3146
    %v3182 = vpop.f32.mrf.mxu0
    %v3183 = vadd.f32 0.0, %v3182
    %v3184 = vpop.f32.mrf.mxu0
    %3185 = vdwg.mxu0
    %3186 = vmatpush.bf16.msra.mxu0 %v1109
    %3187 = vmatpush.bf16.msra.mxu0 %v1105
    %3188 = vmatpush.bf16.msra.mxu0 %v1101
    %3189 = vmatpush.bf16.msra.mxu0 %v1097
    %3190 = vmatpush.bf16.msra.mxu0 %v1093
    %3191 = vmatpush.bf16.msra.mxu0 %v1089
    %3192 = vmatpush.bf16.msra.mxu0 %v1085
    %3193 = vmatpush.bf16.msra.mxu0 %v1081
    %3194 = vmatmul.bf16.gmra.mxu0 %v3146
    %v3195 = vpop.f32.mrf.mxu0
    %v3196 = vadd.f32 0.0, %v3195
    %v3197 = vpop.f32.mrf.mxu0
    %3198 = vdwg.mxu0
    %3199 = vmatpush.bf16.msra.mxu0 %v778
    %3200 = vmatpush.bf16.msra.mxu0 %v770
    %3201 = vmatpush.bf16.msra.mxu0 %v762
    %3202 = vmatpush.bf16.msra.mxu0 %v754
    %3203 = vmatpush.bf16.msra.mxu0 %v746
    %3204 = vmatpush.bf16.msra.mxu0 %v738
    %3205 = vmatpush.bf16.msra.mxu0 %v730
    %3206 = vmatpush.bf16.msra.mxu0 %v722
    %3207 = vmatmul.bf16.gmra.mxu0 %v3145
    %v3208 = vpop.f32.mrf.mxu0
    %v3209 = vadd.f32 %v1203, %v3208
    %v3210 = vpop.f32.mrf.mxu0
    %3211 = vdwg.mxu0
    %3212 = vmatpush.bf16.msra.mxu0 %v779
    %3213 = vmatpush.bf16.msra.mxu0 %v771
    %3214 = vmatpush.bf16.msra.mxu0 %v763
    %3215 = vmatpush.bf16.msra.mxu0 %v755
    %3216 = vmatpush.bf16.msra.mxu0 %v747
    %3217 = vmatpush.bf16.msra.mxu0 %v739
    %3218 = vmatpush.bf16.msra.mxu0 %v731
    %3219 = vmatpush.bf16.msra.mxu0 %v723
    %3220 = vmatmul.bf16.gmra.mxu0 %v3145
    %v3221 = vpop.f32.mrf.mxu0
    %v3222 = vadd.f32 %v1204, %v3221
    %v3223 = vpop.f32.mrf.mxu0
    %3224 = vdwg.mxu0
    %3225 = vmatpush.bf16.msra.mxu0 %v780
    %3226 = vmatpush.bf16.msra.mxu0 %v772
    %3227 = vmatpush.bf16.msra.mxu0 %v764
    %3228 = vmatpush.bf16.msra.mxu0 %v756
    %3229 = vmatpush.bf16.msra.mxu0 %v748
    %3230 = vmatpush.bf16.msra.mxu0 %v740
    %3231 = vmatpush.bf16.msra.mxu0 %v732
    %3232 = vmatpush.bf16.msra.mxu0 %v724
    %3233 = vmatmul.bf16.gmra.mxu0 %v3145
    %v3234 = vpop.f32.mrf.mxu0
    %v3235 = vadd.f32 %v1205, %v3234
    %v3236 = vpop.f32.mrf.mxu0
    %3237 = vdwg.mxu0
    %3238 = vmatpush.bf16.msra.mxu0 %v781
    %3239 = vmatpush.bf16.msra.mxu0 %v773
    %3240 = vmatpush.bf16.msra.mxu0 %v765
    %3241 = vmatpush.bf16.msra.mxu0 %v757
    %3242 = vmatpush.bf16.msra.mxu0 %v749
    %3243 = vmatpush.bf16.msra.mxu0 %v741
    %3244 = vmatpush.bf16.msra.mxu0 %v733
    %3245 = vmatpush.bf16.msra.mxu0 %v725
    %3246 = vmatmul.bf16.gmra.mxu0 %v3145
    %v3247 = vpop.f32.mrf.mxu0
    %v3248 = vadd.f32 %v1206, %v3247
    %v3249 = vpop.f32.mrf.mxu0
    %3250 = vdwg.mxu0
    %v3251 = vadd.f32 %v3209, %v3157
    %v3252 = vadd.f32 %v3222, %v3170
    %v3253 = vadd.f32 %v3235, %v3183
    %v3254 = vadd.f32 %v3248, %v3196
    %v3255 = vxor.u32 %v3251, 2147483648
    %v3256 = vxor.u32 %v3252, 2147483648
    %v3257 = vxor.u32 %v3253, 2147483648
    %v3258 = vmul.f32 %v3255, 1.442695
    %v3259 = vpow.pop %v3258
    %v3260 = vmul.f32 %v3256, 1.442695
    %v3261 = vpow.pop %v3260
    %v3262 = vmul.f32 %v3257, 1.442695
    %v3263 = vpow.pop %v3262
    %v3264 = vadd.f32 %v3259, 1.0
    %v3265 = vadd.f32 %v3261, 1.0
    %v3266 = vadd.f32 %v3263, 1.0
    %v3267 = vrcp.pop %v3264
    %v3268 = vmul.f32 %v3264, %v3267
    %v3269 = vsub.f32 1.0, %v3268
    %v3270 = vmul.f32 %v3267, %v3269
    %v3271 = vadd.f32 %v3267, %v3270
    %vm3272 = vweird.f32 %v3264
    %vm3273 = vweird.f32 %v3267
    %vm3274 = vmor %vm3272, %vm3273
    %v3275 = vsel %vm3274, %v3267, %v3271
    %v3276 = vand.u32 2147483647, %v3264
    %vm3277 = vcmp.eq.f32.partialorder %v3276, 8.507059e+37
    %v3278 = vand.u32 %v3264, 2147483648
    %v3279 = vor.u32 1.1754944e-38, %v3278
    %v3280 = vsel %vm3277, %v3279, %v3275
    %v3281 = vmul.f32 1.0, %v3280
    %v3282 = vrcp.pop %v3265
    %v3283 = vmul.f32 %v3265, %v3282
    %v3284 = vsub.f32 1.0, %v3283
    %v3285 = vmul.f32 %v3282, %v3284
    %v3286 = vadd.f32 %v3282, %v3285
    %vm3287 = vweird.f32 %v3265
    %vm3288 = vweird.f32 %v3282
    %vm3289 = vmor %vm3287, %vm3288
    %v3290 = vsel %vm3289, %v3282, %v3286
    %v3291 = vand.u32 2147483647, %v3265
    %vm3292 = vcmp.eq.f32.partialorder %v3291, 8.507059e+37
    %v3293 = vand.u32 %v3265, 2147483648
    %v3294 = vor.u32 1.1754944e-38, %v3293
    %v3295 = vsel %vm3292, %v3294, %v3290
    %v3296 = vmul.f32 1.0, %v3295
    %v3297 = vrcp.pop %v3266
    %v3298 = vmul.f32 %v3266, %v3297
    %v3299 = vsub.f32 1.0, %v3298
    %v3300 = vmul.f32 %v3297, %v3299
    %v3301 = vadd.f32 %v3297, %v3300
    %vm3302 = vweird.f32 %v3266
    %vm3303 = vweird.f32 %v3297
    %vm3304 = vmor %vm3302, %vm3303
    %v3305 = vsel %vm3304, %v3297, %v3301
    %v3306 = vand.u32 2147483647, %v3266
    %vm3307 = vcmp.eq.f32.partialorder %v3306, 8.507059e+37
    %v3308 = vand.u32 %v3266, 2147483648
    %v3309 = vor.u32 1.1754944e-38, %v3308
    %v3310 = vsel %vm3307, %v3309, %v3305
    %v3311 = vmul.f32 1.0, %v3310
    %v3312 = vtanh.pop %v3254
    %v3313 = vmul.f32 %v3296, %v3142
    %v3314 = vmul.f32 %v3281, %v3312
    %v3315 = vadd.f32 %v3313, %v3314
    %v3316 = vtanh.pop %v3315
    %v3317 = vmul.f32 %v3311, %v3316
    %v3318 = vld [vmem:[%s6] sm:$0xff]
    %v3319 = vld [vmem:[%s6 + $0x8] sm:$0xff]
    %v3320 = vld [vmem:[%s6 + $0x10] sm:$0xff]
    %v3321 = vld [vmem:[%s6 + $0x18] sm:$0xff]
    %v3322 = vld [vmem:[%s6 + $0x20] sm:$0xff]
    %v3323 = vld [vmem:[%s6 + $0x28] sm:$0xff]
    %v3324 = vld [vmem:[%s6 + $0x30] sm:$0xff]
    %v3325 = vld [vmem:[%s6 + $0x38] sm:$0xff]
    %v3326 = vld [vmem:[%s6 + $0x40] sm:$0xff]
    %v3327 = vld [vmem:[%s6 + $0x48] sm:$0xff]
    %v3328 = vld [vmem:[%s6 + $0x50] sm:$0xff]
    %v3329 = vld [vmem:[%s6 + $0x58] sm:$0xff]
    %v3330 = vld [vmem:[%s6 + $0x60] sm:$0xff]
    %v3331 = vld [vmem:[%s6 + $0x68] sm:$0xff]
    %v3332 = vld [vmem:[%s6 + $0x70] sm:$0xff]
    %v3333 = vld [vmem:[%s6 + $0x78] sm:$0xff]
    %v3334 = vld [vmem:[%s7] sm:$0x1]
    %v3336 = vperm.slane %v3334, 0
    %3338 = vmatpush.msra.mxu0 %v3333
    %3339 = vmatpush.msra.mxu0 %v3332
    %3340 = vmatpush.msra.mxu0 %v3331
    %3341 = vmatpush.msra.mxu0 %v3330
    %3342 = vmatpush.msra.mxu0 %v3329
    %3343 = vmatpush.msra.mxu0 %v3328
    %3344 = vmatpush.msra.mxu0 %v3327
    %3345 = vmatpush.msra.mxu0 %v3326
    %3346 = vmatpush.msra.mxu0 %v3325
    %3347 = vmatpush.msra.mxu0 %v3324
    %3348 = vmatpush.msra.mxu0 %v3323
    %3349 = vmatpush.msra.mxu0 %v3322
    %3350 = vmatpush.msra.mxu0 %v3321
    %3351 = vmatpush.msra.mxu0 %v3320
    %3352 = vmatpush.msra.mxu0 %v3319
    %3353 = vmatpush.msra.mxu0 %v3318
    %3354 = vmatmul.f32.gmra.mxu0 %v3317
    %v3355 = vpop.f32.mrf.mxu0
    %v3356 = vadd.f32 %v3336, %v3355
    %3357 = vdwg.mxu0
    %3358 = vst [vmem:[#allocation3] sm:$0xff] %v3356
    // Predicated region
    $region34: #{lstm_classifier.1} parent=1 // pred_check
      _
    $region35: #{lstm_classifier.1} parent=1 // pred_check_branch
      %3360 = sbr.rel (0) target = $region37
    $region36: #{lstm_classifier.1} parent=1 // pred_region
      %3362 = vsyncadd [#allocation4], 0
      %s3364 = sshll.u32 [#allocation3], 4
      %s3365 = int_to_ptr.vmem [resolvable:$true] %s3364
      %s3366 = sshll.u32 %s8, 4
      %s3367 = int_to_ptr.hbm [resolvable:$true] %s3366
      %3369 = dma.vmem_to_hbm [thread:$0]  %s3365, 128, %s3367, [#allocation4]
    $region37: #{lstm_classifier.1} parent=1 // pred_fallthru
      _
    // Predicated region
    $region38: #{lstm_classifier.1} parent=1 // pred_check
      _
    $region39: #{lstm_classifier.1} parent=1 // pred_check_branch
      %3371 = sbr.rel (0) target = $region41
    $region40: #{lstm_classifier.1} parent=1 // pred_region
      %3373 = dma.done [#allocation4], 128
    $region41: #{lstm_classifier.1} parent=1 // pred_fallthru
      _
    %3374 = vsyncpa [#allocation4], 1

</llo_original>
